<compile_context>
chip_gen: v6e
topology: v6e:2x2x1
jax: 0.10.0
libtpu: 0.0.40
codegen_flags: <defaults>
</compile_context>

<pallas_src>
import functools

import jax
import jax.numpy as jnp
from jax.experimental import pallas as pl
from jax.experimental.pallas import tpu as pltpu


def _round_up(x, m):
    return (x + m - 1) // m * m


def _choose_tile_h(H, wp, cin_p, tc, budget_bytes=8 * 1024 * 1024):
    """Largest divisor of H whose double-buffered working set fits the budget."""
    divisors = [d for d in range(1, H + 1) if H % d == 0]

    def fits(th):
        in_b = (th + 2) * (wp + 2) * cin_p * 2      # bf16 input block (with halo)
        out_b = th * wp * tc * 4                    # f32 output block / accumulator
        w_b = 9 * cin_p * tc * 2                    # bf16 weight block
        return 2 * (in_b + out_b + w_b) <= budget_bytes

    feasible = [d for d in divisors if fits(d)]
    if not feasible:
        return 1
    # Prefer >= 2 H-tiles (when H is not tiny) so the pipeline has work to overlap.
    cap = max(8, H // 2)
    capped = [d for d in feasible if d <= cap]
    return max(capped) if capped else min(feasible)


def _conv_bn_relu_kernel(x_ref, w_ref, scale_ref, bias_ref, o_ref, *, tile_h, wp, cin, tc):
    """One (batch, Cout-tile, H-tile) block per grid step.

    x_ref:     (1, tile_h+2, wp+2, cin)  bf16, spatially padded rows incl. halo
    w_ref:     (3, 3, cin, tc)           bf16 conv weights (HWIO, channel-padded)
    scale_ref: (1, tc)                   f32 folded BN scale
    bias_ref:  (1, tc)                   f32 folded BN bias
    o_ref:     (1, tile_h*wp, tc)        f32 output slab (rows = flattened (h, w))
    """
    rows = tile_h * wp
    # 3x3 conv as 9 shifted (rows, cin) x (cin, tc) MXU matmuls, accumulated in
    # the f32 output block (acts as the VMEM accumulator).
    for dh in range(3):
        for dw in range(3):
            patch = x_ref[0, dh:dh + tile_h, dw:dw + wp, :]        # (tile_h, wp, cin) bf16
            taps = w_ref[dh, dw]                                   # (cin, tc) bf16
            contrib = jnp.dot(patch.reshape(rows, cin), taps,
                              preferred_element_type=jnp.float32)  # (rows, tc) f32
            if dh == 0 and dw == 0:
                o_ref[0] = contrib
            else:
                o_ref[0] += contrib
    # Fused BN (eval) + ReLU epilogue in f32.
    y = o_ref[0] * scale_ref[...] + bias_ref[...]
    o_ref[0] = jnp.maximum(y, 0.0)


def conv_bn_relu(x_nchw, weight_oihw, conv_bias, gamma, beta, running_mean,
                 running_var, eps=1e-5):
    """Equivalent of Conv(input_channels, output_channels).forward in eval mode.

    x_nchw:      (N, Cin, H, W) float32
    weight_oihw: (Cout, Cin, 3, 3)
    returns:     (N, Cout, H, W) float32
    """
    N, Cin, H, W = x_nchw.shape
    Cout = weight_oihw.shape[0]

    # ---- layout / padding constants ----
    cin_p = _round_up(Cin, 128)                 # lane-dense K for the MXU
    cout_p = _round_up(Cout, 128)               # lane-dense output channels
    wp = _round_up(W, 8)                        # sublane-aligned width
    tc = 256 if cout_p % 256 == 0 else 128      # Cout tile
    n_c = cout_p // tc
    tile_h = _choose_tile_h(H, wp, cin_p, tc)

    # ---- glue (plain JAX): layout transforms, padding, BN folding, bf16 cast ----
    x_nhwc = jnp.transpose(x_nchw, (0, 2, 3, 1))                       # NCHW -> NHWC
    x_pad = jnp.pad(x_nhwc, ((0, 0), (1, 1), (1, wp - W + 1), (0, cin_p - Cin)))
    x_pad = x_pad.astype(jnp.bfloat16)                                 # (N, H+2, wp+2, cin_p)

    w_hwio = jnp.transpose(weight_oihw, (2, 3, 1, 0))                  # OIHW -> HWIO
    w_hwio = jnp.pad(w_hwio, ((0, 0), (0, 0), (0, cin_p - Cin), (0, cout_p - Cout)))
    w_hwio = w_hwio.astype(jnp.bfloat16)                               # (3, 3, cin_p, cout_p)

    scale = (gamma / jnp.sqrt(running_var + eps)).astype(jnp.float32)
    bias = ((conv_bias - running_mean) * scale + beta).astype(jnp.float32)
    scale_p = jnp.pad(scale, (0, cout_p - Cout)).reshape(1, cout_p)
    bias_p = jnp.pad(bias, (0, cout_p - Cout)).reshape(1, cout_p)

    def build(tile_h_, halo_tiled):
        kernel = functools.partial(_conv_bn_relu_kernel,
                                   tile_h=tile_h_, wp=wp, cin=cin_p, tc=tc)
        if halo_tiled:
            # Overlapping (tile_h+2)-row windows: element-offset index on the H axis.
            x_spec = pl.BlockSpec(
                (1, pl.Element(tile_h_ + 2), wp + 2, cin_p),
                lambda n, c, h: (n, h * tile_h_, 0, 0))
        else:
            # Fallback: whole padded image per step (tile_h_ == H).
            x_spec = pl.BlockSpec(
                (1, H + 2, wp + 2, cin_p),
                lambda n, c, h: (n, 0, 0, 0))
        return pl.pallas_call(
            kernel,
            out_shape=jax.ShapeDtypeStruct((N, H * wp, cout_p), jnp.float32),
            grid_spec=pltpu.PrefetchScalarGridSpec(
                num_scalar_prefetch=0,
                grid=(N, n_c, H // tile_h_),
                in_specs=[
                    x_spec,
                    pl.BlockSpec((3, 3, cin_p, tc), lambda n, c, h: (0, 0, 0, c)),
                    pl.BlockSpec((1, tc), lambda n, c, h: (0, c)),
                    pl.BlockSpec((1, tc), lambda n, c, h: (0, c)),
                ],
                out_specs=pl.BlockSpec((1, tile_h_ * wp, tc), lambda n, c, h: (n, h, c)),
            ),
            compiler_params=pltpu.CompilerParams(
                dimension_semantics=("parallel", "parallel", "parallel"),
                vmem_limit_bytes=48 * 1024 * 1024,
            ),
        )

    try:
        out_flat = build(tile_h, True)(x_pad, w_hwio, scale_p, bias_p)
        out_flat = jax.block_until_ready(out_flat)
    except Exception:
        # Safety net if overlapping pl.Element windows fail to lower on this
        # backend: untiled H (still Cout-tiled, bf16, lane-dense output).
        out_flat = build(H, False)(x_pad, w_hwio, scale_p, bias_p)

    out = out_flat.reshape(N, H, wp, cout_p)[:, :, :W, :Cout]          # drop padding
    return jnp.transpose(out, (0, 3, 1, 2))                            # NHWC -> NCHW


def _reference(x_nchw, weight_oihw, conv_bias, gamma, beta, running_mean,
               running_var, eps=1e-5):
    """Pure-JAX f32 reference (conv via lax.conv_general_dilated)."""
    y = jax.lax.conv_general_dilated(
        x_nchw, weight_oihw, window_strides=(1, 1), padding=((1, 1), (1, 1)),
        dimension_numbers=("NCHW", "OIHW", "NCHW"))
    y = y + conv_bias[None, :, None, None]
    inv_std = 1.0 / jnp.sqrt(running_var + eps)
    y = (y - running_mean[None, :, None, None]) * (gamma * inv_std)[None, :, None, None]
    y = y + beta[None, :, None, None]
    return jnp.maximum(y, 0.0)


if __name__ == "__main__":
    key = jax.random.PRNGKey(0)
    k_x, k_w, k_b, k_g, k_bb, k_m, k_v = jax.random.split(key, 7)

    N, Cin, Cout, H, W = 2, 4, 8, 16, 16

    x = jax.random.normal(k_x, (N, Cin, H, W), dtype=jnp.float32)
    weight = jax.random.normal(k_w, (Cout, Cin, 3, 3), dtype=jnp.float32) * 0.1
    conv_bias = jax.random.normal(k_b, (Cout,), dtype=jnp.float32) * 0.1
    gamma = 1.0 + 0.1 * jax.random.normal(k_g, (Cout,), dtype=jnp.float32)
    beta = 0.1 * jax.random.normal(k_bb, (Cout,), dtype=jnp.float32)
    running_mean = 0.1 * jax.random.normal(k_m, (Cout,), dtype=jnp.float32)
    running_var = jnp.abs(1.0 + 0.1 * jax.random.normal(k_v, (Cout,), dtype=jnp.float32))

    out = conv_bn_relu(x, weight, conv_bias, gamma, beta, running_mean, running_var)
    out = jax.block_until_ready(out)

    ref = _reference(x, weight, conv_bias, gamma, beta, running_mean, running_var)
    assert out.shape == (N, Cout, H, W)
    # bf16 inputs/weights (f32 accumulation) -> loosened tolerance vs f32 reference.
    assert jnp.allclose(out, ref, atol=2e-2, rtol=2e-2), "mismatch vs reference"

    print("KERNEL_OK")
</pallas_src>

<mosaic_0001>
module attributes {stable_mosaic.version = 11 : i64} {
  func.func @_conv_bn_relu_kernel(%arg0: i32, %arg1: i32, %arg2: i32, %arg3: memref<1x18x18x128xbf16, #tpu.memory_space<vmem>>, %arg4: memref<3x3x128x128xbf16, #tpu.memory_space<vmem>>, %arg5: memref<1x128xf32, #tpu.memory_space<vmem>>, %arg6: memref<1x128xf32, #tpu.memory_space<vmem>>, %arg7: memref<1x256x128xf32, #tpu.memory_space<vmem>>) attributes {dimension_semantics = [#tpu.dimension_semantics<parallel>, #tpu.dimension_semantics<parallel>, #tpu.dimension_semantics<parallel>], iteration_bounds = array<i64: 2, 1, 1>, scalar_prefetch = 0 : i64, scratch_operands = 0 : i64, tpu.core_type = #tpu.core_type<tc>, window_params = [{transform_indices = @transform_0, window_bounds = array<i64: 1, 18, 18, 128>}, {transform_indices = @transform_1, window_bounds = array<i64: 3, 3, 128, 128>}, {transform_indices = @transform_2, window_bounds = array<i64: 1, 128>}, {transform_indices = @transform_3, window_bounds = array<i64: 1, 128>}, {transform_indices = @transform_4, window_bounds = array<i64: 1, 256, 128>}]} {
    %c0 = arith.constant 0 : index
    %c0_0 = arith.constant 0 : index
    %c0_1 = arith.constant 0 : index
    %c0_2 = arith.constant 0 : index
    %0 = vector.load %arg3[%c0, %c0_0, %c0_1, %c0_2] : memref<1x18x18x128xbf16, #tpu.memory_space<vmem>>, vector<1x16x16x128xbf16>
    %1 = vector.shape_cast %0 : vector<1x16x16x128xbf16> to vector<16x16x128xbf16>
    %c0_3 = arith.constant 0 : index
    %c0_4 = arith.constant 0 : index
    %c0_5 = arith.constant 0 : index
    %c0_6 = arith.constant 0 : index
    %2 = vector.load %arg4[%c0_3, %c0_4, %c0_5, %c0_6] : memref<3x3x128x128xbf16, #tpu.memory_space<vmem>>, vector<1x1x128x128xbf16>
    %3 = vector.shape_cast %2 : vector<1x1x128x128xbf16> to vector<128x128xbf16>
    %4 = vector.shape_cast %1 : vector<16x16x128xbf16> to vector<256x128xbf16>
    %cst = arith.constant dense<0.000000e+00> : vector<256x128xf32>
    %5 = tpu.matmul %4, %3, %cst {dimension_numbers = #tpu.dot_dimension_numbers<[1], [0], [0], [1], [0, 0, 1, 1], [], []>} : vector<256x128xbf16>, vector<128x128xbf16>, vector<256x128xf32> -> vector<256x128xf32>
    %c0_7 = arith.constant 0 : index
    %c0_8 = arith.constant 0 : index
    %c0_9 = arith.constant 0 : index
    %6 = vector.load %arg7[%c0_7, %c0_8, %c0_9] : memref<1x256x128xf32, #tpu.memory_space<vmem>>, vector<1x256x128xf32>
    %7 = vector.shape_cast %6 : vector<1x256x128xf32> to vector<256x128xf32>
    %8 = vector.shape_cast %5 : vector<256x128xf32> to vector<1x256x128xf32>
    tpu.vector_store %arg7[%c0_7, %c0_8, %c0_9], %8 {strides = array<i32>} : memref<1x256x128xf32, #tpu.memory_space<vmem>>, vector<1x256x128xf32>,
    %c0_10 = arith.constant 0 : index
    %c0_11 = arith.constant 0 : index
    %c1 = arith.constant 1 : index
    %c0_12 = arith.constant 0 : index
    %9 = vector.load %arg3[%c0_10, %c0_11, %c1, %c0_12] : memref<1x18x18x128xbf16, #tpu.memory_space<vmem>>, vector<1x16x16x128xbf16>
    %10 = vector.shape_cast %9 : vector<1x16x16x128xbf16> to vector<16x16x128xbf16>
    %c0_13 = arith.constant 0 : index
    %c1_14 = arith.constant 1 : index
    %c0_15 = arith.constant 0 : index
    %c0_16 = arith.constant 0 : index
    %11 = vector.load %arg4[%c0_13, %c1_14, %c0_15, %c0_16] : memref<3x3x128x128xbf16, #tpu.memory_space<vmem>>, vector<1x1x128x128xbf16>
    %12 = vector.shape_cast %11 : vector<1x1x128x128xbf16> to vector<128x128xbf16>
    %13 = vector.shape_cast %10 : vector<16x16x128xbf16> to vector<256x128xbf16>
    %cst_17 = arith.constant dense<0.000000e+00> : vector<256x128xf32>
    %14 = tpu.matmul %13, %12, %cst_17 {dimension_numbers = #tpu.dot_dimension_numbers<[1], [0], [0], [1], [0, 0, 1, 1], [], []>} : vector<256x128xbf16>, vector<128x128xbf16>, vector<256x128xf32> -> vector<256x128xf32>
    %c0_18 = arith.constant 0 : index
    %c0_19 = arith.constant 0 : index
    %c0_20 = arith.constant 0 : index
    %15 = vector.load %arg7[%c0_18, %c0_19, %c0_20] : memref<1x256x128xf32, #tpu.memory_space<vmem>>, vector<1x256x128xf32>
    %16 = vector.shape_cast %15 : vector<1x256x128xf32> to vector<256x128xf32>
    %17 = arith.addf %16, %14 : vector<256x128xf32>
    %c0_21 = arith.constant 0 : index
    %c0_22 = arith.constant 0 : index
    %c0_23 = arith.constant 0 : index
    %18 = vector.load %arg7[%c0_21, %c0_22, %c0_23] : memref<1x256x128xf32, #tpu.memory_space<vmem>>, vector<1x256x128xf32>
    %19 = vector.shape_cast %18 : vector<1x256x128xf32> to vector<256x128xf32>
    %20 = vector.shape_cast %17 : vector<256x128xf32> to vector<1x256x128xf32>
    tpu.vector_store %arg7[%c0_21, %c0_22, %c0_23], %20 {strides = array<i32>} : memref<1x256x128xf32, #tpu.memory_space<vmem>>, vector<1x256x128xf32>,
    %c0_24 = arith.constant 0 : index
    %c0_25 = arith.constant 0 : index
    %c2 = arith.constant 2 : index
    %c0_26 = arith.constant 0 : index
    %21 = vector.load %arg3[%c0_24, %c0_25, %c2, %c0_26] : memref<1x18x18x128xbf16, #tpu.memory_space<vmem>>, vector<1x16x16x128xbf16>
    %22 = vector.shape_cast %21 : vector<1x16x16x128xbf16> to vector<16x16x128xbf16>
    %c0_27 = arith.constant 0 : index
    %c2_28 = arith.constant 2 : index
    %c0_29 = arith.constant 0 : index
    %c0_30 = arith.constant 0 : index
    %23 = vector.load %arg4[%c0_27, %c2_28, %c0_29, %c0_30] : memref<3x3x128x128xbf16, #tpu.memory_space<vmem>>, vector<1x1x128x128xbf16>
    %24 = vector.shape_cast %23 : vector<1x1x128x128xbf16> to vector<128x128xbf16>
    %25 = vector.shape_cast %22 : vector<16x16x128xbf16> to vector<256x128xbf16>
    %cst_31 = arith.constant dense<0.000000e+00> : vector<256x128xf32>
    %26 = tpu.matmul %25, %24, %cst_31 {dimension_numbers = #tpu.dot_dimension_numbers<[1], [0], [0], [1], [0, 0, 1, 1], [], []>} : vector<256x128xbf16>, vector<128x128xbf16>, vector<256x128xf32> -> vector<256x128xf32>
    %c0_32 = arith.constant 0 : index
    %c0_33 = arith.constant 0 : index
    %c0_34 = arith.constant 0 : index
    %27 = vector.load %arg7[%c0_32, %c0_33, %c0_34] : memref<1x256x128xf32, #tpu.memory_space<vmem>>, vector<1x256x128xf32>
    %28 = vector.shape_cast %27 : vector<1x256x128xf32> to vector<256x128xf32>
    %29 = arith.addf %28, %26 : vector<256x128xf32>
    %c0_35 = arith.constant 0 : index
    %c0_36 = arith.constant 0 : index
    %c0_37 = arith.constant 0 : index
    %30 = vector.load %arg7[%c0_35, %c0_36, %c0_37] : memref<1x256x128xf32, #tpu.memory_space<vmem>>, vector<1x256x128xf32>
    %31 = vector.shape_cast %30 : vector<1x256x128xf32> to vector<256x128xf32>
    %32 = vector.shape_cast %29 : vector<256x128xf32> to vector<1x256x128xf32>
    tpu.vector_store %arg7[%c0_35, %c0_36, %c0_37], %32 {strides = array<i32>} : memref<1x256x128xf32, #tpu.memory_space<vmem>>, vector<1x256x128xf32>,
    %c0_38 = arith.constant 0 : index
    %c1_39 = arith.constant 1 : index
    %c0_40 = arith.constant 0 : index
    %c0_41 = arith.constant 0 : index
    %33 = vector.load %arg3[%c0_38, %c1_39, %c0_40, %c0_41] : memref<1x18x18x128xbf16, #tpu.memory_space<vmem>>, vector<1x16x16x128xbf16>
    %34 = vector.shape_cast %33 : vector<1x16x16x128xbf16> to vector<16x16x128xbf16>
    %c1_42 = arith.constant 1 : index
    %c0_43 = arith.constant 0 : index
    %c0_44 = arith.constant 0 : index
    %c0_45 = arith.constant 0 : index
    %35 = vector.load %arg4[%c1_42, %c0_43, %c0_44, %c0_45] : memref<3x3x128x128xbf16, #tpu.memory_space<vmem>>, vector<1x1x128x128xbf16>
    %36 = vector.shape_cast %35 : vector<1x1x128x128xbf16> to vector<128x128xbf16>
    %37 = vector.shape_cast %34 : vector<16x16x128xbf16> to vector<256x128xbf16>
    %cst_46 = arith.constant dense<0.000000e+00> : vector<256x128xf32>
    %38 = tpu.matmul %37, %36, %cst_46 {dimension_numbers = #tpu.dot_dimension_numbers<[1], [0], [0], [1], [0, 0, 1, 1], [], []>} : vector<256x128xbf16>, vector<128x128xbf16>, vector<256x128xf32> -> vector<256x128xf32>
    %c0_47 = arith.constant 0 : index
    %c0_48 = arith.constant 0 : index
    %c0_49 = arith.constant 0 : index
    %39 = vector.load %arg7[%c0_47, %c0_48, %c0_49] : memref<1x256x128xf32, #tpu.memory_space<vmem>>, vector<1x256x128xf32>
    %40 = vector.shape_cast %39 : vector<1x256x128xf32> to vector<256x128xf32>
    %41 = arith.addf %40, %38 : vector<256x128xf32>
    %c0_50 = arith.constant 0 : index
    %c0_51 = arith.constant 0 : index
    %c0_52 = arith.constant 0 : index
    %42 = vector.load %arg7[%c0_50, %c0_51, %c0_52] : memref<1x256x128xf32, #tpu.memory_space<vmem>>, vector<1x256x128xf32>
    %43 = vector.shape_cast %42 : vector<1x256x128xf32> to vector<256x128xf32>
    %44 = vector.shape_cast %41 : vector<256x128xf32> to vector<1x256x128xf32>
    tpu.vector_store %arg7[%c0_50, %c0_51, %c0_52], %44 {strides = array<i32>} : memref<1x256x128xf32, #tpu.memory_space<vmem>>, vector<1x256x128xf32>,
    %c0_53 = arith.constant 0 : index
    %c1_54 = arith.constant 1 : index
    %c1_55 = arith.constant 1 : index
    %c0_56 = arith.constant 0 : index
    %45 = vector.load %arg3[%c0_53, %c1_54, %c1_55, %c0_56] : memref<1x18x18x128xbf16, #tpu.memory_space<vmem>>, vector<1x16x16x128xbf16>
    %46 = vector.shape_cast %45 : vector<1x16x16x128xbf16> to vector<16x16x128xbf16>
    %c1_57 = arith.constant 1 : index
    %c1_58 = arith.constant 1 : index
    %c0_59 = arith.constant 0 : index
    %c0_60 = arith.constant 0 : index
    %47 = vector.load %arg4[%c1_57, %c1_58, %c0_59, %c0_60] : memref<3x3x128x128xbf16, #tpu.memory_space<vmem>>, vector<1x1x128x128xbf16>
    %48 = vector.shape_cast %47 : vector<1x1x128x128xbf16> to vector<128x128xbf16>
    %49 = vector.shape_cast %46 : vector<16x16x128xbf16> to vector<256x128xbf16>
    %cst_61 = arith.constant dense<0.000000e+00> : vector<256x128xf32>
    %50 = tpu.matmul %49, %48, %cst_61 {dimension_numbers = #tpu.dot_dimension_numbers<[1], [0], [0], [1], [0, 0, 1, 1], [], []>} : vector<256x128xbf16>, vector<128x128xbf16>, vector<256x128xf32> -> vector<256x128xf32>
    %c0_62 = arith.constant 0 : index
    %c0_63 = arith.constant 0 : index
    %c0_64 = arith.constant 0 : index
    %51 = vector.load %arg7[%c0_62, %c0_63, %c0_64] : memref<1x256x128xf32, #tpu.memory_space<vmem>>, vector<1x256x128xf32>
    %52 = vector.shape_cast %51 : vector<1x256x128xf32> to vector<256x128xf32>
    %53 = arith.addf %52, %50 : vector<256x128xf32>
    %c0_65 = arith.constant 0 : index
    %c0_66 = arith.constant 0 : index
    %c0_67 = arith.constant 0 : index
    %54 = vector.load %arg7[%c0_65, %c0_66, %c0_67] : memref<1x256x128xf32, #tpu.memory_space<vmem>>, vector<1x256x128xf32>
    %55 = vector.shape_cast %54 : vector<1x256x128xf32> to vector<256x128xf32>
    %56 = vector.shape_cast %53 : vector<256x128xf32> to vector<1x256x128xf32>
    tpu.vector_store %arg7[%c0_65, %c0_66, %c0_67], %56 {strides = array<i32>} : memref<1x256x128xf32, #tpu.memory_space<vmem>>, vector<1x256x128xf32>,
    %c0_68 = arith.constant 0 : index
    %c1_69 = arith.constant 1 : index
    %c2_70 = arith.constant 2 : index
    %c0_71 = arith.constant 0 : index
    %57 = vector.load %arg3[%c0_68, %c1_69, %c2_70, %c0_71] : memref<1x18x18x128xbf16, #tpu.memory_space<vmem>>, vector<1x16x16x128xbf16>
    %58 = vector.shape_cast %57 : vector<1x16x16x128xbf16> to vector<16x16x128xbf16>
    %c1_72 = arith.constant 1 : index
    %c2_73 = arith.constant 2 : index
    %c0_74 = arith.constant 0 : index
    %c0_75 = arith.constant 0 : index
    %59 = vector.load %arg4[%c1_72, %c2_73, %c0_74, %c0_75] : memref<3x3x128x128xbf16, #tpu.memory_space<vmem>>, vector<1x1x128x128xbf16>
    %60 = vector.shape_cast %59 : vector<1x1x128x128xbf16> to vector<128x128xbf16>
    %61 = vector.shape_cast %58 : vector<16x16x128xbf16> to vector<256x128xbf16>
    %cst_76 = arith.constant dense<0.000000e+00> : vector<256x128xf32>
    %62 = tpu.matmul %61, %60, %cst_76 {dimension_numbers = #tpu.dot_dimension_numbers<[1], [0], [0], [1], [0, 0, 1, 1], [], []>} : vector<256x128xbf16>, vector<128x128xbf16>, vector<256x128xf32> -> vector<256x128xf32>
    %c0_77 = arith.constant 0 : index
    %c0_78 = arith.constant 0 : index
    %c0_79 = arith.constant 0 : index
    %63 = vector.load %arg7[%c0_77, %c0_78, %c0_79] : memref<1x256x128xf32, #tpu.memory_space<vmem>>, vector<1x256x128xf32>
    %64 = vector.shape_cast %63 : vector<1x256x128xf32> to vector<256x128xf32>
    %65 = arith.addf %64, %62 : vector<256x128xf32>
    %c0_80 = arith.constant 0 : index
    %c0_81 = arith.constant 0 : index
    %c0_82 = arith.constant 0 : index
    %66 = vector.load %arg7[%c0_80, %c0_81, %c0_82] : memref<1x256x128xf32, #tpu.memory_space<vmem>>, vector<1x256x128xf32>
    %67 = vector.shape_cast %66 : vector<1x256x128xf32> to vector<256x128xf32>
    %68 = vector.shape_cast %65 : vector<256x128xf32> to vector<1x256x128xf32>
    tpu.vector_store %arg7[%c0_80, %c0_81, %c0_82], %68 {strides = array<i32>} : memref<1x256x128xf32, #tpu.memory_space<vmem>>, vector<1x256x128xf32>,
    %c0_83 = arith.constant 0 : index
    %c2_84 = arith.constant 2 : index
    %c0_85 = arith.constant 0 : index
    %c0_86 = arith.constant 0 : index
    %69 = vector.load %arg3[%c0_83, %c2_84, %c0_85, %c0_86] : memref<1x18x18x128xbf16, #tpu.memory_space<vmem>>, vector<1x16x16x128xbf16>
    %70 = vector.shape_cast %69 : vector<1x16x16x128xbf16> to vector<16x16x128xbf16>
    %c2_87 = arith.constant 2 : index
    %c0_88 = arith.constant 0 : index
    %c0_89 = arith.constant 0 : index
    %c0_90 = arith.constant 0 : index
    %71 = vector.load %arg4[%c2_87, %c0_88, %c0_89, %c0_90] : memref<3x3x128x128xbf16, #tpu.memory_space<vmem>>, vector<1x1x128x128xbf16>
    %72 = vector.shape_cast %71 : vector<1x1x128x128xbf16> to vector<128x128xbf16>
    %73 = vector.shape_cast %70 : vector<16x16x128xbf16> to vector<256x128xbf16>
    %cst_91 = arith.constant dense<0.000000e+00> : vector<256x128xf32>
    %74 = tpu.matmul %73, %72, %cst_91 {dimension_numbers = #tpu.dot_dimension_numbers<[1], [0], [0], [1], [0, 0, 1, 1], [], []>} : vector<256x128xbf16>, vector<128x128xbf16>, vector<256x128xf32> -> vector<256x128xf32>
    %c0_92 = arith.constant 0 : index
    %c0_93 = arith.constant 0 : index
    %c0_94 = arith.constant 0 : index
    %75 = vector.load %arg7[%c0_92, %c0_93, %c0_94] : memref<1x256x128xf32, #tpu.memory_space<vmem>>, vector<1x256x128xf32>
    %76 = vector.shape_cast %75 : vector<1x256x128xf32> to vector<256x128xf32>
    %77 = arith.addf %76, %74 : vector<256x128xf32>
    %c0_95 = arith.constant 0 : index
    %c0_96 = arith.constant 0 : index
    %c0_97 = arith.constant 0 : index
    %78 = vector.load %arg7[%c0_95, %c0_96, %c0_97] : memref<1x256x128xf32, #tpu.memory_space<vmem>>, vector<1x256x128xf32>
    %79 = vector.shape_cast %78 : vector<1x256x128xf32> to vector<256x128xf32>
    %80 = vector.shape_cast %77 : vector<256x128xf32> to vector<1x256x128xf32>
    tpu.vector_store %arg7[%c0_95, %c0_96, %c0_97], %80 {strides = array<i32>} : memref<1x256x128xf32, #tpu.memory_space<vmem>>, vector<1x256x128xf32>,
    %c0_98 = arith.constant 0 : index
    %c2_99 = arith.constant 2 : index
    %c1_100 = arith.constant 1 : index
    %c0_101 = arith.constant 0 : index
    %81 = vector.load %arg3[%c0_98, %c2_99, %c1_100, %c0_101] : memref<1x18x18x128xbf16, #tpu.memory_space<vmem>>, vector<1x16x16x128xbf16>
    %82 = vector.shape_cast %81 : vector<1x16x16x128xbf16> to vector<16x16x128xbf16>
    %c2_102 = arith.constant 2 : index
    %c1_103 = arith.constant 1 : index
    %c0_104 = arith.constant 0 : index
    %c0_105 = arith.constant 0 : index
    %83 = vector.load %arg4[%c2_102, %c1_103, %c0_104, %c0_105] : memref<3x3x128x128xbf16, #tpu.memory_space<vmem>>, vector<1x1x128x128xbf16>
    %84 = vector.shape_cast %83 : vector<1x1x128x128xbf16> to vector<128x128xbf16>
    %85 = vector.shape_cast %82 : vector<16x16x128xbf16> to vector<256x128xbf16>
    %cst_106 = arith.constant dense<0.000000e+00> : vector<256x128xf32>
    %86 = tpu.matmul %85, %84, %cst_106 {dimension_numbers = #tpu.dot_dimension_numbers<[1], [0], [0], [1], [0, 0, 1, 1], [], []>} : vector<256x128xbf16>, vector<128x128xbf16>, vector<256x128xf32> -> vector<256x128xf32>
    %c0_107 = arith.constant 0 : index
    %c0_108 = arith.constant 0 : index
    %c0_109 = arith.constant 0 : index
    %87 = vector.load %arg7[%c0_107, %c0_108, %c0_109] : memref<1x256x128xf32, #tpu.memory_space<vmem>>, vector<1x256x128xf32>
    %88 = vector.shape_cast %87 : vector<1x256x128xf32> to vector<256x128xf32>
    %89 = arith.addf %88, %86 : vector<256x128xf32>
    %c0_110 = arith.constant 0 : index
    %c0_111 = arith.constant 0 : index
    %c0_112 = arith.constant 0 : index
    %90 = vector.load %arg7[%c0_110, %c0_111, %c0_112] : memref<1x256x128xf32, #tpu.memory_space<vmem>>, vector<1x256x128xf32>
    %91 = vector.shape_cast %90 : vector<1x256x128xf32> to vector<256x128xf32>
    %92 = vector.shape_cast %89 : vector<256x128xf32> to vector<1x256x128xf32>
    tpu.vector_store %arg7[%c0_110, %c0_111, %c0_112], %92 {strides = array<i32>} : memref<1x256x128xf32, #tpu.memory_space<vmem>>, vector<1x256x128xf32>,
    %c0_113 = arith.constant 0 : index
    %c2_114 = arith.constant 2 : index
    %c2_115 = arith.constant 2 : index
    %c0_116 = arith.constant 0 : index
    %93 = vector.load %arg3[%c0_113, %c2_114, %c2_115, %c0_116] : memref<1x18x18x128xbf16, #tpu.memory_space<vmem>>, vector<1x16x16x128xbf16>
    %94 = vector.shape_cast %93 : vector<1x16x16x128xbf16> to vector<16x16x128xbf16>
    %c2_117 = arith.constant 2 : index
    %c2_118 = arith.constant 2 : index
    %c0_119 = arith.constant 0 : index
    %c0_120 = arith.constant 0 : index
    %95 = vector.load %arg4[%c2_117, %c2_118, %c0_119, %c0_120] : memref<3x3x128x128xbf16, #tpu.memory_space<vmem>>, vector<1x1x128x128xbf16>
    %96 = vector.shape_cast %95 : vector<1x1x128x128xbf16> to vector<128x128xbf16>
    %97 = vector.shape_cast %94 : vector<16x16x128xbf16> to vector<256x128xbf16>
    %cst_121 = arith.constant dense<0.000000e+00> : vector<256x128xf32>
    %98 = tpu.matmul %97, %96, %cst_121 {dimension_numbers = #tpu.dot_dimension_numbers<[1], [0], [0], [1], [0, 0, 1, 1], [], []>} : vector<256x128xbf16>, vector<128x128xbf16>, vector<256x128xf32> -> vector<256x128xf32>
    %c0_122 = arith.constant 0 : index
    %c0_123 = arith.constant 0 : index
    %c0_124 = arith.constant 0 : index
    %99 = vector.load %arg7[%c0_122, %c0_123, %c0_124] : memref<1x256x128xf32, #tpu.memory_space<vmem>>, vector<1x256x128xf32>
    %100 = vector.shape_cast %99 : vector<1x256x128xf32> to vector<256x128xf32>
    %101 = arith.addf %100, %98 : vector<256x128xf32>
    %c0_125 = arith.constant 0 : index
    %c0_126 = arith.constant 0 : index
    %c0_127 = arith.constant 0 : index
    %102 = vector.load %arg7[%c0_125, %c0_126, %c0_127] : memref<1x256x128xf32, #tpu.memory_space<vmem>>, vector<1x256x128xf32>
    %103 = vector.shape_cast %102 : vector<1x256x128xf32> to vector<256x128xf32>
    %104 = vector.shape_cast %101 : vector<256x128xf32> to vector<1x256x128xf32>
    tpu.vector_store %arg7[%c0_125, %c0_126, %c0_127], %104 {strides = array<i32>} : memref<1x256x128xf32, #tpu.memory_space<vmem>>, vector<1x256x128xf32>,
    %c0_128 = arith.constant 0 : index
    %c0_129 = arith.constant 0 : index
    %c0_130 = arith.constant 0 : index
    %105 = vector.load %arg7[%c0_128, %c0_129, %c0_130] : memref<1x256x128xf32, #tpu.memory_space<vmem>>, vector<1x256x128xf32>
    %106 = vector.shape_cast %105 : vector<1x256x128xf32> to vector<256x128xf32>
    %c0_131 = arith.constant 0 : index
    %c0_132 = arith.constant 0 : index
    %107 = vector.load %arg5[%c0_131, %c0_132] : memref<1x128xf32, #tpu.memory_space<vmem>>, vector<1x128xf32>
    %108 = vector.broadcast %107 : vector<1x128xf32> to vector<256x128xf32>
    %109 = arith.mulf %106, %108 : vector<256x128xf32>
    %c0_133 = arith.constant 0 : index
    %c0_134 = arith.constant 0 : index
    %110 = vector.load %arg6[%c0_133, %c0_134] : memref<1x128xf32, #tpu.memory_space<vmem>>, vector<1x128xf32>
    %111 = vector.broadcast %110 : vector<1x128xf32> to vector<256x128xf32>
    %112 = arith.addf %109, %111 : vector<256x128xf32>
    %cst_135 = arith.constant 0.000000e+00 : f32
    %113 = vector.broadcast %cst_135 : f32 to vector<256x128xf32>
    %114 = arith.maximumf %112, %113 : vector<256x128xf32>
    %c0_136 = arith.constant 0 : index
    %c0_137 = arith.constant 0 : index
    %c0_138 = arith.constant 0 : index
    %115 = vector.load %arg7[%c0_136, %c0_137, %c0_138] : memref<1x256x128xf32, #tpu.memory_space<vmem>>, vector<1x256x128xf32>
    %116 = vector.shape_cast %115 : vector<1x256x128xf32> to vector<256x128xf32>
    %117 = vector.shape_cast %114 : vector<256x128xf32> to vector<1x256x128xf32>
    tpu.vector_store %arg7[%c0_136, %c0_137, %c0_138], %117 {strides = array<i32>} : memref<1x256x128xf32, #tpu.memory_space<vmem>>, vector<1x256x128xf32>,
    return
  }
  func.func @transform_0(%arg0: i32, %arg1: i32, %arg2: i32) -> (i32, i32, i32, i32) {
    %c0_i32 = arith.constant 0 : i32
    %c0_i32_0 = arith.constant 0 : i32
    %c0_i32_1 = arith.constant 0 : i32
    %c0_i32_2 = arith.constant 0 : i32
    return %arg0, %c0_i32, %c0_i32_0, %c0_i32_1 : i32, i32, i32, i32
  }
  func.func @transform_1(%arg0: i32, %arg1: i32, %arg2: i32) -> (i32, i32, i32, i32) {
    %c0_i32 = arith.constant 0 : i32
    %c0_i32_0 = arith.constant 0 : i32
    %c0_i32_1 = arith.constant 0 : i32
    %c0_i32_2 = arith.constant 0 : i32
    return %c0_i32, %c0_i32_0, %c0_i32_1, %arg1 : i32, i32, i32, i32
  }
  func.func @transform_2(%arg0: i32, %arg1: i32, %arg2: i32) -> (i32, i32) {
    %c0_i32 = arith.constant 0 : i32
    %c0_i32_0 = arith.constant 0 : i32
    return %c0_i32, %arg1 : i32, i32
  }
  func.func @transform_3(%arg0: i32, %arg1: i32, %arg2: i32) -> (i32, i32) {
    %c0_i32 = arith.constant 0 : i32
    %c0_i32_0 = arith.constant 0 : i32
    return %c0_i32, %arg1 : i32, i32
  }
  func.func @transform_4(%arg0: i32, %arg1: i32, %arg2: i32) -> (i32, i32, i32) {
    %c0_i32 = arith.constant 0 : i32
    return %arg0, %arg2, %arg1 : i32, i32, i32
  }
}

</mosaic_0001>

<llo_original>
// kernel: tpu_custom_call.1
$region0: #{tpu_custom_call.1}
  #allocation0 [shape = 'u32[]', space=smem, size = 0x4, offset = 0x4, fixed_abs, tag = 'smem constant byte address 0x4 - core index']
  #allocation1 [shape = 'u32[144,128]{1,0:T(1,128)}', space=vmem, size = 0x12000, scoped, tag = 'internal scratch']
  %s0 = inlined_call_operand.vmem [shape: bf16[2,18,18,128], index: 0, kind: input, shape index: {}]
  %s1 = inlined_call_operand.vmem [shape: bf16[3,3,128,128], index: 1, kind: input, shape index: {}]
  %s2 = inlined_call_operand.vmem [shape: f32[1,128], index: 2, kind: input, shape index: {}]
  %s3 = inlined_call_operand.vmem [shape: f32[1,128], index: 3, kind: input, shape index: {}]
  %s4 = inlined_call_operand.hbm [shape: f32[2,256,128], index: 4, kind: output, shape index: {}]
  %s5 = sld [smem:[#allocation0]]
  $region49: #{tpu_custom_call.1} parent=0
    _
  %s7 = ssub.s32 1, %s5
  %s8 = scalar_select 0, %s7, %s5
  $region1: #{tpu_custom_call.1} parent=0
    #allocation2 [shape = 'u8[262144]{0}', space=vmem, size = 0x40000, scoped, tag = 'output window, operand 0']
    #allocation3 [shape = 's32[2]{0}', space=sflag, size = 0x8, scoped, tag = 'scoped memory for tpu_custom_call.1']
    %9 = vsyncpa [#allocation3], 0
    %s10 = scalar_lea.sflag [#allocation3], 1
    %11 = vsyncpa %s10, 0
    loop: start=0, step=1, limit=4
    $region2: #{tpu_custom_call.1} parent=1 // loop_pre_header
      _
    $region3: #{tpu_custom_call.1} parent=1 // loop_header
      %s13 = sphi 0, %s17
      %p14 = scmp.ge.s32.totalorder %s13, 4
      %s20 = sphi 0, %s39
      %s21 = sphi 0, %s35
      %s22 = sphi 0, %s31
      %s23 = sphi 0, %s20
      %s24 = sphi 0, %s21
      %s25 = sphi 0, %s22
      %s26 = sphi 0, %s23
      %s27 = sphi 0, %s24
      %s28 = sphi 0, %s25
      %s42 = sphi 0, %s44
      %s45 = sphi 0, %s42
      %s46 = sphi 0, %s45
      %s62 = sphi 0, %s46
      %s68 = sphi 0, %s70
      %s71 = sphi 0, %s68
      %s72 = sphi 0, %s71
      %s88 = sphi 0, %s72
      %s94 = sphi 0, %s96
      %s97 = sphi 0, %s94
      %s98 = sphi 0, %s97
      %s114 = sphi 0, %s98
      %s120 = sphi 0, %s122
      %s123 = sphi 0, %s120
      %s124 = sphi 0, %s123
      %s140 = sphi 0, %s124
      %s150 = sphi 0, %s152
      %s153 = sphi 0, %s150
      %s154 = sphi 0, %s153
      %s170 = sphi 0, %s154
    $region4: #{tpu_custom_call.1} parent=1 // loop_header_branch
      %16 = sbr.rel (%p14) target = $region8
    $region5: #{tpu_custom_call.1} parent=1 // loop_body
      %s18 = ssub.s32 %s13, 1
      %s19 = ssub.s32 %s13, 2
      %s29 = sadd.s32 1, %s22
      %p30 = scmp.ge.s32.totalorder %s29, 1
      %s31 = scalar_select %p30, 0, %s29
      %s32 = sadd.s32 1, %s21
      %s33 = scalar_select %p30, %s32, %s21
      %p34 = scmp.ge.s32.totalorder %s33, 1
      %s35 = scalar_select %p34, 0, %s33
      %s36 = sadd.s32 1, %s20
      %s37 = scalar_select %p34, %s36, %s20
      %p38 = scmp.ge.s32.totalorder %s37, 2
      %s39 = scalar_select %p38, 0, %s37
      %s40 = ssub.s32 %s20, %s39
      %p41 = scmp.eq.s32.totalorder %s40, 0
      %s43 = sadd.s32 %s42, 1
      %s44 = scalar_select %p41, %s42, %s43
      %p47 = pneg %p41
      %p48 = scmp.eq.s32.totalorder %s13, 1
      %p49 = por %p47, %p48
      %p50 = scmp.ne.s32.totalorder %s42, %s45
      %p51 = scmp.eq.s32.totalorder %s13, 0
      %p52 = por %p50, %p51
      %p53 = scmp.ne.s32.totalorder %s42, %s45
      %p54 = scmp.eq.s32.totalorder %s18, 1
      %p55 = por %p53, %p54
      %p56 = scmp.ne.s32.totalorder %s45, %s46
      %p57 = scmp.eq.s32.totalorder %s18, 0
      %p58 = por %p56, %p57
      %p59 = scmp.ne.s32.totalorder %s45, %s46
      %p60 = scmp.eq.s32.totalorder %s19, 1
      %p61 = por %p59, %p60
      %p63 = scmp.ne.s32.totalorder %s46, %s62
      %p64 = scmp.eq.s32.totalorder %s19, 0
      %p65 = por %p63, %p64
      %s66 = ssub.s32 %s21, %s35
      %p67 = scmp.eq.s32.totalorder %s66, 0
      %s69 = sadd.s32 %s68, 1
      %s70 = scalar_select %p67, %s68, %s69
      %p73 = pneg %p67
      %p74 = scmp.eq.s32.totalorder %s13, 1
      %p75 = por %p73, %p74
      %p76 = scmp.ne.s32.totalorder %s68, %s71
      %p77 = scmp.eq.s32.totalorder %s13, 0
      %p78 = por %p76, %p77
      %p79 = scmp.ne.s32.totalorder %s68, %s71
      %p80 = scmp.eq.s32.totalorder %s18, 1
      %p81 = por %p79, %p80
      %p82 = scmp.ne.s32.totalorder %s71, %s72
      %p83 = scmp.eq.s32.totalorder %s18, 0
      %p84 = por %p82, %p83
      %p85 = scmp.ne.s32.totalorder %s71, %s72
      %p86 = scmp.eq.s32.totalorder %s19, 1
      %p87 = por %p85, %p86
      %p89 = scmp.ne.s32.totalorder %s72, %s88
      %p90 = scmp.eq.s32.totalorder %s19, 0
      %p91 = por %p89, %p90
      %s92 = ssub.s32 %s21, %s35
      %p93 = scmp.eq.s32.totalorder %s92, 0
      %s95 = sadd.s32 %s94, 1
      %s96 = scalar_select %p93, %s94, %s95
      %p99 = pneg %p93
      %p100 = scmp.eq.s32.totalorder %s13, 1
      %p101 = por %p99, %p100
      %p102 = scmp.ne.s32.totalorder %s94, %s97
      %p103 = scmp.eq.s32.totalorder %s13, 0
      %p104 = por %p102, %p103
      %p105 = scmp.ne.s32.totalorder %s94, %s97
      %p106 = scmp.eq.s32.totalorder %s18, 1
      %p107 = por %p105, %p106
      %p108 = scmp.ne.s32.totalorder %s97, %s98
      %p109 = scmp.eq.s32.totalorder %s18, 0
      %p110 = por %p108, %p109
      %p111 = scmp.ne.s32.totalorder %s97, %s98
      %p112 = scmp.eq.s32.totalorder %s19, 1
      %p113 = por %p111, %p112
      %p115 = scmp.ne.s32.totalorder %s98, %s114
      %p116 = scmp.eq.s32.totalorder %s19, 0
      %p117 = por %p115, %p116
      %s118 = ssub.s32 %s21, %s35
      %p119 = scmp.eq.s32.totalorder %s118, 0
      %s121 = sadd.s32 %s120, 1
      %s122 = scalar_select %p119, %s120, %s121
      %p125 = pneg %p119
      %p126 = scmp.eq.s32.totalorder %s13, 1
      %p127 = por %p125, %p126
      %p128 = scmp.ne.s32.totalorder %s120, %s123
      %p129 = scmp.eq.s32.totalorder %s13, 0
      %p130 = por %p128, %p129
      %p131 = scmp.ne.s32.totalorder %s120, %s123
      %p132 = scmp.eq.s32.totalorder %s18, 1
      %p133 = por %p131, %p132
      %p134 = scmp.ne.s32.totalorder %s123, %s124
      %p135 = scmp.eq.s32.totalorder %s18, 0
      %p136 = por %p134, %p135
      %p137 = scmp.ne.s32.totalorder %s123, %s124
      %p138 = scmp.eq.s32.totalorder %s19, 1
      %p139 = por %p137, %p138
      %p141 = scmp.ne.s32.totalorder %s124, %s140
      %p142 = scmp.eq.s32.totalorder %s19, 0
      %p143 = por %p141, %p142
      %s144 = ssub.s32 %s20, %s39
      %s145 = ssub.s32 %s22, %s31
      %s146 = sor.u32 %s144, %s145
      %s147 = ssub.s32 %s21, %s35
      %s148 = sor.u32 %s146, %s147
      %p149 = scmp.eq.s32.totalorder %s148, 0
      %s151 = sadd.s32 %s150, 1
      %s152 = scalar_select %p149, %s150, %s151
      %p155 = pneg %p149
      %p156 = scmp.eq.s32.totalorder %s13, 1
      %p157 = por %p155, %p156
      %p158 = scmp.ne.s32.totalorder %s150, %s153
      %p159 = scmp.eq.s32.totalorder %s13, 0
      %p160 = por %p158, %p159
      %p161 = scmp.ne.s32.totalorder %s150, %s153
      %p162 = scmp.eq.s32.totalorder %s18, 1
      %p163 = por %p161, %p162
      %p164 = scmp.ne.s32.totalorder %s153, %s154
      %p165 = scmp.eq.s32.totalorder %s18, 0
      %p166 = por %p164, %p165
      %p167 = scmp.ne.s32.totalorder %s153, %s154
      %p168 = scmp.eq.s32.totalorder %s19, 1
      %p169 = por %p167, %p168
      %p171 = scmp.ne.s32.totalorder %s154, %s170
      %p172 = scmp.eq.s32.totalorder %s19, 0
      %p173 = por %p171, %p172
      %p174 = scmp.le.s32.totalorder 1, %s13
      %p175 = scmp.lt.s32.totalorder %s13, 3
      %p176 = pnand %p174, %p175
      %p177 = pneg %p176
      // Predicated region
      $region9: #{tpu_custom_call.1} parent=5 // pred_check
        _
      $region10: #{tpu_custom_call.1} parent=5 // pred_check_branch
        %179 = sbr.rel (%p176) target = $region12
      $region11: #{tpu_custom_call.1} parent=5 // pred_region
        %s180 = ssub.s32 %s13, 1
        // Predicated region
        $region13: #{tpu_custom_call.1} parent=11 // pred_check
          %p181 = pneg %p84
        $region14: #{tpu_custom_call.1} parent=11 // pred_check_branch
          %183 = sbr.rel (%p181) target = $region16
        $region15: #{tpu_custom_call.1} parent=11 // pred_region
          %p184 = scmp.lt.s32.totalorder %s24, 0
          %s185 = scalar_select %p184, %s24, 0
          %s186 = smul.addr %s185, 4
          %s187 = scalar_lea.vmem %s1, %s186
        $region16: #{tpu_custom_call.1} parent=11 // pred_fallthru
          _
        // Predicated region
        $region17: #{tpu_custom_call.1} parent=11 // pred_check
          %p188 = pneg %p110
        $region18: #{tpu_custom_call.1} parent=11 // pred_check_branch
          %190 = sbr.rel (%p188) target = $region20
        $region19: #{tpu_custom_call.1} parent=11 // pred_region
          %p191 = scmp.lt.s32.totalorder %s24, 0
          %s192 = scalar_select %p191, %s24, 0
          %s193 = scalar_lea.vmem %s2, %s192
        $region20: #{tpu_custom_call.1} parent=11 // pred_fallthru
          _
        // Predicated region
        $region21: #{tpu_custom_call.1} parent=11 // pred_check
          %p194 = pneg %p136
        $region22: #{tpu_custom_call.1} parent=11 // pred_check_branch
          %196 = sbr.rel (%p194) target = $region24
        $region23: #{tpu_custom_call.1} parent=11 // pred_region
          %p197 = scmp.lt.s32.totalorder %s24, 0
          %s198 = scalar_select %p197, %s24, 0
          %s199 = scalar_lea.vmem %s3, %s198
        $region24: #{tpu_custom_call.1} parent=11 // pred_fallthru
          _
      $region12: #{tpu_custom_call.1} parent=5 // pred_fallthru
        _
      %p200 = scmp.lt.s32.totalorder %s13, 2
      // Predicated region
      $region25: #{tpu_custom_call.1} parent=5 // pred_check
        %p201 = pneg %p200
      $region26: #{tpu_custom_call.1} parent=5 // pred_check_branch
        %203 = sbr.rel (%p201) target = $region28
      $region27: #{tpu_custom_call.1} parent=5 // pred_region
        // Predicated region
        $region29: #{tpu_custom_call.1} parent=27 // pred_check
          %p204 = pneg %p52
        $region30: #{tpu_custom_call.1} parent=27 // pred_check_branch
          %206 = sbr.rel (%p204) target = $region32
        $region31: #{tpu_custom_call.1} parent=27 // pred_region
          %p207 = scmp.lt.s32.totalorder %s20, 1
          %s208 = scalar_select %p207, %s20, 1
          %s209 = smul.addr %s208, 54
          %s210 = smul.addr %s209, 4
          %s211 = scalar_lea.vmem %s0, %s210
        $region32: #{tpu_custom_call.1} parent=27 // pred_fallthru
          _
      $region28: #{tpu_custom_call.1} parent=5 // pred_fallthru
        _
      %p212 = scmp.le.s32.totalorder 1, %s13
      %p213 = scmp.lt.s32.totalorder %s13, 3
      %p214 = pnand %p212, %p213
      %p215 = pneg %p214
      // Predicated region
      $region33: #{tpu_custom_call.1} parent=5 // pred_check
        _
      $region34: #{tpu_custom_call.1} parent=5 // pred_check_branch
        %217 = sbr.rel (%p214) target = $region36
      $region35: #{tpu_custom_call.1} parent=5 // pred_region
        %s218 = ssub.s32 %s13, 1
        %p219 = scmp.lt.s32.totalorder %s23, 1
        %s220 = scalar_select %p219, %s23, 1
        %s221 = smul.addr %s220, 54
        %s222 = smul.addr %s221, 4
        %s223 = scalar_lea.vmem %s0, %s222
        %p224 = pneg %p58
        %p225 = pneg %p55
        %p226 = scmp.lt.s32.totalorder %s24, 0
        %s227 = scalar_select %p226, %s24, 0
        %s228 = smul.addr %s227, 4
        %s229 = scalar_lea.vmem %s1, %s228
        %p230 = pneg %p84
        %p231 = pneg %p81
        %p232 = scmp.lt.s32.totalorder %s24, 0
        %s233 = scalar_select %p232, %s24, 0
        %s234 = scalar_lea.vmem %s2, %s233
        %p235 = pneg %p110
        %p236 = pneg %p107
        %p237 = scmp.lt.s32.totalorder %s24, 0
        %s238 = scalar_select %p237, %s24, 0
        %s239 = scalar_lea.vmem %s3, %s238
        %p240 = pneg %p136
        %p241 = pneg %p133
        %p242 = pneg %p166
        %p243 = pneg %p163
        %s244 = sand.u32 %s153, 1
        %s245 = scalar_lea.sflag [#allocation3], %s244
        %s246 = sand.u32 %s153, 1
        %s247 = smul.addr %s246, 256
        %s248 = scalar_lea.vmem [#allocation2], %s247
        %p249 = scmp.lt.s32.totalorder %s23, 1
        %s250 = scalar_select %p249, %s23, 1
        %s251 = smul.addr %s250, 54
        %s252 = smul.addr %s251, 4
        %s253 = scalar_lea.vmem %s0, %s252
        %p254 = scmp.lt.s32.totalorder %s24, 0
        %s255 = scalar_select %p254, %s24, 0
        %s256 = smul.addr %s255, 4
        %s257 = scalar_lea.vmem %s1, %s256
        %p258 = scmp.lt.s32.totalorder %s24, 0
        %s259 = scalar_select %p258, %s24, 0
        %s260 = scalar_lea.vmem %s2, %s259
        %p261 = scmp.lt.s32.totalorder %s24, 0
        %s262 = scalar_select %p261, %s24, 0
        %s263 = scalar_lea.vmem %s3, %s262
        %s264 = smul.u32 32, %s25
        %v266 = vld [vmem:[%s253] sm:$0xf]
        %v267 = vld [vmem:[%s253 + $0x4] sm:$0xf]
        %v268 = vld [vmem:[%s253 + $0xc] sm:$0xf]
        %v269 = vld [vmem:[%s253 + $0x10] sm:$0xf]
        %v270 = vld [vmem:[%s253 + $0x18] sm:$0xf]
        %v271 = vld [vmem:[%s253 + $0x1c] sm:$0xf]
        %v272 = vld [vmem:[%s253 + $0x24] sm:$0xf]
        %v273 = vld [vmem:[%s253 + $0x28] sm:$0xf]
        %v274 = vld [vmem:[%s253 + $0x30] sm:$0xf]
        %v275 = vld [vmem:[%s253 + $0x34] sm:$0xf]
        %v276 = vld [vmem:[%s253 + $0x3c] sm:$0xf]
        %v277 = vld [vmem:[%s253 + $0x40] sm:$0xf]
        %v278 = vld [vmem:[%s253 + $0x48] sm:$0xf]
        %v279 = vld [vmem:[%s253 + $0x4c] sm:$0xf]
        %v280 = vld [vmem:[%s253 + $0x54] sm:$0xf]
        %v281 = vld [vmem:[%s253 + $0x58] sm:$0xf]
        %v282 = vld [vmem:[%s253 + $0x60] sm:$0xf]
        %v283 = vld [vmem:[%s253 + $0x64] sm:$0xf]
        %v284 = vld [vmem:[%s253 + $0x6c] sm:$0xf]
        %v285 = vld [vmem:[%s253 + $0x70] sm:$0xf]
        %v286 = vld [vmem:[%s253 + $0x78] sm:$0xf]
        %v287 = vld [vmem:[%s253 + $0x7c] sm:$0xf]
        %v288 = vld [vmem:[%s253 + $0x84] sm:$0xf]
        %v289 = vld [vmem:[%s253 + $0x88] sm:$0xf]
        %v290 = vld [vmem:[%s253 + $0x90] sm:$0xf]
        %v291 = vld [vmem:[%s253 + $0x94] sm:$0xf]
        %v292 = vld [vmem:[%s253 + $0x9c] sm:$0xf]
        %v293 = vld [vmem:[%s253 + $0xa0] sm:$0xf]
        %v294 = vld [vmem:[%s253 + $0xa8] sm:$0xf]
        %v295 = vld [vmem:[%s253 + $0xac] sm:$0xf]
        %v296 = vld [vmem:[%s253 + $0xb4] sm:$0xf]
        %v297 = vld [vmem:[%s253 + $0xb8] sm:$0xf]
        %v298 = vld [vmem:[%s257] sm:$0xf]
        %v299 = vld [vmem:[%s257 + $0x4] sm:$0xf]
        %v300 = vld [vmem:[%s257 + $0x8] sm:$0xf]
        %v301 = vld [vmem:[%s257 + $0xc] sm:$0xf]
        %v302 = vld [vmem:[%s257 + $0x10] sm:$0xf]
        %v303 = vld [vmem:[%s257 + $0x14] sm:$0xf]
        %v304 = vld [vmem:[%s257 + $0x18] sm:$0xf]
        %v305 = vld [vmem:[%s257 + $0x1c] sm:$0xf]
        %v306 = vld [vmem:[%s257 + $0x20] sm:$0xf]
        %v307 = vld [vmem:[%s257 + $0x24] sm:$0xf]
        %v308 = vld [vmem:[%s257 + $0x28] sm:$0xf]
        %v309 = vld [vmem:[%s257 + $0x2c] sm:$0xf]
        %v310 = vld [vmem:[%s257 + $0x30] sm:$0xf]
        %v311 = vld [vmem:[%s257 + $0x34] sm:$0xf]
        %v312 = vld [vmem:[%s257 + $0x38] sm:$0xf]
        %v313 = vld [vmem:[%s257 + $0x3c] sm:$0xf]
        %v346 = vunpack.c.l.b16 %v266
        %v347 = vunpack.c.l.b16 %v267
        %v348 = vunpack.c.l.b16 %v268
        %v349 = vunpack.c.l.b16 %v269
        %v350 = vunpack.c.l.b16 %v270
        %v351 = vunpack.c.l.b16 %v271
        %v352 = vunpack.c.l.b16 %v272
        %v353 = vunpack.c.l.b16 %v273
        %v354 = vunpack.c.l.b16 %v274
        %v355 = vunpack.c.l.b16 %v275
        %v356 = vunpack.c.l.b16 %v276
        %v357 = vunpack.c.l.b16 %v277
        %v358 = vunpack.c.l.b16 %v278
        %v359 = vunpack.c.l.b16 %v279
        %v360 = vunpack.c.l.b16 %v280
        %v361 = vunpack.c.l.b16 %v281
        %v362 = vunpack.c.l.b16 %v282
        %v363 = vunpack.c.l.b16 %v283
        %v364 = vunpack.c.l.b16 %v284
        %v365 = vunpack.c.l.b16 %v285
        %v366 = vunpack.c.l.b16 %v286
        %v367 = vunpack.c.l.b16 %v287
        %v368 = vunpack.c.l.b16 %v288
        %v369 = vunpack.c.l.b16 %v289
        %v370 = vunpack.c.l.b16 %v290
        %v371 = vunpack.c.l.b16 %v291
        %v372 = vunpack.c.l.b16 %v292
        %v373 = vunpack.c.l.b16 %v293
        %v374 = vunpack.c.l.b16 %v294
        %v375 = vunpack.c.l.b16 %v295
        %v376 = vunpack.c.l.b16 %v296
        %v377 = vunpack.c.l.b16 %v297
        %v378 = vpack.c.b16 %v347, %v346
        %v379 = vpack.c.b16 %v349, %v348
        %v380 = vpack.c.b16 %v351, %v350
        %v381 = vpack.c.b16 %v353, %v352
        %v382 = vpack.c.b16 %v355, %v354
        %v383 = vpack.c.b16 %v357, %v356
        %v384 = vpack.c.b16 %v359, %v358
        %v385 = vpack.c.b16 %v361, %v360
        %v386 = vpack.c.b16 %v363, %v362
        %v387 = vpack.c.b16 %v365, %v364
        %v388 = vpack.c.b16 %v367, %v366
        %v389 = vpack.c.b16 %v369, %v368
        %v390 = vpack.c.b16 %v371, %v370
        %v391 = vpack.c.b16 %v373, %v372
        %v392 = vpack.c.b16 %v375, %v374
        %v393 = vpack.c.b16 %v377, %v376
        %v426 = vunpack.c.l.b16 %v298
        %v427 = vunpack.c.l.b16 %v299
        %v428 = vunpack.c.l.b16 %v300
        %v429 = vunpack.c.l.b16 %v301
        %v430 = vunpack.c.l.b16 %v302
        %v431 = vunpack.c.l.b16 %v303
        %v432 = vunpack.c.l.b16 %v304
        %v433 = vunpack.c.l.b16 %v305
        %v434 = vunpack.c.l.b16 %v306
        %v435 = vunpack.c.l.b16 %v307
        %v436 = vunpack.c.l.b16 %v308
        %v437 = vunpack.c.l.b16 %v309
        %v438 = vunpack.c.l.b16 %v310
        %v439 = vunpack.c.l.b16 %v311
        %v440 = vunpack.c.l.b16 %v312
        %v441 = vunpack.c.l.b16 %v313
        %v442 = vpack.c.b16 %v427, %v426
        %v443 = vpack.c.b16 %v429, %v428
        %v444 = vpack.c.b16 %v431, %v430
        %v445 = vpack.c.b16 %v433, %v432
        %v446 = vpack.c.b16 %v435, %v434
        %v447 = vpack.c.b16 %v437, %v436
        %v448 = vpack.c.b16 %v439, %v438
        %v449 = vpack.c.b16 %v441, %v440
        %458 = vmatprep.subr.bf16.mxu0 0
        %459 = vmatpush1.bf16.msra.mxu0 %v449
        %460 = vmatprep.subr.bf16.mxu0 0
        %461 = vmatpush1.bf16.msra.mxu0 %v448
        %462 = vmatprep.subr.bf16.mxu0 0
        %463 = vmatpush1.bf16.msra.mxu0 %v447
        %464 = vmatprep.subr.bf16.mxu0 0
        %465 = vmatpush1.bf16.msra.mxu0 %v446
        %466 = vmatprep.subr.bf16.mxu0 0
        %467 = vmatpush1.bf16.msra.mxu0 %v445
        %468 = vmatprep.subr.bf16.mxu0 0
        %469 = vmatpush1.bf16.msra.mxu0 %v444
        %470 = vmatprep.subr.bf16.mxu0 0
        %471 = vmatpush1.bf16.msra.mxu0 %v443
        %472 = vmatprep.subr.bf16.mxu0 0
        %473 = vmatpush1.bf16.msra.mxu0 %v442
        %474 = vmatprep.subr.bf16.mxu0 0
        %475 = vmatpush2.bf16.msra.mxu0 0
        %476 = vmatprep.subr.bf16.mxu0 0
        %477 = vmatpush2.bf16.msra.mxu0 0
        %478 = vmatprep.subr.bf16.mxu0 0
        %479 = vmatpush2.bf16.msra.mxu0 0
        %480 = vmatprep.subr.bf16.mxu0 0
        %481 = vmatpush2.bf16.msra.mxu0 0
        %482 = vmatprep.subr.bf16.mxu0 0
        %483 = vmatpush2.bf16.msra.mxu0 0
        %484 = vmatprep.subr.bf16.mxu0 0
        %485 = vmatpush2.bf16.msra.mxu0 0
        %486 = vmatprep.subr.bf16.mxu0 0
        %487 = vmatpush2.bf16.msra.mxu0 0
        %488 = vmatprep.subr.bf16.mxu0 0
        %489 = vmatpush2.bf16.msra.mxu0 0
        %490 = vmatprep.mubr.bf16.mxu0 0
        %491 = vmatmul.mubr.bf16.gmra.mxu0 %v378
        %v492 = vpop.f32.mrf.mxu0
        %v493 = vadd.f32 0.0, %v492
        %v494 = vpop.f32.mrf.mxu0
        %v495 = vpop.f32.mrf.mxu0
        %v496 = vadd.f32 0.0, %v495
        %v497 = vpop.f32.mrf.mxu0
        %498 = vmatprep.mubr.bf16.mxu0 0
        %499 = vmatmul.mubr.bf16.gmra.mxu0 %v379
        %v500 = vpop.f32.mrf.mxu0
        %v501 = vadd.f32 0.0, %v500
        %v502 = vpop.f32.mrf.mxu0
        %v503 = vpop.f32.mrf.mxu0
        %v504 = vadd.f32 0.0, %v503
        %v505 = vpop.f32.mrf.mxu0
        %506 = vmatprep.mubr.bf16.mxu0 0
        %507 = vmatmul.mubr.bf16.gmra.mxu0 %v380
        %v508 = vpop.f32.mrf.mxu0
        %v509 = vadd.f32 0.0, %v508
        %v510 = vpop.f32.mrf.mxu0
        %v511 = vpop.f32.mrf.mxu0
        %v512 = vadd.f32 0.0, %v511
        %v513 = vpop.f32.mrf.mxu0
        %514 = vmatprep.mubr.bf16.mxu0 0
        %515 = vmatmul.mubr.bf16.gmra.mxu0 %v381
        %v516 = vpop.f32.mrf.mxu0
        %v517 = vadd.f32 0.0, %v516
        %v518 = vpop.f32.mrf.mxu0
        %v519 = vpop.f32.mrf.mxu0
        %v520 = vadd.f32 0.0, %v519
        %v521 = vpop.f32.mrf.mxu0
        %522 = vmatprep.mubr.bf16.mxu0 0
        %523 = vmatmul.mubr.bf16.gmra.mxu0 %v382
        %v524 = vpop.f32.mrf.mxu0
        %v525 = vadd.f32 0.0, %v524
        %v526 = vpop.f32.mrf.mxu0
        %v527 = vpop.f32.mrf.mxu0
        %v528 = vadd.f32 0.0, %v527
        %v529 = vpop.f32.mrf.mxu0
        %530 = vmatprep.mubr.bf16.mxu0 0
        %531 = vmatmul.mubr.bf16.gmra.mxu0 %v383
        %v532 = vpop.f32.mrf.mxu0
        %v533 = vadd.f32 0.0, %v532
        %v534 = vpop.f32.mrf.mxu0
        %v535 = vpop.f32.mrf.mxu0
        %v536 = vadd.f32 0.0, %v535
        %v537 = vpop.f32.mrf.mxu0
        %538 = vmatprep.mubr.bf16.mxu0 0
        %539 = vmatmul.mubr.bf16.gmra.mxu0 %v384
        %v540 = vpop.f32.mrf.mxu0
        %v541 = vadd.f32 0.0, %v540
        %v542 = vpop.f32.mrf.mxu0
        %v543 = vpop.f32.mrf.mxu0
        %v544 = vadd.f32 0.0, %v543
        %v545 = vpop.f32.mrf.mxu0
        %546 = vmatprep.mubr.bf16.mxu0 0
        %547 = vmatmul.mubr.bf16.gmra.mxu0 %v385
        %v548 = vpop.f32.mrf.mxu0
        %v549 = vadd.f32 0.0, %v548
        %v550 = vpop.f32.mrf.mxu0
        %v551 = vpop.f32.mrf.mxu0
        %v552 = vadd.f32 0.0, %v551
        %v553 = vpop.f32.mrf.mxu0
        %554 = vmatprep.mubr.bf16.mxu0 0
        %555 = vmatmul.mubr.bf16.gmra.mxu0 %v386
        %v556 = vpop.f32.mrf.mxu0
        %v557 = vadd.f32 0.0, %v556
        %v558 = vpop.f32.mrf.mxu0
        %v559 = vpop.f32.mrf.mxu0
        %v560 = vadd.f32 0.0, %v559
        %v561 = vpop.f32.mrf.mxu0
        %562 = vmatprep.mubr.bf16.mxu0 0
        %563 = vmatmul.mubr.bf16.gmra.mxu0 %v387
        %v564 = vpop.f32.mrf.mxu0
        %v565 = vadd.f32 0.0, %v564
        %v566 = vpop.f32.mrf.mxu0
        %v567 = vpop.f32.mrf.mxu0
        %v568 = vadd.f32 0.0, %v567
        %v569 = vpop.f32.mrf.mxu0
        %570 = vmatprep.mubr.bf16.mxu0 0
        %571 = vmatmul.mubr.bf16.gmra.mxu0 %v388
        %v572 = vpop.f32.mrf.mxu0
        %v573 = vadd.f32 0.0, %v572
        %v574 = vpop.f32.mrf.mxu0
        %v575 = vpop.f32.mrf.mxu0
        %v576 = vadd.f32 0.0, %v575
        %v577 = vpop.f32.mrf.mxu0
        %578 = vmatprep.mubr.bf16.mxu0 0
        %579 = vmatmul.mubr.bf16.gmra.mxu0 %v389
        %v580 = vpop.f32.mrf.mxu0
        %v581 = vadd.f32 0.0, %v580
        %v582 = vpop.f32.mrf.mxu0
        %v583 = vpop.f32.mrf.mxu0
        %v584 = vadd.f32 0.0, %v583
        %v585 = vpop.f32.mrf.mxu0
        %586 = vmatprep.mubr.bf16.mxu0 0
        %587 = vmatmul.mubr.bf16.gmra.mxu0 %v390
        %v588 = vpop.f32.mrf.mxu0
        %v589 = vadd.f32 0.0, %v588
        %v590 = vpop.f32.mrf.mxu0
        %v591 = vpop.f32.mrf.mxu0
        %v592 = vadd.f32 0.0, %v591
        %v593 = vpop.f32.mrf.mxu0
        %594 = vmatprep.mubr.bf16.mxu0 0
        %595 = vmatmul.mubr.bf16.gmra.mxu0 %v391
        %v596 = vpop.f32.mrf.mxu0
        %v597 = vadd.f32 0.0, %v596
        %v598 = vpop.f32.mrf.mxu0
        %v599 = vpop.f32.mrf.mxu0
        %v600 = vadd.f32 0.0, %v599
        %v601 = vpop.f32.mrf.mxu0
        %602 = vmatprep.mubr.bf16.mxu0 0
        %603 = vmatmul.mubr.bf16.gmra.mxu0 %v392
        %v604 = vpop.f32.mrf.mxu0
        %v605 = vadd.f32 0.0, %v604
        %v606 = vpop.f32.mrf.mxu0
        %v607 = vpop.f32.mrf.mxu0
        %v608 = vadd.f32 0.0, %v607
        %v609 = vpop.f32.mrf.mxu0
        %610 = vmatprep.mubr.bf16.mxu0 0
        %611 = vmatmul.mubr.bf16.gmra.mxu0 %v393
        %v612 = vpop.f32.mrf.mxu0
        %v613 = vadd.f32 0.0, %v612
        %v614 = vpop.f32.mrf.mxu0
        %v615 = vpop.f32.mrf.mxu0
        %v616 = vadd.f32 0.0, %v615
        %v617 = vpop.f32.mrf.mxu0
        %618 = vdwg.mxu0
        %619 = vst [vmem:[%s248] sm:$0xff] %v493
        %620 = vst [vmem:[%s248 + $0x8] sm:$0xff] %v496
        %621 = vst [vmem:[%s248 + $0x10] sm:$0xff] %v501
        %622 = vst [vmem:[%s248 + $0x18] sm:$0xff] %v504
        %623 = vst [vmem:[%s248 + $0x20] sm:$0xff] %v509
        %624 = vst [vmem:[%s248 + $0x28] sm:$0xff] %v512
        %625 = vst [vmem:[%s248 + $0x30] sm:$0xff] %v517
        %626 = vst [vmem:[%s248 + $0x38] sm:$0xff] %v520
        %627 = vst [vmem:[%s248 + $0x40] sm:$0xff] %v525
        %628 = vst [vmem:[%s248 + $0x48] sm:$0xff] %v528
        %629 = vst [vmem:[%s248 + $0x50] sm:$0xff] %v533
        %630 = vst [vmem:[%s248 + $0x58] sm:$0xff] %v536
        %631 = vst [vmem:[%s248 + $0x60] sm:$0xff] %v541
        %632 = vst [vmem:[%s248 + $0x68] sm:$0xff] %v544
        %633 = vst [vmem:[%s248 + $0x70] sm:$0xff] %v549
        %634 = vst [vmem:[%s248 + $0x78] sm:$0xff] %v552
        %635 = vst [vmem:[%s248 + $0x80] sm:$0xff] %v557
        %636 = vst [vmem:[%s248 + $0x88] sm:$0xff] %v560
        %637 = vst [vmem:[%s248 + $0x90] sm:$0xff] %v565
        %638 = vst [vmem:[%s248 + $0x98] sm:$0xff] %v568
        %639 = vst [vmem:[%s248 + $0xa0] sm:$0xff] %v573
        %640 = vst [vmem:[%s248 + $0xa8] sm:$0xff] %v576
        %641 = vst [vmem:[%s248 + $0xb0] sm:$0xff] %v581
        %642 = vst [vmem:[%s248 + $0xb8] sm:$0xff] %v584
        %643 = vst [vmem:[%s248 + $0xc0] sm:$0xff] %v589
        %644 = vst [vmem:[%s248 + $0xc8] sm:$0xff] %v592
        %645 = vst [vmem:[%s248 + $0xd0] sm:$0xff] %v597
        %646 = vst [vmem:[%s248 + $0xd8] sm:$0xff] %v600
        %647 = vst [vmem:[%s248 + $0xe0] sm:$0xff] %v605
        %648 = vst [vmem:[%s248 + $0xe8] sm:$0xff] %v608
        %649 = vst [vmem:[%s248 + $0xf0] sm:$0xff] %v613
        %650 = vst [vmem:[%s248 + $0xf8] sm:$0xff] %v616
        %v651 = vld [vmem:[%s253] sm:$0xf]
        %v652 = vld [vmem:[%s253 + $0x4] sm:$0xf]
        %v653 = vld [vmem:[%s253 + $0x8] sm:$0x1]
        %v654 = vld [vmem:[%s253 + $0xc] sm:$0xf]
        %v655 = vld [vmem:[%s253 + $0x10] sm:$0xf]
        %v656 = vld [vmem:[%s253 + $0x14] sm:$0x1]
        %v657 = vld [vmem:[%s253 + $0x18] sm:$0xf]
        %v658 = vld [vmem:[%s253 + $0x1c] sm:$0xf]
        %v659 = vld [vmem:[%s253 + $0x20] sm:$0x1]
        %v660 = vld [vmem:[%s253 + $0x24] sm:$0xf]
        %v661 = vld [vmem:[%s253 + $0x28] sm:$0xf]
        %v662 = vld [vmem:[%s253 + $0x2c] sm:$0x1]
        %v663 = vld [vmem:[%s253 + $0x30] sm:$0xf]
        %v664 = vld [vmem:[%s253 + $0x34] sm:$0xf]
        %v665 = vld [vmem:[%s253 + $0x38] sm:$0x1]
        %v666 = vld [vmem:[%s253 + $0x3c] sm:$0xf]
        %v667 = vld [vmem:[%s253 + $0x40] sm:$0xf]
        %v668 = vld [vmem:[%s253 + $0x44] sm:$0x1]
        %v669 = vld [vmem:[%s253 + $0x48] sm:$0xf]
        %v670 = vld [vmem:[%s253 + $0x4c] sm:$0xf]
        %v671 = vld [vmem:[%s253 + $0x50] sm:$0x1]
        %v672 = vld [vmem:[%s253 + $0x54] sm:$0xf]
        %v673 = vld [vmem:[%s253 + $0x58] sm:$0xf]
        %v674 = vld [vmem:[%s253 + $0x5c] sm:$0x1]
        %v675 = vld [vmem:[%s253 + $0x60] sm:$0xf]
        %v676 = vld [vmem:[%s253 + $0x64] sm:$0xf]
        %v677 = vld [vmem:[%s253 + $0x68] sm:$0x1]
        %v678 = vld [vmem:[%s253 + $0x6c] sm:$0xf]
        %v679 = vld [vmem:[%s253 + $0x70] sm:$0xf]
        %v680 = vld [vmem:[%s253 + $0x74] sm:$0x1]
        %v681 = vld [vmem:[%s253 + $0x78] sm:$0xf]
        %v682 = vld [vmem:[%s253 + $0x7c] sm:$0xf]
        %v683 = vld [vmem:[%s253 + $0x80] sm:$0x1]
        %v684 = vld [vmem:[%s253 + $0x84] sm:$0xf]
        %v685 = vld [vmem:[%s253 + $0x88] sm:$0xf]
        %v686 = vld [vmem:[%s253 + $0x8c] sm:$0x1]
        %v687 = vld [vmem:[%s253 + $0x90] sm:$0xf]
        %v688 = vld [vmem:[%s253 + $0x94] sm:$0xf]
        %v689 = vld [vmem:[%s253 + $0x98] sm:$0x1]
        %v690 = vld [vmem:[%s253 + $0x9c] sm:$0xf]
        %v691 = vld [vmem:[%s253 + $0xa0] sm:$0xf]
        %v692 = vld [vmem:[%s253 + $0xa4] sm:$0x1]
        %v693 = vld [vmem:[%s253 + $0xa8] sm:$0xf]
        %v694 = vld [vmem:[%s253 + $0xac] sm:$0xf]
        %v695 = vld [vmem:[%s253 + $0xb0] sm:$0x1]
        %v696 = vld [vmem:[%s253 + $0xb4] sm:$0xf]
        %v697 = vld [vmem:[%s253 + $0xb8] sm:$0xf]
        %v698 = vld [vmem:[%s253 + $0xbc] sm:$0x1]
        %s699 = scalar_lea.vmem %s257, 64
        %v700 = vld [vmem:[%s699] sm:$0xf]
        %v701 = vld [vmem:[%s699 + $0x4] sm:$0xf]
        %v702 = vld [vmem:[%s699 + $0x8] sm:$0xf]
        %v703 = vld [vmem:[%s699 + $0xc] sm:$0xf]
        %v704 = vld [vmem:[%s699 + $0x10] sm:$0xf]
        %v705 = vld [vmem:[%s699 + $0x14] sm:$0xf]
        %v706 = vld [vmem:[%s699 + $0x18] sm:$0xf]
        %v707 = vld [vmem:[%s699 + $0x1c] sm:$0xf]
        %v708 = vld [vmem:[%s699 + $0x20] sm:$0xf]
        %v709 = vld [vmem:[%s699 + $0x24] sm:$0xf]
        %v710 = vld [vmem:[%s699 + $0x28] sm:$0xf]
        %v711 = vld [vmem:[%s699 + $0x2c] sm:$0xf]
        %v712 = vld [vmem:[%s699 + $0x30] sm:$0xf]
        %v713 = vld [vmem:[%s699 + $0x34] sm:$0xf]
        %v714 = vld [vmem:[%s699 + $0x38] sm:$0xf]
        %v715 = vld [vmem:[%s699 + $0x3c] sm:$0xf]
        %vm716 = vsmask.f32 3328
        %vm717 = vsmask.f32 7440
        %vm718 = vmor %vm716, %vm717
        %v720 = vshrl.u32 %v651, 16
        %v722 = vrot.slane %v720, 4
        %v723 = vshll.u32 %v651, 16
        %v725 = vrot.slane %v723, 5
        %v726 = vor.u32 %v722, %v725
        %v727 = vrot.slane %v726, 4
        %v729 = vshll.u32 %v652, 16
        %v731 = vrot.slane %v729, 5
        %v732 = vsel %vm718, %v727, %v731
        %v733 = vshrl.u32 %v652, 16
        %v735 = vrot.slane %v733, 4
        %v736 = vor.u32 %v735, %v731
        %v737 = vrot.slane %v736, 4
        %v739 = vshll.u32 %v653, 16
        %v741 = vrot.slane %v739, 5
        %v742 = vsel %vm718, %v737, %v741
        %v744 = vshrl.u32 %v654, 16
        %v746 = vrot.slane %v744, 4
        %v747 = vshll.u32 %v654, 16
        %v749 = vrot.slane %v747, 5
        %v750 = vor.u32 %v746, %v749
        %v751 = vrot.slane %v750, 4
        %v753 = vshll.u32 %v655, 16
        %v755 = vrot.slane %v753, 5
        %v756 = vsel %vm718, %v751, %v755
        %v757 = vshrl.u32 %v655, 16
        %v759 = vrot.slane %v757, 4
        %v760 = vor.u32 %v759, %v755
        %v761 = vrot.slane %v760, 4
        %v763 = vshll.u32 %v656, 16
        %v765 = vrot.slane %v763, 5
        %v766 = vsel %vm718, %v761, %v765
        %v768 = vshrl.u32 %v657, 16
        %v770 = vrot.slane %v768, 4
        %v771 = vshll.u32 %v657, 16
        %v773 = vrot.slane %v771, 5
        %v774 = vor.u32 %v770, %v773
        %v775 = vrot.slane %v774, 4
        %v777 = vshll.u32 %v658, 16
        %v779 = vrot.slane %v777, 5
        %v780 = vsel %vm718, %v775, %v779
        %v781 = vshrl.u32 %v658, 16
        %v783 = vrot.slane %v781, 4
        %v784 = vor.u32 %v783, %v779
        %v785 = vrot.slane %v784, 4
        %v787 = vshll.u32 %v659, 16
        %v789 = vrot.slane %v787, 5
        %v790 = vsel %vm718, %v785, %v789
        %v792 = vshrl.u32 %v660, 16
        %v794 = vrot.slane %v792, 4
        %v795 = vshll.u32 %v660, 16
        %v797 = vrot.slane %v795, 5
        %v798 = vor.u32 %v794, %v797
        %v799 = vrot.slane %v798, 4
        %v801 = vshll.u32 %v661, 16
        %v803 = vrot.slane %v801, 5
        %v804 = vsel %vm718, %v799, %v803
        %v805 = vshrl.u32 %v661, 16
        %v807 = vrot.slane %v805, 4
        %v808 = vor.u32 %v807, %v803
        %v809 = vrot.slane %v808, 4
        %v811 = vshll.u32 %v662, 16
        %v813 = vrot.slane %v811, 5
        %v814 = vsel %vm718, %v809, %v813
        %v816 = vshrl.u32 %v663, 16
        %v818 = vrot.slane %v816, 4
        %v819 = vshll.u32 %v663, 16
        %v821 = vrot.slane %v819, 5
        %v822 = vor.u32 %v818, %v821
        %v823 = vrot.slane %v822, 4
        %v825 = vshll.u32 %v664, 16
        %v827 = vrot.slane %v825, 5
        %v828 = vsel %vm718, %v823, %v827
        %v829 = vshrl.u32 %v664, 16
        %v831 = vrot.slane %v829, 4
        %v832 = vor.u32 %v831, %v827
        %v833 = vrot.slane %v832, 4
        %v835 = vshll.u32 %v665, 16
        %v837 = vrot.slane %v835, 5
        %v838 = vsel %vm718, %v833, %v837
        %v840 = vshrl.u32 %v666, 16
        %v842 = vrot.slane %v840, 4
        %v843 = vshll.u32 %v666, 16
        %v845 = vrot.slane %v843, 5
        %v846 = vor.u32 %v842, %v845
        %v847 = vrot.slane %v846, 4
        %v849 = vshll.u32 %v667, 16
        %v851 = vrot.slane %v849, 5
        %v852 = vsel %vm718, %v847, %v851
        %v853 = vshrl.u32 %v667, 16
        %v855 = vrot.slane %v853, 4
        %v856 = vor.u32 %v855, %v851
        %v857 = vrot.slane %v856, 4
        %v859 = vshll.u32 %v668, 16
        %v861 = vrot.slane %v859, 5
        %v862 = vsel %vm718, %v857, %v861
        %v864 = vshrl.u32 %v669, 16
        %v866 = vrot.slane %v864, 4
        %v867 = vshll.u32 %v669, 16
        %v869 = vrot.slane %v867, 5
        %v870 = vor.u32 %v866, %v869
        %v871 = vrot.slane %v870, 4
        %v873 = vshll.u32 %v670, 16
        %v875 = vrot.slane %v873, 5
        %v876 = vsel %vm718, %v871, %v875
        %v877 = vshrl.u32 %v670, 16
        %v879 = vrot.slane %v877, 4
        %v880 = vor.u32 %v879, %v875
        %v881 = vrot.slane %v880, 4
        %v883 = vshll.u32 %v671, 16
        %v885 = vrot.slane %v883, 5
        %v886 = vsel %vm718, %v881, %v885
        %v888 = vshrl.u32 %v672, 16
        %v890 = vrot.slane %v888, 4
        %v891 = vshll.u32 %v672, 16
        %v893 = vrot.slane %v891, 5
        %v894 = vor.u32 %v890, %v893
        %v895 = vrot.slane %v894, 4
        %v897 = vshll.u32 %v673, 16
        %v899 = vrot.slane %v897, 5
        %v900 = vsel %vm718, %v895, %v899
        %v901 = vshrl.u32 %v673, 16
        %v903 = vrot.slane %v901, 4
        %v904 = vor.u32 %v903, %v899
        %v905 = vrot.slane %v904, 4
        %v907 = vshll.u32 %v674, 16
        %v909 = vrot.slane %v907, 5
        %v910 = vsel %vm718, %v905, %v909
        %v912 = vshrl.u32 %v675, 16
        %v914 = vrot.slane %v912, 4
        %v915 = vshll.u32 %v675, 16
        %v917 = vrot.slane %v915, 5
        %v918 = vor.u32 %v914, %v917
        %v919 = vrot.slane %v918, 4
        %v921 = vshll.u32 %v676, 16
        %v923 = vrot.slane %v921, 5
        %v924 = vsel %vm718, %v919, %v923
        %v925 = vshrl.u32 %v676, 16
        %v927 = vrot.slane %v925, 4
        %v928 = vor.u32 %v927, %v923
        %v929 = vrot.slane %v928, 4
        %v931 = vshll.u32 %v677, 16
        %v933 = vrot.slane %v931, 5
        %v934 = vsel %vm718, %v929, %v933
        %v936 = vshrl.u32 %v678, 16
        %v938 = vrot.slane %v936, 4
        %v939 = vshll.u32 %v678, 16
        %v941 = vrot.slane %v939, 5
        %v942 = vor.u32 %v938, %v941
        %v943 = vrot.slane %v942, 4
        %v945 = vshll.u32 %v679, 16
        %v947 = vrot.slane %v945, 5
        %v948 = vsel %vm718, %v943, %v947
        %v949 = vshrl.u32 %v679, 16
        %v951 = vrot.slane %v949, 4
        %v952 = vor.u32 %v951, %v947
        %v953 = vrot.slane %v952, 4
        %v955 = vshll.u32 %v680, 16
        %v957 = vrot.slane %v955, 5
        %v958 = vsel %vm718, %v953, %v957
        %v960 = vshrl.u32 %v681, 16
        %v962 = vrot.slane %v960, 4
        %v963 = vshll.u32 %v681, 16
        %v965 = vrot.slane %v963, 5
        %v966 = vor.u32 %v962, %v965
        %v967 = vrot.slane %v966, 4
        %v969 = vshll.u32 %v682, 16
        %v971 = vrot.slane %v969, 5
        %v972 = vsel %vm718, %v967, %v971
        %v973 = vshrl.u32 %v682, 16
        %v975 = vrot.slane %v973, 4
        %v976 = vor.u32 %v975, %v971
        %v977 = vrot.slane %v976, 4
        %v979 = vshll.u32 %v683, 16
        %v981 = vrot.slane %v979, 5
        %v982 = vsel %vm718, %v977, %v981
        %v984 = vshrl.u32 %v684, 16
        %v986 = vrot.slane %v984, 4
        %v987 = vshll.u32 %v684, 16
        %v989 = vrot.slane %v987, 5
        %v990 = vor.u32 %v986, %v989
        %v991 = vrot.slane %v990, 4
        %v993 = vshll.u32 %v685, 16
        %v995 = vrot.slane %v993, 5
        %v996 = vsel %vm718, %v991, %v995
        %v997 = vshrl.u32 %v685, 16
        %v999 = vrot.slane %v997, 4
        %v1000 = vor.u32 %v999, %v995
        %v1001 = vrot.slane %v1000, 4
        %v1003 = vshll.u32 %v686, 16
        %v1005 = vrot.slane %v1003, 5
        %v1006 = vsel %vm718, %v1001, %v1005
        %v1008 = vshrl.u32 %v687, 16
        %v1010 = vrot.slane %v1008, 4
        %v1011 = vshll.u32 %v687, 16
        %v1013 = vrot.slane %v1011, 5
        %v1014 = vor.u32 %v1010, %v1013
        %v1015 = vrot.slane %v1014, 4
        %v1017 = vshll.u32 %v688, 16
        %v1019 = vrot.slane %v1017, 5
        %v1020 = vsel %vm718, %v1015, %v1019
        %v1021 = vshrl.u32 %v688, 16
        %v1023 = vrot.slane %v1021, 4
        %v1024 = vor.u32 %v1023, %v1019
        %v1025 = vrot.slane %v1024, 4
        %v1027 = vshll.u32 %v689, 16
        %v1029 = vrot.slane %v1027, 5
        %v1030 = vsel %vm718, %v1025, %v1029
        %v1032 = vshrl.u32 %v690, 16
        %v1034 = vrot.slane %v1032, 4
        %v1035 = vshll.u32 %v690, 16
        %v1037 = vrot.slane %v1035, 5
        %v1038 = vor.u32 %v1034, %v1037
        %v1039 = vrot.slane %v1038, 4
        %v1041 = vshll.u32 %v691, 16
        %v1043 = vrot.slane %v1041, 5
        %v1044 = vsel %vm718, %v1039, %v1043
        %v1045 = vshrl.u32 %v691, 16
        %v1047 = vrot.slane %v1045, 4
        %v1048 = vor.u32 %v1047, %v1043
        %v1049 = vrot.slane %v1048, 4
        %v1051 = vshll.u32 %v692, 16
        %v1053 = vrot.slane %v1051, 5
        %v1054 = vsel %vm718, %v1049, %v1053
        %v1056 = vshrl.u32 %v693, 16
        %v1058 = vrot.slane %v1056, 4
        %v1059 = vshll.u32 %v693, 16
        %v1061 = vrot.slane %v1059, 5
        %v1062 = vor.u32 %v1058, %v1061
        %v1063 = vrot.slane %v1062, 4
        %v1065 = vshll.u32 %v694, 16
        %v1067 = vrot.slane %v1065, 5
        %v1068 = vsel %vm718, %v1063, %v1067
        %v1069 = vshrl.u32 %v694, 16
        %v1071 = vrot.slane %v1069, 4
        %v1072 = vor.u32 %v1071, %v1067
        %v1073 = vrot.slane %v1072, 4
        %v1075 = vshll.u32 %v695, 16
        %v1077 = vrot.slane %v1075, 5
        %v1078 = vsel %vm718, %v1073, %v1077
        %v1080 = vshrl.u32 %v696, 16
        %v1082 = vrot.slane %v1080, 4
        %v1083 = vshll.u32 %v696, 16
        %v1085 = vrot.slane %v1083, 5
        %v1086 = vor.u32 %v1082, %v1085
        %v1087 = vrot.slane %v1086, 4
        %v1089 = vshll.u32 %v697, 16
        %v1091 = vrot.slane %v1089, 5
        %v1092 = vsel %vm718, %v1087, %v1091
        %v1093 = vshrl.u32 %v697, 16
        %v1095 = vrot.slane %v1093, 4
        %v1096 = vor.u32 %v1095, %v1091
        %v1097 = vrot.slane %v1096, 4
        %v1099 = vshll.u32 %v698, 16
        %v1101 = vrot.slane %v1099, 5
        %v1102 = vsel %vm718, %v1097, %v1101
        %v1103 = vunpack.c.l.b16 %v732
        %v1104 = vunpack.c.l.b16 %v742
        %v1105 = vunpack.c.l.b16 %v756
        %v1106 = vunpack.c.l.b16 %v766
        %v1107 = vunpack.c.l.b16 %v780
        %v1108 = vunpack.c.l.b16 %v790
        %v1109 = vunpack.c.l.b16 %v804
        %v1110 = vunpack.c.l.b16 %v814
        %v1111 = vunpack.c.l.b16 %v828
        %v1112 = vunpack.c.l.b16 %v838
        %v1113 = vunpack.c.l.b16 %v852
        %v1114 = vunpack.c.l.b16 %v862
        %v1115 = vunpack.c.l.b16 %v876
        %v1116 = vunpack.c.l.b16 %v886
        %v1117 = vunpack.c.l.b16 %v900
        %v1118 = vunpack.c.l.b16 %v910
        %v1119 = vunpack.c.l.b16 %v924
        %v1120 = vunpack.c.l.b16 %v934
        %v1121 = vunpack.c.l.b16 %v948
        %v1122 = vunpack.c.l.b16 %v958
        %v1123 = vunpack.c.l.b16 %v972
        %v1124 = vunpack.c.l.b16 %v982
        %v1125 = vunpack.c.l.b16 %v996
        %v1126 = vunpack.c.l.b16 %v1006
        %v1127 = vunpack.c.l.b16 %v1020
        %v1128 = vunpack.c.l.b16 %v1030
        %v1129 = vunpack.c.l.b16 %v1044
        %v1130 = vunpack.c.l.b16 %v1054
        %v1131 = vunpack.c.l.b16 %v1068
        %v1132 = vunpack.c.l.b16 %v1078
        %v1133 = vunpack.c.l.b16 %v1092
        %v1134 = vunpack.c.l.b16 %v1102
        %v1135 = vpack.c.b16 %v1104, %v1103
        %v1136 = vpack.c.b16 %v1106, %v1105
        %v1137 = vpack.c.b16 %v1108, %v1107
        %v1138 = vpack.c.b16 %v1110, %v1109
        %v1139 = vpack.c.b16 %v1112, %v1111
        %v1140 = vpack.c.b16 %v1114, %v1113
        %v1141 = vpack.c.b16 %v1116, %v1115
        %v1142 = vpack.c.b16 %v1118, %v1117
        %v1143 = vpack.c.b16 %v1120, %v1119
        %v1144 = vpack.c.b16 %v1122, %v1121
        %v1145 = vpack.c.b16 %v1124, %v1123
        %v1146 = vpack.c.b16 %v1126, %v1125
        %v1147 = vpack.c.b16 %v1128, %v1127
        %v1148 = vpack.c.b16 %v1130, %v1129
        %v1149 = vpack.c.b16 %v1132, %v1131
        %v1150 = vpack.c.b16 %v1134, %v1133
        %v1183 = vunpack.c.l.b16 %v700
        %v1184 = vunpack.c.l.b16 %v701
        %v1185 = vunpack.c.l.b16 %v702
        %v1186 = vunpack.c.l.b16 %v703
        %v1187 = vunpack.c.l.b16 %v704
        %v1188 = vunpack.c.l.b16 %v705
        %v1189 = vunpack.c.l.b16 %v706
        %v1190 = vunpack.c.l.b16 %v707
        %v1191 = vunpack.c.l.b16 %v708
        %v1192 = vunpack.c.l.b16 %v709
        %v1193 = vunpack.c.l.b16 %v710
        %v1194 = vunpack.c.l.b16 %v711
        %v1195 = vunpack.c.l.b16 %v712
        %v1196 = vunpack.c.l.b16 %v713
        %v1197 = vunpack.c.l.b16 %v714
        %v1198 = vunpack.c.l.b16 %v715
        %v1199 = vpack.c.b16 %v1184, %v1183
        %v1200 = vpack.c.b16 %v1186, %v1185
        %v1201 = vpack.c.b16 %v1188, %v1187
        %v1202 = vpack.c.b16 %v1190, %v1189
        %v1203 = vpack.c.b16 %v1192, %v1191
        %v1204 = vpack.c.b16 %v1194, %v1193
        %v1205 = vpack.c.b16 %v1196, %v1195
        %v1206 = vpack.c.b16 %v1198, %v1197
        %1215 = vmatprep.subr.bf16.mxu0 0
        %1216 = vmatpush1.bf16.msra.mxu0 %v1206
        %1217 = vmatprep.subr.bf16.mxu0 0
        %1218 = vmatpush1.bf16.msra.mxu0 %v1205
        %1219 = vmatprep.subr.bf16.mxu0 0
        %1220 = vmatpush1.bf16.msra.mxu0 %v1204
        %1221 = vmatprep.subr.bf16.mxu0 0
        %1222 = vmatpush1.bf16.msra.mxu0 %v1203
        %1223 = vmatprep.subr.bf16.mxu0 0
        %1224 = vmatpush1.bf16.msra.mxu0 %v1202
        %1225 = vmatprep.subr.bf16.mxu0 0
        %1226 = vmatpush1.bf16.msra.mxu0 %v1201
        %1227 = vmatprep.subr.bf16.mxu0 0
        %1228 = vmatpush1.bf16.msra.mxu0 %v1200
        %1229 = vmatprep.subr.bf16.mxu0 0
        %1230 = vmatpush1.bf16.msra.mxu0 %v1199
        %1231 = vmatprep.subr.bf16.mxu0 0
        %1232 = vmatpush2.bf16.msra.mxu0 0
        %1233 = vmatprep.subr.bf16.mxu0 0
        %1234 = vmatpush2.bf16.msra.mxu0 0
        %1235 = vmatprep.subr.bf16.mxu0 0
        %1236 = vmatpush2.bf16.msra.mxu0 0
        %1237 = vmatprep.subr.bf16.mxu0 0
        %1238 = vmatpush2.bf16.msra.mxu0 0
        %1239 = vmatprep.subr.bf16.mxu0 0
        %1240 = vmatpush2.bf16.msra.mxu0 0
        %1241 = vmatprep.subr.bf16.mxu0 0
        %1242 = vmatpush2.bf16.msra.mxu0 0
        %1243 = vmatprep.subr.bf16.mxu0 0
        %1244 = vmatpush2.bf16.msra.mxu0 0
        %1245 = vmatprep.subr.bf16.mxu0 0
        %1246 = vmatpush2.bf16.msra.mxu0 0
        %1247 = vmatprep.mubr.bf16.mxu0 0
        %1248 = vmatmul.mubr.bf16.gmra.mxu0 %v1135
        %v1249 = vpop.f32.mrf.mxu0
        %v1250 = vadd.f32 0.0, %v1249
        %v1251 = vpop.f32.mrf.mxu0
        %v1252 = vpop.f32.mrf.mxu0
        %v1253 = vadd.f32 0.0, %v1252
        %v1254 = vpop.f32.mrf.mxu0
        %1255 = vmatprep.mubr.bf16.mxu0 0
        %1256 = vmatmul.mubr.bf16.gmra.mxu0 %v1136
        %v1257 = vpop.f32.mrf.mxu0
        %v1258 = vadd.f32 0.0, %v1257
        %v1259 = vpop.f32.mrf.mxu0
        %v1260 = vpop.f32.mrf.mxu0
        %v1261 = vadd.f32 0.0, %v1260
        %v1262 = vpop.f32.mrf.mxu0
        %1263 = vmatprep.mubr.bf16.mxu0 0
        %1264 = vmatmul.mubr.bf16.gmra.mxu0 %v1137
        %v1265 = vpop.f32.mrf.mxu0
        %v1266 = vadd.f32 0.0, %v1265
        %v1267 = vpop.f32.mrf.mxu0
        %v1268 = vpop.f32.mrf.mxu0
        %v1269 = vadd.f32 0.0, %v1268
        %v1270 = vpop.f32.mrf.mxu0
        %1271 = vmatprep.mubr.bf16.mxu0 0
        %1272 = vmatmul.mubr.bf16.gmra.mxu0 %v1138
        %v1273 = vpop.f32.mrf.mxu0
        %v1274 = vadd.f32 0.0, %v1273
        %v1275 = vpop.f32.mrf.mxu0
        %v1276 = vpop.f32.mrf.mxu0
        %v1277 = vadd.f32 0.0, %v1276
        %v1278 = vpop.f32.mrf.mxu0
        %1279 = vmatprep.mubr.bf16.mxu0 0
        %1280 = vmatmul.mubr.bf16.gmra.mxu0 %v1139
        %v1281 = vpop.f32.mrf.mxu0
        %v1282 = vadd.f32 0.0, %v1281
        %v1283 = vpop.f32.mrf.mxu0
        %v1284 = vpop.f32.mrf.mxu0
        %v1285 = vadd.f32 0.0, %v1284
        %v1286 = vpop.f32.mrf.mxu0
        %1287 = vmatprep.mubr.bf16.mxu0 0
        %1288 = vmatmul.mubr.bf16.gmra.mxu0 %v1140
        %v1289 = vpop.f32.mrf.mxu0
        %v1290 = vadd.f32 0.0, %v1289
        %v1291 = vpop.f32.mrf.mxu0
        %v1292 = vpop.f32.mrf.mxu0
        %v1293 = vadd.f32 0.0, %v1292
        %v1294 = vpop.f32.mrf.mxu0
        %1295 = vmatprep.mubr.bf16.mxu0 0
        %1296 = vmatmul.mubr.bf16.gmra.mxu0 %v1141
        %v1297 = vpop.f32.mrf.mxu0
        %v1298 = vadd.f32 0.0, %v1297
        %v1299 = vpop.f32.mrf.mxu0
        %v1300 = vpop.f32.mrf.mxu0
        %v1301 = vadd.f32 0.0, %v1300
        %v1302 = vpop.f32.mrf.mxu0
        %1303 = vmatprep.mubr.bf16.mxu0 0
        %1304 = vmatmul.mubr.bf16.gmra.mxu0 %v1142
        %v1305 = vpop.f32.mrf.mxu0
        %v1306 = vadd.f32 0.0, %v1305
        %v1307 = vpop.f32.mrf.mxu0
        %v1308 = vpop.f32.mrf.mxu0
        %v1309 = vadd.f32 0.0, %v1308
        %v1310 = vpop.f32.mrf.mxu0
        %1311 = vmatprep.mubr.bf16.mxu0 0
        %1312 = vmatmul.mubr.bf16.gmra.mxu0 %v1143
        %v1313 = vpop.f32.mrf.mxu0
        %v1314 = vadd.f32 0.0, %v1313
        %v1315 = vpop.f32.mrf.mxu0
        %v1316 = vpop.f32.mrf.mxu0
        %v1317 = vadd.f32 0.0, %v1316
        %v1318 = vpop.f32.mrf.mxu0
        %1319 = vmatprep.mubr.bf16.mxu0 0
        %1320 = vmatmul.mubr.bf16.gmra.mxu0 %v1144
        %v1321 = vpop.f32.mrf.mxu0
        %v1322 = vadd.f32 0.0, %v1321
        %v1323 = vpop.f32.mrf.mxu0
        %v1324 = vpop.f32.mrf.mxu0
        %v1325 = vadd.f32 0.0, %v1324
        %v1326 = vpop.f32.mrf.mxu0
        %1327 = vmatprep.mubr.bf16.mxu0 0
        %1328 = vmatmul.mubr.bf16.gmra.mxu0 %v1145
        %v1329 = vpop.f32.mrf.mxu0
        %v1330 = vadd.f32 0.0, %v1329
        %v1331 = vpop.f32.mrf.mxu0
        %v1332 = vpop.f32.mrf.mxu0
        %v1333 = vadd.f32 0.0, %v1332
        %v1334 = vpop.f32.mrf.mxu0
        %1335 = vmatprep.mubr.bf16.mxu0 0
        %1336 = vmatmul.mubr.bf16.gmra.mxu0 %v1146
        %v1337 = vpop.f32.mrf.mxu0
        %v1338 = vadd.f32 0.0, %v1337
        %v1339 = vpop.f32.mrf.mxu0
        %v1340 = vpop.f32.mrf.mxu0
        %v1341 = vadd.f32 0.0, %v1340
        %v1342 = vpop.f32.mrf.mxu0
        %1343 = vmatprep.mubr.bf16.mxu0 0
        %1344 = vmatmul.mubr.bf16.gmra.mxu0 %v1147
        %v1345 = vpop.f32.mrf.mxu0
        %v1346 = vadd.f32 0.0, %v1345
        %v1347 = vpop.f32.mrf.mxu0
        %v1348 = vpop.f32.mrf.mxu0
        %v1349 = vadd.f32 0.0, %v1348
        %v1350 = vpop.f32.mrf.mxu0
        %1351 = vmatprep.mubr.bf16.mxu0 0
        %1352 = vmatmul.mubr.bf16.gmra.mxu0 %v1148
        %v1353 = vpop.f32.mrf.mxu0
        %v1354 = vadd.f32 0.0, %v1353
        %v1355 = vpop.f32.mrf.mxu0
        %v1356 = vpop.f32.mrf.mxu0
        %v1357 = vadd.f32 0.0, %v1356
        %v1358 = vpop.f32.mrf.mxu0
        %1359 = vmatprep.mubr.bf16.mxu0 0
        %1360 = vmatmul.mubr.bf16.gmra.mxu0 %v1149
        %v1361 = vpop.f32.mrf.mxu0
        %v1362 = vadd.f32 0.0, %v1361
        %v1363 = vpop.f32.mrf.mxu0
        %v1364 = vpop.f32.mrf.mxu0
        %v1365 = vadd.f32 0.0, %v1364
        %v1366 = vpop.f32.mrf.mxu0
        %1367 = vmatprep.mubr.bf16.mxu0 0
        %1368 = vmatmul.mubr.bf16.gmra.mxu0 %v1150
        %v1369 = vpop.f32.mrf.mxu0
        %v1370 = vadd.f32 0.0, %v1369
        %v1371 = vpop.f32.mrf.mxu0
        %v1372 = vpop.f32.mrf.mxu0
        %v1373 = vadd.f32 0.0, %v1372
        %v1374 = vpop.f32.mrf.mxu0
        %1375 = vdwg.mxu0
        %v1376 = vld [vmem:[%s248] sm:$0xff]
        %v1377 = vld [vmem:[%s248 + $0x8] sm:$0xff]
        %v1378 = vld [vmem:[%s248 + $0x10] sm:$0xff]
        %v1379 = vld [vmem:[%s248 + $0x18] sm:$0xff]
        %v1380 = vld [vmem:[%s248 + $0x20] sm:$0xff]
        %v1381 = vld [vmem:[%s248 + $0x28] sm:$0xff]
        %v1382 = vld [vmem:[%s248 + $0x30] sm:$0xff]
        %v1383 = vld [vmem:[%s248 + $0x38] sm:$0xff]
        %v1384 = vld [vmem:[%s248 + $0x40] sm:$0xff]
        %v1385 = vld [vmem:[%s248 + $0x48] sm:$0xff]
        %v1386 = vld [vmem:[%s248 + $0x50] sm:$0xff]
        %v1387 = vld [vmem:[%s248 + $0x58] sm:$0xff]
        %v1388 = vld [vmem:[%s248 + $0x60] sm:$0xff]
        %v1389 = vld [vmem:[%s248 + $0x68] sm:$0xff]
        %v1390 = vld [vmem:[%s248 + $0x70] sm:$0xff]
        %v1391 = vld [vmem:[%s248 + $0x78] sm:$0xff]
        %v1392 = vld [vmem:[%s248 + $0x80] sm:$0xff]
        %v1393 = vld [vmem:[%s248 + $0x88] sm:$0xff]
        %v1394 = vld [vmem:[%s248 + $0x90] sm:$0xff]
        %v1395 = vld [vmem:[%s248 + $0x98] sm:$0xff]
        %v1396 = vld [vmem:[%s248 + $0xa0] sm:$0xff]
        %v1397 = vld [vmem:[%s248 + $0xa8] sm:$0xff]
        %v1398 = vld [vmem:[%s248 + $0xb0] sm:$0xff]
        %v1399 = vld [vmem:[%s248 + $0xb8] sm:$0xff]
        %v1400 = vld [vmem:[%s248 + $0xc0] sm:$0xff]
        %v1401 = vld [vmem:[%s248 + $0xc8] sm:$0xff]
        %v1402 = vld [vmem:[%s248 + $0xd0] sm:$0xff]
        %v1403 = vld [vmem:[%s248 + $0xd8] sm:$0xff]
        %v1404 = vld [vmem:[%s248 + $0xe0] sm:$0xff]
        %v1405 = vld [vmem:[%s248 + $0xe8] sm:$0xff]
        %v1406 = vld [vmem:[%s248 + $0xf0] sm:$0xff]
        %v1407 = vld [vmem:[%s248 + $0xf8] sm:$0xff]
        %v1408 = vadd.f32 %v1376, %v1250
        %v1409 = vadd.f32 %v1377, %v1253
        %v1410 = vadd.f32 %v1378, %v1258
        %v1411 = vadd.f32 %v1379, %v1261
        %v1412 = vadd.f32 %v1380, %v1266
        %v1413 = vadd.f32 %v1381, %v1269
        %v1414 = vadd.f32 %v1382, %v1274
        %v1415 = vadd.f32 %v1383, %v1277
        %v1416 = vadd.f32 %v1384, %v1282
        %v1417 = vadd.f32 %v1385, %v1285
        %v1418 = vadd.f32 %v1386, %v1290
        %v1419 = vadd.f32 %v1387, %v1293
        %v1420 = vadd.f32 %v1388, %v1298
        %v1421 = vadd.f32 %v1389, %v1301
        %v1422 = vadd.f32 %v1390, %v1306
        %v1423 = vadd.f32 %v1391, %v1309
        %v1424 = vadd.f32 %v1392, %v1314
        %v1425 = vadd.f32 %v1393, %v1317
        %v1426 = vadd.f32 %v1394, %v1322
        %v1427 = vadd.f32 %v1395, %v1325
        %v1428 = vadd.f32 %v1396, %v1330
        %v1429 = vadd.f32 %v1397, %v1333
        %v1430 = vadd.f32 %v1398, %v1338
        %v1431 = vadd.f32 %v1399, %v1341
        %v1432 = vadd.f32 %v1400, %v1346
        %v1433 = vadd.f32 %v1401, %v1349
        %v1434 = vadd.f32 %v1402, %v1354
        %v1435 = vadd.f32 %v1403, %v1357
        %v1436 = vadd.f32 %v1404, %v1362
        %v1437 = vadd.f32 %v1405, %v1365
        %v1438 = vadd.f32 %v1406, %v1370
        %v1439 = vadd.f32 %v1407, %v1373
        %1440 = vst [vmem:[%s248] sm:$0xff] %v1408
        %1441 = vst [vmem:[%s248 + $0x8] sm:$0xff] %v1409
        %1442 = vst [vmem:[%s248 + $0x10] sm:$0xff] %v1410
        %1443 = vst [vmem:[%s248 + $0x18] sm:$0xff] %v1411
        %1444 = vst [vmem:[%s248 + $0x20] sm:$0xff] %v1412
        %1445 = vst [vmem:[%s248 + $0x28] sm:$0xff] %v1413
        %1446 = vst [vmem:[%s248 + $0x30] sm:$0xff] %v1414
        %1447 = vst [vmem:[%s248 + $0x38] sm:$0xff] %v1415
        %1448 = vst [vmem:[%s248 + $0x40] sm:$0xff] %v1416
        %1449 = vst [vmem:[%s248 + $0x48] sm:$0xff] %v1417
        %1450 = vst [vmem:[%s248 + $0x50] sm:$0xff] %v1418
        %1451 = vst [vmem:[%s248 + $0x58] sm:$0xff] %v1419
        %1452 = vst [vmem:[%s248 + $0x60] sm:$0xff] %v1420
        %1453 = vst [vmem:[%s248 + $0x68] sm:$0xff] %v1421
        %1454 = vst [vmem:[%s248 + $0x70] sm:$0xff] %v1422
        %1455 = vst [vmem:[%s248 + $0x78] sm:$0xff] %v1423
        %1456 = vst [vmem:[%s248 + $0x80] sm:$0xff] %v1424
        %1457 = vst [vmem:[%s248 + $0x88] sm:$0xff] %v1425
        %1458 = vst [vmem:[%s248 + $0x90] sm:$0xff] %v1426
        %1459 = vst [vmem:[%s248 + $0x98] sm:$0xff] %v1427
        %1460 = vst [vmem:[%s248 + $0xa0] sm:$0xff] %v1428
        %1461 = vst [vmem:[%s248 + $0xa8] sm:$0xff] %v1429
        %1462 = vst [vmem:[%s248 + $0xb0] sm:$0xff] %v1430
        %1463 = vst [vmem:[%s248 + $0xb8] sm:$0xff] %v1431
        %1464 = vst [vmem:[%s248 + $0xc0] sm:$0xff] %v1432
        %1465 = vst [vmem:[%s248 + $0xc8] sm:$0xff] %v1433
        %1466 = vst [vmem:[%s248 + $0xd0] sm:$0xff] %v1434
        %1467 = vst [vmem:[%s248 + $0xd8] sm:$0xff] %v1435
        %1468 = vst [vmem:[%s248 + $0xe0] sm:$0xff] %v1436
        %1469 = vst [vmem:[%s248 + $0xe8] sm:$0xff] %v1437
        %1470 = vst [vmem:[%s248 + $0xf0] sm:$0xff] %v1438
        %1471 = vst [vmem:[%s248 + $0xf8] sm:$0xff] %v1439
        %v1472 = vld [vmem:[%s253] sm:$0xe]
        %v1473 = vld [vmem:[%s253 + $0x4] sm:$0xf]
        %v1474 = vld [vmem:[%s253 + $0x8] sm:$0x1]
        %v1475 = vld [vmem:[%s253 + $0xc] sm:$0xe]
        %v1476 = vld [vmem:[%s253 + $0x10] sm:$0xf]
        %v1477 = vld [vmem:[%s253 + $0x14] sm:$0x1]
        %v1478 = vld [vmem:[%s253 + $0x18] sm:$0xe]
        %v1479 = vld [vmem:[%s253 + $0x1c] sm:$0xf]
        %v1480 = vld [vmem:[%s253 + $0x20] sm:$0x1]
        %v1481 = vld [vmem:[%s253 + $0x24] sm:$0xe]
        %v1482 = vld [vmem:[%s253 + $0x28] sm:$0xf]
        %v1483 = vld [vmem:[%s253 + $0x2c] sm:$0x1]
        %v1484 = vld [vmem:[%s253 + $0x30] sm:$0xe]
        %v1485 = vld [vmem:[%s253 + $0x34] sm:$0xf]
        %v1486 = vld [vmem:[%s253 + $0x38] sm:$0x1]
        %v1487 = vld [vmem:[%s253 + $0x3c] sm:$0xe]
        %v1488 = vld [vmem:[%s253 + $0x40] sm:$0xf]
        %v1489 = vld [vmem:[%s253 + $0x44] sm:$0x1]
        %v1490 = vld [vmem:[%s253 + $0x48] sm:$0xe]
        %v1491 = vld [vmem:[%s253 + $0x4c] sm:$0xf]
        %v1492 = vld [vmem:[%s253 + $0x50] sm:$0x1]
        %v1493 = vld [vmem:[%s253 + $0x54] sm:$0xe]
        %v1494 = vld [vmem:[%s253 + $0x58] sm:$0xf]
        %v1495 = vld [vmem:[%s253 + $0x5c] sm:$0x1]
        %v1496 = vld [vmem:[%s253 + $0x60] sm:$0xe]
        %v1497 = vld [vmem:[%s253 + $0x64] sm:$0xf]
        %v1498 = vld [vmem:[%s253 + $0x68] sm:$0x1]
        %v1499 = vld [vmem:[%s253 + $0x6c] sm:$0xe]
        %v1500 = vld [vmem:[%s253 + $0x70] sm:$0xf]
        %v1501 = vld [vmem:[%s253 + $0x74] sm:$0x1]
        %v1502 = vld [vmem:[%s253 + $0x78] sm:$0xe]
        %v1503 = vld [vmem:[%s253 + $0x7c] sm:$0xf]
        %v1504 = vld [vmem:[%s253 + $0x80] sm:$0x1]
        %v1505 = vld [vmem:[%s253 + $0x84] sm:$0xe]
        %v1506 = vld [vmem:[%s253 + $0x88] sm:$0xf]
        %v1507 = vld [vmem:[%s253 + $0x8c] sm:$0x1]
        %v1508 = vld [vmem:[%s253 + $0x90] sm:$0xe]
        %v1509 = vld [vmem:[%s253 + $0x94] sm:$0xf]
        %v1510 = vld [vmem:[%s253 + $0x98] sm:$0x1]
        %v1511 = vld [vmem:[%s253 + $0x9c] sm:$0xe]
        %v1512 = vld [vmem:[%s253 + $0xa0] sm:$0xf]
        %v1513 = vld [vmem:[%s253 + $0xa4] sm:$0x1]
        %v1514 = vld [vmem:[%s253 + $0xa8] sm:$0xe]
        %v1515 = vld [vmem:[%s253 + $0xac] sm:$0xf]
        %v1516 = vld [vmem:[%s253 + $0xb0] sm:$0x1]
        %v1517 = vld [vmem:[%s253 + $0xb4] sm:$0xe]
        %v1518 = vld [vmem:[%s253 + $0xb8] sm:$0xf]
        %v1519 = vld [vmem:[%s253 + $0xbc] sm:$0x1]
        %s1520 = scalar_lea.vmem %s257, 128
        %v1521 = vld [vmem:[%s1520] sm:$0xf]
        %v1522 = vld [vmem:[%s1520 + $0x4] sm:$0xf]
        %v1523 = vld [vmem:[%s1520 + $0x8] sm:$0xf]
        %v1524 = vld [vmem:[%s1520 + $0xc] sm:$0xf]
        %v1525 = vld [vmem:[%s1520 + $0x10] sm:$0xf]
        %v1526 = vld [vmem:[%s1520 + $0x14] sm:$0xf]
        %v1527 = vld [vmem:[%s1520 + $0x18] sm:$0xf]
        %v1528 = vld [vmem:[%s1520 + $0x1c] sm:$0xf]
        %v1529 = vld [vmem:[%s1520 + $0x20] sm:$0xf]
        %v1530 = vld [vmem:[%s1520 + $0x24] sm:$0xf]
        %v1531 = vld [vmem:[%s1520 + $0x28] sm:$0xf]
        %v1532 = vld [vmem:[%s1520 + $0x2c] sm:$0xf]
        %v1533 = vld [vmem:[%s1520 + $0x30] sm:$0xf]
        %v1534 = vld [vmem:[%s1520 + $0x34] sm:$0xf]
        %v1535 = vld [vmem:[%s1520 + $0x38] sm:$0xf]
        %v1536 = vld [vmem:[%s1520 + $0x3c] sm:$0xf]
        %vm1585 = vcmask 1042432
        %vm1586 = vcmask 1046532
        %vm1587 = vmor %vm1585, %vm1586
        %v1588 = vrot.slane %v1472, 5
        %v1589 = vrot.slane %v1588, 4
        %v1590 = vrot.slane %v1473, 5
        %v1591 = vsel %vm1587, %v1589, %v1590
        %v1592 = vrot.slane %v1590, 4
        %v1593 = vrot.slane %v1474, 5
        %v1594 = vsel %vm1587, %v1592, %v1593
        %v1595 = vrot.slane %v1475, 5
        %v1596 = vrot.slane %v1595, 4
        %v1597 = vrot.slane %v1476, 5
        %v1598 = vsel %vm1587, %v1596, %v1597
        %v1599 = vrot.slane %v1597, 4
        %v1600 = vrot.slane %v1477, 5
        %v1601 = vsel %vm1587, %v1599, %v1600
        %v1602 = vrot.slane %v1478, 5
        %v1603 = vrot.slane %v1602, 4
        %v1604 = vrot.slane %v1479, 5
        %v1605 = vsel %vm1587, %v1603, %v1604
        %v1606 = vrot.slane %v1604, 4
        %v1607 = vrot.slane %v1480, 5
        %v1608 = vsel %vm1587, %v1606, %v1607
        %v1609 = vrot.slane %v1481, 5
        %v1610 = vrot.slane %v1609, 4
        %v1611 = vrot.slane %v1482, 5
        %v1612 = vsel %vm1587, %v1610, %v1611
        %v1613 = vrot.slane %v1611, 4
        %v1614 = vrot.slane %v1483, 5
        %v1615 = vsel %vm1587, %v1613, %v1614
        %v1616 = vrot.slane %v1484, 5
        %v1617 = vrot.slane %v1616, 4
        %v1618 = vrot.slane %v1485, 5
        %v1619 = vsel %vm1587, %v1617, %v1618
        %v1620 = vrot.slane %v1618, 4
        %v1621 = vrot.slane %v1486, 5
        %v1622 = vsel %vm1587, %v1620, %v1621
        %v1623 = vrot.slane %v1487, 5
        %v1624 = vrot.slane %v1623, 4
        %v1625 = vrot.slane %v1488, 5
        %v1626 = vsel %vm1587, %v1624, %v1625
        %v1627 = vrot.slane %v1625, 4
        %v1628 = vrot.slane %v1489, 5
        %v1629 = vsel %vm1587, %v1627, %v1628
        %v1630 = vrot.slane %v1490, 5
        %v1631 = vrot.slane %v1630, 4
        %v1632 = vrot.slane %v1491, 5
        %v1633 = vsel %vm1587, %v1631, %v1632
        %v1634 = vrot.slane %v1632, 4
        %v1635 = vrot.slane %v1492, 5
        %v1636 = vsel %vm1587, %v1634, %v1635
        %v1637 = vrot.slane %v1493, 5
        %v1638 = vrot.slane %v1637, 4
        %v1639 = vrot.slane %v1494, 5
        %v1640 = vsel %vm1587, %v1638, %v1639
        %v1641 = vrot.slane %v1639, 4
        %v1642 = vrot.slane %v1495, 5
        %v1643 = vsel %vm1587, %v1641, %v1642
        %v1644 = vrot.slane %v1496, 5
        %v1645 = vrot.slane %v1644, 4
        %v1646 = vrot.slane %v1497, 5
        %v1647 = vsel %vm1587, %v1645, %v1646
        %v1648 = vrot.slane %v1646, 4
        %v1649 = vrot.slane %v1498, 5
        %v1650 = vsel %vm1587, %v1648, %v1649
        %v1651 = vrot.slane %v1499, 5
        %v1652 = vrot.slane %v1651, 4
        %v1653 = vrot.slane %v1500, 5
        %v1654 = vsel %vm1587, %v1652, %v1653
        %v1655 = vrot.slane %v1653, 4
        %v1656 = vrot.slane %v1501, 5
        %v1657 = vsel %vm1587, %v1655, %v1656
        %v1658 = vrot.slane %v1502, 5
        %v1659 = vrot.slane %v1658, 4
        %v1660 = vrot.slane %v1503, 5
        %v1661 = vsel %vm1587, %v1659, %v1660
        %v1662 = vrot.slane %v1660, 4
        %v1663 = vrot.slane %v1504, 5
        %v1664 = vsel %vm1587, %v1662, %v1663
        %v1665 = vrot.slane %v1505, 5
        %v1666 = vrot.slane %v1665, 4
        %v1667 = vrot.slane %v1506, 5
        %v1668 = vsel %vm1587, %v1666, %v1667
        %v1669 = vrot.slane %v1667, 4
        %v1670 = vrot.slane %v1507, 5
        %v1671 = vsel %vm1587, %v1669, %v1670
        %v1672 = vrot.slane %v1508, 5
        %v1673 = vrot.slane %v1672, 4
        %v1674 = vrot.slane %v1509, 5
        %v1675 = vsel %vm1587, %v1673, %v1674
        %v1676 = vrot.slane %v1674, 4
        %v1677 = vrot.slane %v1510, 5
        %v1678 = vsel %vm1587, %v1676, %v1677
        %v1679 = vrot.slane %v1511, 5
        %v1680 = vrot.slane %v1679, 4
        %v1681 = vrot.slane %v1512, 5
        %v1682 = vsel %vm1587, %v1680, %v1681
        %v1683 = vrot.slane %v1681, 4
        %v1684 = vrot.slane %v1513, 5
        %v1685 = vsel %vm1587, %v1683, %v1684
        %v1686 = vrot.slane %v1514, 5
        %v1687 = vrot.slane %v1686, 4
        %v1688 = vrot.slane %v1515, 5
        %v1689 = vsel %vm1587, %v1687, %v1688
        %v1690 = vrot.slane %v1688, 4
        %v1691 = vrot.slane %v1516, 5
        %v1692 = vsel %vm1587, %v1690, %v1691
        %v1693 = vrot.slane %v1517, 5
        %v1694 = vrot.slane %v1693, 4
        %v1695 = vrot.slane %v1518, 5
        %v1696 = vsel %vm1587, %v1694, %v1695
        %v1697 = vrot.slane %v1695, 4
        %v1698 = vrot.slane %v1519, 5
        %v1699 = vsel %vm1587, %v1697, %v1698
        %v1700 = vunpack.c.l.b16 %v1591
        %v1701 = vunpack.c.l.b16 %v1594
        %v1702 = vunpack.c.l.b16 %v1598
        %v1703 = vunpack.c.l.b16 %v1601
        %v1704 = vunpack.c.l.b16 %v1605
        %v1705 = vunpack.c.l.b16 %v1608
        %v1706 = vunpack.c.l.b16 %v1612
        %v1707 = vunpack.c.l.b16 %v1615
        %v1708 = vunpack.c.l.b16 %v1619
        %v1709 = vunpack.c.l.b16 %v1622
        %v1710 = vunpack.c.l.b16 %v1626
        %v1711 = vunpack.c.l.b16 %v1629
        %v1712 = vunpack.c.l.b16 %v1633
        %v1713 = vunpack.c.l.b16 %v1636
        %v1714 = vunpack.c.l.b16 %v1640
        %v1715 = vunpack.c.l.b16 %v1643
        %v1716 = vunpack.c.l.b16 %v1647
        %v1717 = vunpack.c.l.b16 %v1650
        %v1718 = vunpack.c.l.b16 %v1654
        %v1719 = vunpack.c.l.b16 %v1657
        %v1720 = vunpack.c.l.b16 %v1661
        %v1721 = vunpack.c.l.b16 %v1664
        %v1722 = vunpack.c.l.b16 %v1668
        %v1723 = vunpack.c.l.b16 %v1671
        %v1724 = vunpack.c.l.b16 %v1675
        %v1725 = vunpack.c.l.b16 %v1678
        %v1726 = vunpack.c.l.b16 %v1682
        %v1727 = vunpack.c.l.b16 %v1685
        %v1728 = vunpack.c.l.b16 %v1689
        %v1729 = vunpack.c.l.b16 %v1692
        %v1730 = vunpack.c.l.b16 %v1696
        %v1731 = vunpack.c.l.b16 %v1699
        %v1732 = vpack.c.b16 %v1701, %v1700
        %v1733 = vpack.c.b16 %v1703, %v1702
        %v1734 = vpack.c.b16 %v1705, %v1704
        %v1735 = vpack.c.b16 %v1707, %v1706
        %v1736 = vpack.c.b16 %v1709, %v1708
        %v1737 = vpack.c.b16 %v1711, %v1710
        %v1738 = vpack.c.b16 %v1713, %v1712
        %v1739 = vpack.c.b16 %v1715, %v1714
        %v1740 = vpack.c.b16 %v1717, %v1716
        %v1741 = vpack.c.b16 %v1719, %v1718
        %v1742 = vpack.c.b16 %v1721, %v1720
        %v1743 = vpack.c.b16 %v1723, %v1722
        %v1744 = vpack.c.b16 %v1725, %v1724
        %v1745 = vpack.c.b16 %v1727, %v1726
        %v1746 = vpack.c.b16 %v1729, %v1728
        %v1747 = vpack.c.b16 %v1731, %v1730
        %v1780 = vunpack.c.l.b16 %v1521
        %v1781 = vunpack.c.l.b16 %v1522
        %v1782 = vunpack.c.l.b16 %v1523
        %v1783 = vunpack.c.l.b16 %v1524
        %v1784 = vunpack.c.l.b16 %v1525
        %v1785 = vunpack.c.l.b16 %v1526
        %v1786 = vunpack.c.l.b16 %v1527
        %v1787 = vunpack.c.l.b16 %v1528
        %v1788 = vunpack.c.l.b16 %v1529
        %v1789 = vunpack.c.l.b16 %v1530
        %v1790 = vunpack.c.l.b16 %v1531
        %v1791 = vunpack.c.l.b16 %v1532
        %v1792 = vunpack.c.l.b16 %v1533
        %v1793 = vunpack.c.l.b16 %v1534
        %v1794 = vunpack.c.l.b16 %v1535
        %v1795 = vunpack.c.l.b16 %v1536
        %v1796 = vpack.c.b16 %v1781, %v1780
        %v1797 = vpack.c.b16 %v1783, %v1782
        %v1798 = vpack.c.b16 %v1785, %v1784
        %v1799 = vpack.c.b16 %v1787, %v1786
        %v1800 = vpack.c.b16 %v1789, %v1788
        %v1801 = vpack.c.b16 %v1791, %v1790
        %v1802 = vpack.c.b16 %v1793, %v1792
        %v1803 = vpack.c.b16 %v1795, %v1794
        %1812 = vmatprep.subr.bf16.mxu0 0
        %1813 = vmatpush1.bf16.msra.mxu0 %v1803
        %1814 = vmatprep.subr.bf16.mxu0 0
        %1815 = vmatpush1.bf16.msra.mxu0 %v1802
        %1816 = vmatprep.subr.bf16.mxu0 0
        %1817 = vmatpush1.bf16.msra.mxu0 %v1801
        %1818 = vmatprep.subr.bf16.mxu0 0
        %1819 = vmatpush1.bf16.msra.mxu0 %v1800
        %1820 = vmatprep.subr.bf16.mxu0 0
        %1821 = vmatpush1.bf16.msra.mxu0 %v1799
        %1822 = vmatprep.subr.bf16.mxu0 0
        %1823 = vmatpush1.bf16.msra.mxu0 %v1798
        %1824 = vmatprep.subr.bf16.mxu0 0
        %1825 = vmatpush1.bf16.msra.mxu0 %v1797
        %1826 = vmatprep.subr.bf16.mxu0 0
        %1827 = vmatpush1.bf16.msra.mxu0 %v1796
        %1828 = vmatprep.subr.bf16.mxu0 0
        %1829 = vmatpush2.bf16.msra.mxu0 0
        %1830 = vmatprep.subr.bf16.mxu0 0
        %1831 = vmatpush2.bf16.msra.mxu0 0
        %1832 = vmatprep.subr.bf16.mxu0 0
        %1833 = vmatpush2.bf16.msra.mxu0 0
        %1834 = vmatprep.subr.bf16.mxu0 0
        %1835 = vmatpush2.bf16.msra.mxu0 0
        %1836 = vmatprep.subr.bf16.mxu0 0
        %1837 = vmatpush2.bf16.msra.mxu0 0
        %1838 = vmatprep.subr.bf16.mxu0 0
        %1839 = vmatpush2.bf16.msra.mxu0 0
        %1840 = vmatprep.subr.bf16.mxu0 0
        %1841 = vmatpush2.bf16.msra.mxu0 0
        %1842 = vmatprep.subr.bf16.mxu0 0
        %1843 = vmatpush2.bf16.msra.mxu0 0
        %1844 = vmatprep.mubr.bf16.mxu0 0
        %1845 = vmatmul.mubr.bf16.gmra.mxu0 %v1732
        %v1846 = vpop.f32.mrf.mxu0
        %v1847 = vadd.f32 0.0, %v1846
        %v1848 = vpop.f32.mrf.mxu0
        %v1849 = vpop.f32.mrf.mxu0
        %v1850 = vadd.f32 0.0, %v1849
        %v1851 = vpop.f32.mrf.mxu0
        %1852 = vmatprep.mubr.bf16.mxu0 0
        %1853 = vmatmul.mubr.bf16.gmra.mxu0 %v1733
        %v1854 = vpop.f32.mrf.mxu0
        %v1855 = vadd.f32 0.0, %v1854
        %v1856 = vpop.f32.mrf.mxu0
        %v1857 = vpop.f32.mrf.mxu0
        %v1858 = vadd.f32 0.0, %v1857
        %v1859 = vpop.f32.mrf.mxu0
        %1860 = vmatprep.mubr.bf16.mxu0 0
        %1861 = vmatmul.mubr.bf16.gmra.mxu0 %v1734
        %v1862 = vpop.f32.mrf.mxu0
        %v1863 = vadd.f32 0.0, %v1862
        %v1864 = vpop.f32.mrf.mxu0
        %v1865 = vpop.f32.mrf.mxu0
        %v1866 = vadd.f32 0.0, %v1865
        %v1867 = vpop.f32.mrf.mxu0
        %1868 = vmatprep.mubr.bf16.mxu0 0
        %1869 = vmatmul.mubr.bf16.gmra.mxu0 %v1735
        %v1870 = vpop.f32.mrf.mxu0
        %v1871 = vadd.f32 0.0, %v1870
        %v1872 = vpop.f32.mrf.mxu0
        %v1873 = vpop.f32.mrf.mxu0
        %v1874 = vadd.f32 0.0, %v1873
        %v1875 = vpop.f32.mrf.mxu0
        %1876 = vmatprep.mubr.bf16.mxu0 0
        %1877 = vmatmul.mubr.bf16.gmra.mxu0 %v1736
        %v1878 = vpop.f32.mrf.mxu0
        %v1879 = vadd.f32 0.0, %v1878
        %v1880 = vpop.f32.mrf.mxu0
        %v1881 = vpop.f32.mrf.mxu0
        %v1882 = vadd.f32 0.0, %v1881
        %v1883 = vpop.f32.mrf.mxu0
        %1884 = vmatprep.mubr.bf16.mxu0 0
        %1885 = vmatmul.mubr.bf16.gmra.mxu0 %v1737
        %v1886 = vpop.f32.mrf.mxu0
        %v1887 = vadd.f32 0.0, %v1886
        %v1888 = vpop.f32.mrf.mxu0
        %v1889 = vpop.f32.mrf.mxu0
        %v1890 = vadd.f32 0.0, %v1889
        %v1891 = vpop.f32.mrf.mxu0
        %1892 = vmatprep.mubr.bf16.mxu0 0
        %1893 = vmatmul.mubr.bf16.gmra.mxu0 %v1738
        %v1894 = vpop.f32.mrf.mxu0
        %v1895 = vadd.f32 0.0, %v1894
        %v1896 = vpop.f32.mrf.mxu0
        %v1897 = vpop.f32.mrf.mxu0
        %v1898 = vadd.f32 0.0, %v1897
        %v1899 = vpop.f32.mrf.mxu0
        %1900 = vmatprep.mubr.bf16.mxu0 0
        %1901 = vmatmul.mubr.bf16.gmra.mxu0 %v1739
        %v1902 = vpop.f32.mrf.mxu0
        %v1903 = vadd.f32 0.0, %v1902
        %v1904 = vpop.f32.mrf.mxu0
        %v1905 = vpop.f32.mrf.mxu0
        %v1906 = vadd.f32 0.0, %v1905
        %v1907 = vpop.f32.mrf.mxu0
        %1908 = vmatprep.mubr.bf16.mxu0 0
        %1909 = vmatmul.mubr.bf16.gmra.mxu0 %v1740
        %v1910 = vpop.f32.mrf.mxu0
        %v1911 = vadd.f32 0.0, %v1910
        %v1912 = vpop.f32.mrf.mxu0
        %v1913 = vpop.f32.mrf.mxu0
        %v1914 = vadd.f32 0.0, %v1913
        %v1915 = vpop.f32.mrf.mxu0
        %1916 = vmatprep.mubr.bf16.mxu0 0
        %1917 = vmatmul.mubr.bf16.gmra.mxu0 %v1741
        %v1918 = vpop.f32.mrf.mxu0
        %v1919 = vadd.f32 0.0, %v1918
        %v1920 = vpop.f32.mrf.mxu0
        %v1921 = vpop.f32.mrf.mxu0
        %v1922 = vadd.f32 0.0, %v1921
        %v1923 = vpop.f32.mrf.mxu0
        %1924 = vmatprep.mubr.bf16.mxu0 0
        %1925 = vmatmul.mubr.bf16.gmra.mxu0 %v1742
        %v1926 = vpop.f32.mrf.mxu0
        %v1927 = vadd.f32 0.0, %v1926
        %v1928 = vpop.f32.mrf.mxu0
        %v1929 = vpop.f32.mrf.mxu0
        %v1930 = vadd.f32 0.0, %v1929
        %v1931 = vpop.f32.mrf.mxu0
        %1932 = vmatprep.mubr.bf16.mxu0 0
        %1933 = vmatmul.mubr.bf16.gmra.mxu0 %v1743
        %v1934 = vpop.f32.mrf.mxu0
        %v1935 = vadd.f32 0.0, %v1934
        %v1936 = vpop.f32.mrf.mxu0
        %v1937 = vpop.f32.mrf.mxu0
        %v1938 = vadd.f32 0.0, %v1937
        %v1939 = vpop.f32.mrf.mxu0
        %1940 = vmatprep.mubr.bf16.mxu0 0
        %1941 = vmatmul.mubr.bf16.gmra.mxu0 %v1744
        %v1942 = vpop.f32.mrf.mxu0
        %v1943 = vadd.f32 0.0, %v1942
        %v1944 = vpop.f32.mrf.mxu0
        %v1945 = vpop.f32.mrf.mxu0
        %v1946 = vadd.f32 0.0, %v1945
        %v1947 = vpop.f32.mrf.mxu0
        %1948 = vmatprep.mubr.bf16.mxu0 0
        %1949 = vmatmul.mubr.bf16.gmra.mxu0 %v1745
        %v1950 = vpop.f32.mrf.mxu0
        %v1951 = vadd.f32 0.0, %v1950
        %v1952 = vpop.f32.mrf.mxu0
        %v1953 = vpop.f32.mrf.mxu0
        %v1954 = vadd.f32 0.0, %v1953
        %v1955 = vpop.f32.mrf.mxu0
        %1956 = vmatprep.mubr.bf16.mxu0 0
        %1957 = vmatmul.mubr.bf16.gmra.mxu0 %v1746
        %v1958 = vpop.f32.mrf.mxu0
        %v1959 = vadd.f32 0.0, %v1958
        %v1960 = vpop.f32.mrf.mxu0
        %v1961 = vpop.f32.mrf.mxu0
        %v1962 = vadd.f32 0.0, %v1961
        %v1963 = vpop.f32.mrf.mxu0
        %1964 = vmatprep.mubr.bf16.mxu0 0
        %1965 = vmatmul.mubr.bf16.gmra.mxu0 %v1747
        %v1966 = vpop.f32.mrf.mxu0
        %v1967 = vadd.f32 0.0, %v1966
        %v1968 = vpop.f32.mrf.mxu0
        %v1969 = vpop.f32.mrf.mxu0
        %v1970 = vadd.f32 0.0, %v1969
        %v1971 = vpop.f32.mrf.mxu0
        %1972 = vdwg.mxu0
        %v1973 = vld [vmem:[%s248] sm:$0xff]
        %v1974 = vld [vmem:[%s248 + $0x8] sm:$0xff]
        %v1975 = vld [vmem:[%s248 + $0x10] sm:$0xff]
        %v1976 = vld [vmem:[%s248 + $0x18] sm:$0xff]
        %v1977 = vld [vmem:[%s248 + $0x20] sm:$0xff]
        %v1978 = vld [vmem:[%s248 + $0x28] sm:$0xff]
        %v1979 = vld [vmem:[%s248 + $0x30] sm:$0xff]
        %v1980 = vld [vmem:[%s248 + $0x38] sm:$0xff]
        %v1981 = vld [vmem:[%s248 + $0x40] sm:$0xff]
        %v1982 = vld [vmem:[%s248 + $0x48] sm:$0xff]
        %v1983 = vld [vmem:[%s248 + $0x50] sm:$0xff]
        %v1984 = vld [vmem:[%s248 + $0x58] sm:$0xff]
        %v1985 = vld [vmem:[%s248 + $0x60] sm:$0xff]
        %v1986 = vld [vmem:[%s248 + $0x68] sm:$0xff]
        %v1987 = vld [vmem:[%s248 + $0x70] sm:$0xff]
        %v1988 = vld [vmem:[%s248 + $0x78] sm:$0xff]
        %v1989 = vld [vmem:[%s248 + $0x80] sm:$0xff]
        %v1990 = vld [vmem:[%s248 + $0x88] sm:$0xff]
        %v1991 = vld [vmem:[%s248 + $0x90] sm:$0xff]
        %v1992 = vld [vmem:[%s248 + $0x98] sm:$0xff]
        %v1993 = vld [vmem:[%s248 + $0xa0] sm:$0xff]
        %v1994 = vld [vmem:[%s248 + $0xa8] sm:$0xff]
        %v1995 = vld [vmem:[%s248 + $0xb0] sm:$0xff]
        %v1996 = vld [vmem:[%s248 + $0xb8] sm:$0xff]
        %v1997 = vld [vmem:[%s248 + $0xc0] sm:$0xff]
        %v1998 = vld [vmem:[%s248 + $0xc8] sm:$0xff]
        %v1999 = vld [vmem:[%s248 + $0xd0] sm:$0xff]
        %v2000 = vld [vmem:[%s248 + $0xd8] sm:$0xff]
        %v2001 = vld [vmem:[%s248 + $0xe0] sm:$0xff]
        %v2002 = vld [vmem:[%s248 + $0xe8] sm:$0xff]
        %v2003 = vld [vmem:[%s248 + $0xf0] sm:$0xff]
        %v2004 = vld [vmem:[%s248 + $0xf8] sm:$0xff]
        %v2005 = vadd.f32 %v1973, %v1847
        %v2006 = vadd.f32 %v1974, %v1850
        %v2007 = vadd.f32 %v1975, %v1855
        %v2008 = vadd.f32 %v1976, %v1858
        %v2009 = vadd.f32 %v1977, %v1863
        %v2010 = vadd.f32 %v1978, %v1866
        %v2011 = vadd.f32 %v1979, %v1871
        %v2012 = vadd.f32 %v1980, %v1874
        %v2013 = vadd.f32 %v1981, %v1879
        %v2014 = vadd.f32 %v1982, %v1882
        %v2015 = vadd.f32 %v1983, %v1887
        %v2016 = vadd.f32 %v1984, %v1890
        %v2017 = vadd.f32 %v1985, %v1895
        %v2018 = vadd.f32 %v1986, %v1898
        %v2019 = vadd.f32 %v1987, %v1903
        %v2020 = vadd.f32 %v1988, %v1906
        %v2021 = vadd.f32 %v1989, %v1911
        %v2022 = vadd.f32 %v1990, %v1914
        %v2023 = vadd.f32 %v1991, %v1919
        %v2024 = vadd.f32 %v1992, %v1922
        %v2025 = vadd.f32 %v1993, %v1927
        %v2026 = vadd.f32 %v1994, %v1930
        %v2027 = vadd.f32 %v1995, %v1935
        %v2028 = vadd.f32 %v1996, %v1938
        %v2029 = vadd.f32 %v1997, %v1943
        %v2030 = vadd.f32 %v1998, %v1946
        %v2031 = vadd.f32 %v1999, %v1951
        %v2032 = vadd.f32 %v2000, %v1954
        %v2033 = vadd.f32 %v2001, %v1959
        %v2034 = vadd.f32 %v2002, %v1962
        %v2035 = vadd.f32 %v2003, %v1967
        %v2036 = vadd.f32 %v2004, %v1970
        %2037 = vst [vmem:[%s248] sm:$0xff] %v2005
        %2038 = vst [vmem:[%s248 + $0x8] sm:$0xff] %v2006
        %2039 = vst [vmem:[%s248 + $0x10] sm:$0xff] %v2007
        %2040 = vst [vmem:[%s248 + $0x18] sm:$0xff] %v2008
        %2041 = vst [vmem:[%s248 + $0x20] sm:$0xff] %v2009
        %2042 = vst [vmem:[%s248 + $0x28] sm:$0xff] %v2010
        %2043 = vst [vmem:[%s248 + $0x30] sm:$0xff] %v2011
        %2044 = vst [vmem:[%s248 + $0x38] sm:$0xff] %v2012
        %2045 = vst [vmem:[%s248 + $0x40] sm:$0xff] %v2013
        %2046 = vst [vmem:[%s248 + $0x48] sm:$0xff] %v2014
        %2047 = vst [vmem:[%s248 + $0x50] sm:$0xff] %v2015
        %2048 = vst [vmem:[%s248 + $0x58] sm:$0xff] %v2016
        %2049 = vst [vmem:[%s248 + $0x60] sm:$0xff] %v2017
        %2050 = vst [vmem:[%s248 + $0x68] sm:$0xff] %v2018
        %2051 = vst [vmem:[%s248 + $0x70] sm:$0xff] %v2019
        %2052 = vst [vmem:[%s248 + $0x78] sm:$0xff] %v2020
        %2053 = vst [vmem:[%s248 + $0x80] sm:$0xff] %v2021
        %2054 = vst [vmem:[%s248 + $0x88] sm:$0xff] %v2022
        %2055 = vst [vmem:[%s248 + $0x90] sm:$0xff] %v2023
        %2056 = vst [vmem:[%s248 + $0x98] sm:$0xff] %v2024
        %2057 = vst [vmem:[%s248 + $0xa0] sm:$0xff] %v2025
        %2058 = vst [vmem:[%s248 + $0xa8] sm:$0xff] %v2026
        %2059 = vst [vmem:[%s248 + $0xb0] sm:$0xff] %v2027
        %2060 = vst [vmem:[%s248 + $0xb8] sm:$0xff] %v2028
        %2061 = vst [vmem:[%s248 + $0xc0] sm:$0xff] %v2029
        %2062 = vst [vmem:[%s248 + $0xc8] sm:$0xff] %v2030
        %2063 = vst [vmem:[%s248 + $0xd0] sm:$0xff] %v2031
        %2064 = vst [vmem:[%s248 + $0xd8] sm:$0xff] %v2032
        %2065 = vst [vmem:[%s248 + $0xe0] sm:$0xff] %v2033
        %2066 = vst [vmem:[%s248 + $0xe8] sm:$0xff] %v2034
        %2067 = vst [vmem:[%s248 + $0xf0] sm:$0xff] %v2035
        %2068 = vst [vmem:[%s248 + $0xf8] sm:$0xff] %v2036
        %s2069 = scalar_lea.vmem %s253, 12
        %v2070 = vld [vmem:[%s2069] sm:$0xf]
        %v2071 = vld [vmem:[%s2069 + $0x4] sm:$0xf]
        %v2072 = vld [vmem:[%s2069 + $0xc] sm:$0xf]
        %v2073 = vld [vmem:[%s2069 + $0x10] sm:$0xf]
        %v2074 = vld [vmem:[%s2069 + $0x18] sm:$0xf]
        %v2075 = vld [vmem:[%s2069 + $0x1c] sm:$0xf]
        %v2076 = vld [vmem:[%s2069 + $0x24] sm:$0xf]
        %v2077 = vld [vmem:[%s2069 + $0x28] sm:$0xf]
        %v2078 = vld [vmem:[%s2069 + $0x30] sm:$0xf]
        %v2079 = vld [vmem:[%s2069 + $0x34] sm:$0xf]
        %v2080 = vld [vmem:[%s2069 + $0x3c] sm:$0xf]
        %v2081 = vld [vmem:[%s2069 + $0x40] sm:$0xf]
        %v2082 = vld [vmem:[%s2069 + $0x48] sm:$0xf]
        %v2083 = vld [vmem:[%s2069 + $0x4c] sm:$0xf]
        %v2084 = vld [vmem:[%s2069 + $0x54] sm:$0xf]
        %v2085 = vld [vmem:[%s2069 + $0x58] sm:$0xf]
        %v2086 = vld [vmem:[%s2069 + $0x60] sm:$0xf]
        %v2087 = vld [vmem:[%s2069 + $0x64] sm:$0xf]
        %v2088 = vld [vmem:[%s2069 + $0x6c] sm:$0xf]
        %v2089 = vld [vmem:[%s2069 + $0x70] sm:$0xf]
        %v2090 = vld [vmem:[%s2069 + $0x78] sm:$0xf]
        %v2091 = vld [vmem:[%s2069 + $0x7c] sm:$0xf]
        %v2092 = vld [vmem:[%s2069 + $0x84] sm:$0xf]
        %v2093 = vld [vmem:[%s2069 + $0x88] sm:$0xf]
        %v2094 = vld [vmem:[%s2069 + $0x90] sm:$0xf]
        %v2095 = vld [vmem:[%s2069 + $0x94] sm:$0xf]
        %v2096 = vld [vmem:[%s2069 + $0x9c] sm:$0xf]
        %v2097 = vld [vmem:[%s2069 + $0xa0] sm:$0xf]
        %v2098 = vld [vmem:[%s2069 + $0xa8] sm:$0xf]
        %v2099 = vld [vmem:[%s2069 + $0xac] sm:$0xf]
        %v2100 = vld [vmem:[%s2069 + $0xb4] sm:$0xf]
        %v2101 = vld [vmem:[%s2069 + $0xb8] sm:$0xf]
        %s2102 = scalar_lea.vmem %s257, 192
        %v2103 = vld [vmem:[%s2102] sm:$0xf]
        %v2104 = vld [vmem:[%s2102 + $0x4] sm:$0xf]
        %v2105 = vld [vmem:[%s2102 + $0x8] sm:$0xf]
        %v2106 = vld [vmem:[%s2102 + $0xc] sm:$0xf]
        %v2107 = vld [vmem:[%s2102 + $0x10] sm:$0xf]
        %v2108 = vld [vmem:[%s2102 + $0x14] sm:$0xf]
        %v2109 = vld [vmem:[%s2102 + $0x18] sm:$0xf]
        %v2110 = vld [vmem:[%s2102 + $0x1c] sm:$0xf]
        %v2111 = vld [vmem:[%s2102 + $0x20] sm:$0xf]
        %v2112 = vld [vmem:[%s2102 + $0x24] sm:$0xf]
        %v2113 = vld [vmem:[%s2102 + $0x28] sm:$0xf]
        %v2114 = vld [vmem:[%s2102 + $0x2c] sm:$0xf]
        %v2115 = vld [vmem:[%s2102 + $0x30] sm:$0xf]
        %v2116 = vld [vmem:[%s2102 + $0x34] sm:$0xf]
        %v2117 = vld [vmem:[%s2102 + $0x38] sm:$0xf]
        %v2118 = vld [vmem:[%s2102 + $0x3c] sm:$0xf]
        %v2151 = vunpack.c.l.b16 %v2070
        %v2152 = vunpack.c.l.b16 %v2071
        %v2153 = vunpack.c.l.b16 %v2072
        %v2154 = vunpack.c.l.b16 %v2073
        %v2155 = vunpack.c.l.b16 %v2074
        %v2156 = vunpack.c.l.b16 %v2075
        %v2157 = vunpack.c.l.b16 %v2076
        %v2158 = vunpack.c.l.b16 %v2077
        %v2159 = vunpack.c.l.b16 %v2078
        %v2160 = vunpack.c.l.b16 %v2079
        %v2161 = vunpack.c.l.b16 %v2080
        %v2162 = vunpack.c.l.b16 %v2081
        %v2163 = vunpack.c.l.b16 %v2082
        %v2164 = vunpack.c.l.b16 %v2083
        %v2165 = vunpack.c.l.b16 %v2084
        %v2166 = vunpack.c.l.b16 %v2085
        %v2167 = vunpack.c.l.b16 %v2086
        %v2168 = vunpack.c.l.b16 %v2087
        %v2169 = vunpack.c.l.b16 %v2088
        %v2170 = vunpack.c.l.b16 %v2089
        %v2171 = vunpack.c.l.b16 %v2090
        %v2172 = vunpack.c.l.b16 %v2091
        %v2173 = vunpack.c.l.b16 %v2092
        %v2174 = vunpack.c.l.b16 %v2093
        %v2175 = vunpack.c.l.b16 %v2094
        %v2176 = vunpack.c.l.b16 %v2095
        %v2177 = vunpack.c.l.b16 %v2096
        %v2178 = vunpack.c.l.b16 %v2097
        %v2179 = vunpack.c.l.b16 %v2098
        %v2180 = vunpack.c.l.b16 %v2099
        %v2181 = vunpack.c.l.b16 %v2100
        %v2182 = vunpack.c.l.b16 %v2101
        %v2183 = vpack.c.b16 %v2152, %v2151
        %v2184 = vpack.c.b16 %v2154, %v2153
        %v2185 = vpack.c.b16 %v2156, %v2155
        %v2186 = vpack.c.b16 %v2158, %v2157
        %v2187 = vpack.c.b16 %v2160, %v2159
        %v2188 = vpack.c.b16 %v2162, %v2161
        %v2189 = vpack.c.b16 %v2164, %v2163
        %v2190 = vpack.c.b16 %v2166, %v2165
        %v2191 = vpack.c.b16 %v2168, %v2167
        %v2192 = vpack.c.b16 %v2170, %v2169
        %v2193 = vpack.c.b16 %v2172, %v2171
        %v2194 = vpack.c.b16 %v2174, %v2173
        %v2195 = vpack.c.b16 %v2176, %v2175
        %v2196 = vpack.c.b16 %v2178, %v2177
        %v2197 = vpack.c.b16 %v2180, %v2179
        %v2198 = vpack.c.b16 %v2182, %v2181
        %v2231 = vunpack.c.l.b16 %v2103
        %v2232 = vunpack.c.l.b16 %v2104
        %v2233 = vunpack.c.l.b16 %v2105
        %v2234 = vunpack.c.l.b16 %v2106
        %v2235 = vunpack.c.l.b16 %v2107
        %v2236 = vunpack.c.l.b16 %v2108
        %v2237 = vunpack.c.l.b16 %v2109
        %v2238 = vunpack.c.l.b16 %v2110
        %v2239 = vunpack.c.l.b16 %v2111
        %v2240 = vunpack.c.l.b16 %v2112
        %v2241 = vunpack.c.l.b16 %v2113
        %v2242 = vunpack.c.l.b16 %v2114
        %v2243 = vunpack.c.l.b16 %v2115
        %v2244 = vunpack.c.l.b16 %v2116
        %v2245 = vunpack.c.l.b16 %v2117
        %v2246 = vunpack.c.l.b16 %v2118
        %v2247 = vpack.c.b16 %v2232, %v2231
        %v2248 = vpack.c.b16 %v2234, %v2233
        %v2249 = vpack.c.b16 %v2236, %v2235
        %v2250 = vpack.c.b16 %v2238, %v2237
        %v2251 = vpack.c.b16 %v2240, %v2239
        %v2252 = vpack.c.b16 %v2242, %v2241
        %v2253 = vpack.c.b16 %v2244, %v2243
        %v2254 = vpack.c.b16 %v2246, %v2245
        %2263 = vmatprep.subr.bf16.mxu0 0
        %2264 = vmatpush1.bf16.msra.mxu0 %v2254
        %2265 = vmatprep.subr.bf16.mxu0 0
        %2266 = vmatpush1.bf16.msra.mxu0 %v2253
        %2267 = vmatprep.subr.bf16.mxu0 0
        %2268 = vmatpush1.bf16.msra.mxu0 %v2252
        %2269 = vmatprep.subr.bf16.mxu0 0
        %2270 = vmatpush1.bf16.msra.mxu0 %v2251
        %2271 = vmatprep.subr.bf16.mxu0 0
        %2272 = vmatpush1.bf16.msra.mxu0 %v2250
        %2273 = vmatprep.subr.bf16.mxu0 0
        %2274 = vmatpush1.bf16.msra.mxu0 %v2249
        %2275 = vmatprep.subr.bf16.mxu0 0
        %2276 = vmatpush1.bf16.msra.mxu0 %v2248
        %2277 = vmatprep.subr.bf16.mxu0 0
        %2278 = vmatpush1.bf16.msra.mxu0 %v2247
        %2279 = vmatprep.subr.bf16.mxu0 0
        %2280 = vmatpush2.bf16.msra.mxu0 0
        %2281 = vmatprep.subr.bf16.mxu0 0
        %2282 = vmatpush2.bf16.msra.mxu0 0
        %2283 = vmatprep.subr.bf16.mxu0 0
        %2284 = vmatpush2.bf16.msra.mxu0 0
        %2285 = vmatprep.subr.bf16.mxu0 0
        %2286 = vmatpush2.bf16.msra.mxu0 0
        %2287 = vmatprep.subr.bf16.mxu0 0
        %2288 = vmatpush2.bf16.msra.mxu0 0
        %2289 = vmatprep.subr.bf16.mxu0 0
        %2290 = vmatpush2.bf16.msra.mxu0 0
        %2291 = vmatprep.subr.bf16.mxu0 0
        %2292 = vmatpush2.bf16.msra.mxu0 0
        %2293 = vmatprep.subr.bf16.mxu0 0
        %2294 = vmatpush2.bf16.msra.mxu0 0
        %2295 = vmatprep.mubr.bf16.mxu0 0
        %2296 = vmatmul.mubr.bf16.gmra.mxu0 %v2183
        %v2297 = vpop.f32.mrf.mxu0
        %v2298 = vadd.f32 0.0, %v2297
        %v2299 = vpop.f32.mrf.mxu0
        %v2300 = vpop.f32.mrf.mxu0
        %v2301 = vadd.f32 0.0, %v2300
        %v2302 = vpop.f32.mrf.mxu0
        %2303 = vmatprep.mubr.bf16.mxu0 0
        %2304 = vmatmul.mubr.bf16.gmra.mxu0 %v2184
        %v2305 = vpop.f32.mrf.mxu0
        %v2306 = vadd.f32 0.0, %v2305
        %v2307 = vpop.f32.mrf.mxu0
        %v2308 = vpop.f32.mrf.mxu0
        %v2309 = vadd.f32 0.0, %v2308
        %v2310 = vpop.f32.mrf.mxu0
        %2311 = vmatprep.mubr.bf16.mxu0 0
        %2312 = vmatmul.mubr.bf16.gmra.mxu0 %v2185
        %v2313 = vpop.f32.mrf.mxu0
        %v2314 = vadd.f32 0.0, %v2313
        %v2315 = vpop.f32.mrf.mxu0
        %v2316 = vpop.f32.mrf.mxu0
        %v2317 = vadd.f32 0.0, %v2316
        %v2318 = vpop.f32.mrf.mxu0
        %2319 = vmatprep.mubr.bf16.mxu0 0
        %2320 = vmatmul.mubr.bf16.gmra.mxu0 %v2186
        %v2321 = vpop.f32.mrf.mxu0
        %v2322 = vadd.f32 0.0, %v2321
        %v2323 = vpop.f32.mrf.mxu0
        %v2324 = vpop.f32.mrf.mxu0
        %v2325 = vadd.f32 0.0, %v2324
        %v2326 = vpop.f32.mrf.mxu0
        %2327 = vmatprep.mubr.bf16.mxu0 0
        %2328 = vmatmul.mubr.bf16.gmra.mxu0 %v2187
        %v2329 = vpop.f32.mrf.mxu0
        %v2330 = vadd.f32 0.0, %v2329
        %v2331 = vpop.f32.mrf.mxu0
        %v2332 = vpop.f32.mrf.mxu0
        %v2333 = vadd.f32 0.0, %v2332
        %v2334 = vpop.f32.mrf.mxu0
        %2335 = vmatprep.mubr.bf16.mxu0 0
        %2336 = vmatmul.mubr.bf16.gmra.mxu0 %v2188
        %v2337 = vpop.f32.mrf.mxu0
        %v2338 = vadd.f32 0.0, %v2337
        %v2339 = vpop.f32.mrf.mxu0
        %v2340 = vpop.f32.mrf.mxu0
        %v2341 = vadd.f32 0.0, %v2340
        %v2342 = vpop.f32.mrf.mxu0
        %2343 = vmatprep.mubr.bf16.mxu0 0
        %2344 = vmatmul.mubr.bf16.gmra.mxu0 %v2189
        %v2345 = vpop.f32.mrf.mxu0
        %v2346 = vadd.f32 0.0, %v2345
        %v2347 = vpop.f32.mrf.mxu0
        %v2348 = vpop.f32.mrf.mxu0
        %v2349 = vadd.f32 0.0, %v2348
        %v2350 = vpop.f32.mrf.mxu0
        %2351 = vmatprep.mubr.bf16.mxu0 0
        %2352 = vmatmul.mubr.bf16.gmra.mxu0 %v2190
        %v2353 = vpop.f32.mrf.mxu0
        %v2354 = vadd.f32 0.0, %v2353
        %v2355 = vpop.f32.mrf.mxu0
        %v2356 = vpop.f32.mrf.mxu0
        %v2357 = vadd.f32 0.0, %v2356
        %v2358 = vpop.f32.mrf.mxu0
        %2359 = vmatprep.mubr.bf16.mxu0 0
        %2360 = vmatmul.mubr.bf16.gmra.mxu0 %v2191
        %v2361 = vpop.f32.mrf.mxu0
        %v2362 = vadd.f32 0.0, %v2361
        %v2363 = vpop.f32.mrf.mxu0
        %v2364 = vpop.f32.mrf.mxu0
        %v2365 = vadd.f32 0.0, %v2364
        %v2366 = vpop.f32.mrf.mxu0
        %2367 = vmatprep.mubr.bf16.mxu0 0
        %2368 = vmatmul.mubr.bf16.gmra.mxu0 %v2192
        %v2369 = vpop.f32.mrf.mxu0
        %v2370 = vadd.f32 0.0, %v2369
        %v2371 = vpop.f32.mrf.mxu0
        %v2372 = vpop.f32.mrf.mxu0
        %v2373 = vadd.f32 0.0, %v2372
        %v2374 = vpop.f32.mrf.mxu0
        %2375 = vmatprep.mubr.bf16.mxu0 0
        %2376 = vmatmul.mubr.bf16.gmra.mxu0 %v2193
        %v2377 = vpop.f32.mrf.mxu0
        %v2378 = vadd.f32 0.0, %v2377
        %v2379 = vpop.f32.mrf.mxu0
        %v2380 = vpop.f32.mrf.mxu0
        %v2381 = vadd.f32 0.0, %v2380
        %v2382 = vpop.f32.mrf.mxu0
        %2383 = vmatprep.mubr.bf16.mxu0 0
        %2384 = vmatmul.mubr.bf16.gmra.mxu0 %v2194
        %v2385 = vpop.f32.mrf.mxu0
        %v2386 = vadd.f32 0.0, %v2385
        %v2387 = vpop.f32.mrf.mxu0
        %v2388 = vpop.f32.mrf.mxu0
        %v2389 = vadd.f32 0.0, %v2388
        %v2390 = vpop.f32.mrf.mxu0
        %2391 = vmatprep.mubr.bf16.mxu0 0
        %2392 = vmatmul.mubr.bf16.gmra.mxu0 %v2195
        %v2393 = vpop.f32.mrf.mxu0
        %v2394 = vadd.f32 0.0, %v2393
        %v2395 = vpop.f32.mrf.mxu0
        %v2396 = vpop.f32.mrf.mxu0
        %v2397 = vadd.f32 0.0, %v2396
        %v2398 = vpop.f32.mrf.mxu0
        %2399 = vmatprep.mubr.bf16.mxu0 0
        %2400 = vmatmul.mubr.bf16.gmra.mxu0 %v2196
        %v2401 = vpop.f32.mrf.mxu0
        %v2402 = vadd.f32 0.0, %v2401
        %v2403 = vpop.f32.mrf.mxu0
        %v2404 = vpop.f32.mrf.mxu0
        %v2405 = vadd.f32 0.0, %v2404
        %v2406 = vpop.f32.mrf.mxu0
        %2407 = vmatprep.mubr.bf16.mxu0 0
        %2408 = vmatmul.mubr.bf16.gmra.mxu0 %v2197
        %v2409 = vpop.f32.mrf.mxu0
        %v2410 = vadd.f32 0.0, %v2409
        %v2411 = vpop.f32.mrf.mxu0
        %v2412 = vpop.f32.mrf.mxu0
        %v2413 = vadd.f32 0.0, %v2412
        %v2414 = vpop.f32.mrf.mxu0
        %2415 = vmatprep.mubr.bf16.mxu0 0
        %2416 = vmatmul.mubr.bf16.gmra.mxu0 %v2198
        %v2417 = vpop.f32.mrf.mxu0
        %v2418 = vadd.f32 0.0, %v2417
        %v2419 = vpop.f32.mrf.mxu0
        %v2420 = vpop.f32.mrf.mxu0
        %v2421 = vadd.f32 0.0, %v2420
        %v2422 = vpop.f32.mrf.mxu0
        %2423 = vdwg.mxu0
        %v2424 = vld [vmem:[%s248] sm:$0xff]
        %v2425 = vld [vmem:[%s248 + $0x8] sm:$0xff]
        %v2426 = vld [vmem:[%s248 + $0x10] sm:$0xff]
        %v2427 = vld [vmem:[%s248 + $0x18] sm:$0xff]
        %v2428 = vld [vmem:[%s248 + $0x20] sm:$0xff]
        %v2429 = vld [vmem:[%s248 + $0x28] sm:$0xff]
        %v2430 = vld [vmem:[%s248 + $0x30] sm:$0xff]
        %v2431 = vld [vmem:[%s248 + $0x38] sm:$0xff]
        %v2432 = vld [vmem:[%s248 + $0x40] sm:$0xff]
        %v2433 = vld [vmem:[%s248 + $0x48] sm:$0xff]
        %v2434 = vld [vmem:[%s248 + $0x50] sm:$0xff]
        %v2435 = vld [vmem:[%s248 + $0x58] sm:$0xff]
        %v2436 = vld [vmem:[%s248 + $0x60] sm:$0xff]
        %v2437 = vld [vmem:[%s248 + $0x68] sm:$0xff]
        %v2438 = vld [vmem:[%s248 + $0x70] sm:$0xff]
        %v2439 = vld [vmem:[%s248 + $0x78] sm:$0xff]
        %v2440 = vld [vmem:[%s248 + $0x80] sm:$0xff]
        %v2441 = vld [vmem:[%s248 + $0x88] sm:$0xff]
        %v2442 = vld [vmem:[%s248 + $0x90] sm:$0xff]
        %v2443 = vld [vmem:[%s248 + $0x98] sm:$0xff]
        %v2444 = vld [vmem:[%s248 + $0xa0] sm:$0xff]
        %v2445 = vld [vmem:[%s248 + $0xa8] sm:$0xff]
        %v2446 = vld [vmem:[%s248 + $0xb0] sm:$0xff]
        %v2447 = vld [vmem:[%s248 + $0xb8] sm:$0xff]
        %v2448 = vld [vmem:[%s248 + $0xc0] sm:$0xff]
        %v2449 = vld [vmem:[%s248 + $0xc8] sm:$0xff]
        %v2450 = vld [vmem:[%s248 + $0xd0] sm:$0xff]
        %v2451 = vld [vmem:[%s248 + $0xd8] sm:$0xff]
        %v2452 = vld [vmem:[%s248 + $0xe0] sm:$0xff]
        %v2453 = vld [vmem:[%s248 + $0xe8] sm:$0xff]
        %v2454 = vld [vmem:[%s248 + $0xf0] sm:$0xff]
        %v2455 = vld [vmem:[%s248 + $0xf8] sm:$0xff]
        %v2456 = vadd.f32 %v2424, %v2298
        %v2457 = vadd.f32 %v2425, %v2301
        %v2458 = vadd.f32 %v2426, %v2306
        %v2459 = vadd.f32 %v2427, %v2309
        %v2460 = vadd.f32 %v2428, %v2314
        %v2461 = vadd.f32 %v2429, %v2317
        %v2462 = vadd.f32 %v2430, %v2322
        %v2463 = vadd.f32 %v2431, %v2325
        %v2464 = vadd.f32 %v2432, %v2330
        %v2465 = vadd.f32 %v2433, %v2333
        %v2466 = vadd.f32 %v2434, %v2338
        %v2467 = vadd.f32 %v2435, %v2341
        %v2468 = vadd.f32 %v2436, %v2346
        %v2469 = vadd.f32 %v2437, %v2349
        %v2470 = vadd.f32 %v2438, %v2354
        %v2471 = vadd.f32 %v2439, %v2357
        %v2472 = vadd.f32 %v2440, %v2362
        %v2473 = vadd.f32 %v2441, %v2365
        %v2474 = vadd.f32 %v2442, %v2370
        %v2475 = vadd.f32 %v2443, %v2373
        %v2476 = vadd.f32 %v2444, %v2378
        %v2477 = vadd.f32 %v2445, %v2381
        %v2478 = vadd.f32 %v2446, %v2386
        %v2479 = vadd.f32 %v2447, %v2389
        %v2480 = vadd.f32 %v2448, %v2394
        %v2481 = vadd.f32 %v2449, %v2397
        %v2482 = vadd.f32 %v2450, %v2402
        %v2483 = vadd.f32 %v2451, %v2405
        %v2484 = vadd.f32 %v2452, %v2410
        %v2485 = vadd.f32 %v2453, %v2413
        %v2486 = vadd.f32 %v2454, %v2418
        %v2487 = vadd.f32 %v2455, %v2421
        %2488 = vst [vmem:[%s248] sm:$0xff] %v2456
        %2489 = vst [vmem:[%s248 + $0x8] sm:$0xff] %v2457
        %2490 = vst [vmem:[%s248 + $0x10] sm:$0xff] %v2458
        %2491 = vst [vmem:[%s248 + $0x18] sm:$0xff] %v2459
        %2492 = vst [vmem:[%s248 + $0x20] sm:$0xff] %v2460
        %2493 = vst [vmem:[%s248 + $0x28] sm:$0xff] %v2461
        %2494 = vst [vmem:[%s248 + $0x30] sm:$0xff] %v2462
        %2495 = vst [vmem:[%s248 + $0x38] sm:$0xff] %v2463
        %2496 = vst [vmem:[%s248 + $0x40] sm:$0xff] %v2464
        %2497 = vst [vmem:[%s248 + $0x48] sm:$0xff] %v2465
        %2498 = vst [vmem:[%s248 + $0x50] sm:$0xff] %v2466
        %2499 = vst [vmem:[%s248 + $0x58] sm:$0xff] %v2467
        %2500 = vst [vmem:[%s248 + $0x60] sm:$0xff] %v2468
        %2501 = vst [vmem:[%s248 + $0x68] sm:$0xff] %v2469
        %2502 = vst [vmem:[%s248 + $0x70] sm:$0xff] %v2470
        %2503 = vst [vmem:[%s248 + $0x78] sm:$0xff] %v2471
        %2504 = vst [vmem:[%s248 + $0x80] sm:$0xff] %v2472
        %2505 = vst [vmem:[%s248 + $0x88] sm:$0xff] %v2473
        %2506 = vst [vmem:[%s248 + $0x90] sm:$0xff] %v2474
        %2507 = vst [vmem:[%s248 + $0x98] sm:$0xff] %v2475
        %2508 = vst [vmem:[%s248 + $0xa0] sm:$0xff] %v2476
        %2509 = vst [vmem:[%s248 + $0xa8] sm:$0xff] %v2477
        %2510 = vst [vmem:[%s248 + $0xb0] sm:$0xff] %v2478
        %2511 = vst [vmem:[%s248 + $0xb8] sm:$0xff] %v2479
        %2512 = vst [vmem:[%s248 + $0xc0] sm:$0xff] %v2480
        %2513 = vst [vmem:[%s248 + $0xc8] sm:$0xff] %v2481
        %2514 = vst [vmem:[%s248 + $0xd0] sm:$0xff] %v2482
        %2515 = vst [vmem:[%s248 + $0xd8] sm:$0xff] %v2483
        %2516 = vst [vmem:[%s248 + $0xe0] sm:$0xff] %v2484
        %2517 = vst [vmem:[%s248 + $0xe8] sm:$0xff] %v2485
        %2518 = vst [vmem:[%s248 + $0xf0] sm:$0xff] %v2486
        %2519 = vst [vmem:[%s248 + $0xf8] sm:$0xff] %v2487
        %v2520 = vld [vmem:[%s2069] sm:$0xf]
        %v2521 = vld [vmem:[%s2069 + $0x4] sm:$0xf]
        %v2522 = vld [vmem:[%s2069 + $0x8] sm:$0x1]
        %v2523 = vld [vmem:[%s2069 + $0xc] sm:$0xf]
        %v2524 = vld [vmem:[%s2069 + $0x10] sm:$0xf]
        %v2525 = vld [vmem:[%s2069 + $0x14] sm:$0x1]
        %v2526 = vld [vmem:[%s2069 + $0x18] sm:$0xf]
        %v2527 = vld [vmem:[%s2069 + $0x1c] sm:$0xf]
        %v2528 = vld [vmem:[%s2069 + $0x20] sm:$0x1]
        %v2529 = vld [vmem:[%s2069 + $0x24] sm:$0xf]
        %v2530 = vld [vmem:[%s2069 + $0x28] sm:$0xf]
        %v2531 = vld [vmem:[%s2069 + $0x2c] sm:$0x1]
        %v2532 = vld [vmem:[%s2069 + $0x30] sm:$0xf]
        %v2533 = vld [vmem:[%s2069 + $0x34] sm:$0xf]
        %v2534 = vld [vmem:[%s2069 + $0x38] sm:$0x1]
        %v2535 = vld [vmem:[%s2069 + $0x3c] sm:$0xf]
        %v2536 = vld [vmem:[%s2069 + $0x40] sm:$0xf]
        %v2537 = vld [vmem:[%s2069 + $0x44] sm:$0x1]
        %v2538 = vld [vmem:[%s2069 + $0x48] sm:$0xf]
        %v2539 = vld [vmem:[%s2069 + $0x4c] sm:$0xf]
        %v2540 = vld [vmem:[%s2069 + $0x50] sm:$0x1]
        %v2541 = vld [vmem:[%s2069 + $0x54] sm:$0xf]
        %v2542 = vld [vmem:[%s2069 + $0x58] sm:$0xf]
        %v2543 = vld [vmem:[%s2069 + $0x5c] sm:$0x1]
        %v2544 = vld [vmem:[%s2069 + $0x60] sm:$0xf]
        %v2545 = vld [vmem:[%s2069 + $0x64] sm:$0xf]
        %v2546 = vld [vmem:[%s2069 + $0x68] sm:$0x1]
        %v2547 = vld [vmem:[%s2069 + $0x6c] sm:$0xf]
        %v2548 = vld [vmem:[%s2069 + $0x70] sm:$0xf]
        %v2549 = vld [vmem:[%s2069 + $0x74] sm:$0x1]
        %v2550 = vld [vmem:[%s2069 + $0x78] sm:$0xf]
        %v2551 = vld [vmem:[%s2069 + $0x7c] sm:$0xf]
        %v2552 = vld [vmem:[%s2069 + $0x80] sm:$0x1]
        %v2553 = vld [vmem:[%s2069 + $0x84] sm:$0xf]
        %v2554 = vld [vmem:[%s2069 + $0x88] sm:$0xf]
        %v2555 = vld [vmem:[%s2069 + $0x8c] sm:$0x1]
        %v2556 = vld [vmem:[%s2069 + $0x90] sm:$0xf]
        %v2557 = vld [vmem:[%s2069 + $0x94] sm:$0xf]
        %v2558 = vld [vmem:[%s2069 + $0x98] sm:$0x1]
        %v2559 = vld [vmem:[%s2069 + $0x9c] sm:$0xf]
        %v2560 = vld [vmem:[%s2069 + $0xa0] sm:$0xf]
        %v2561 = vld [vmem:[%s2069 + $0xa4] sm:$0x1]
        %v2562 = vld [vmem:[%s2069 + $0xa8] sm:$0xf]
        %v2563 = vld [vmem:[%s2069 + $0xac] sm:$0xf]
        %v2564 = vld [vmem:[%s2069 + $0xb0] sm:$0x1]
        %v2565 = vld [vmem:[%s2069 + $0xb4] sm:$0xf]
        %v2566 = vld [vmem:[%s2069 + $0xb8] sm:$0xf]
        %v2567 = vld [vmem:[%s2069 + $0xbc] sm:$0x1]
        %s2568 = scalar_lea.vmem %s257, 256
        %v2569 = vld [vmem:[%s2568] sm:$0xf]
        %v2570 = vld [vmem:[%s2568 + $0x4] sm:$0xf]
        %v2571 = vld [vmem:[%s2568 + $0x8] sm:$0xf]
        %v2572 = vld [vmem:[%s2568 + $0xc] sm:$0xf]
        %v2573 = vld [vmem:[%s2568 + $0x10] sm:$0xf]
        %v2574 = vld [vmem:[%s2568 + $0x14] sm:$0xf]
        %v2575 = vld [vmem:[%s2568 + $0x18] sm:$0xf]
        %v2576 = vld [vmem:[%s2568 + $0x1c] sm:$0xf]
        %v2577 = vld [vmem:[%s2568 + $0x20] sm:$0xf]
        %v2578 = vld [vmem:[%s2568 + $0x24] sm:$0xf]
        %v2579 = vld [vmem:[%s2568 + $0x28] sm:$0xf]
        %v2580 = vld [vmem:[%s2568 + $0x2c] sm:$0xf]
        %v2581 = vld [vmem:[%s2568 + $0x30] sm:$0xf]
        %v2582 = vld [vmem:[%s2568 + $0x34] sm:$0xf]
        %v2583 = vld [vmem:[%s2568 + $0x38] sm:$0xf]
        %v2584 = vld [vmem:[%s2568 + $0x3c] sm:$0xf]
        %v2586 = vshrl.u32 %v2520, 16
        %v2588 = vrot.slane %v2586, 4
        %v2589 = vshll.u32 %v2520, 16
        %v2591 = vrot.slane %v2589, 5
        %v2592 = vor.u32 %v2588, %v2591
        %v2593 = vrot.slane %v2592, 4
        %v2595 = vshll.u32 %v2521, 16
        %v2597 = vrot.slane %v2595, 5
        %v2598 = vsel %vm718, %v2593, %v2597
        %v2599 = vshrl.u32 %v2521, 16
        %v2601 = vrot.slane %v2599, 4
        %v2602 = vor.u32 %v2601, %v2597
        %v2603 = vrot.slane %v2602, 4
        %v2605 = vshll.u32 %v2522, 16
        %v2607 = vrot.slane %v2605, 5
        %v2608 = vsel %vm718, %v2603, %v2607
        %v2610 = vshrl.u32 %v2523, 16
        %v2612 = vrot.slane %v2610, 4
        %v2613 = vshll.u32 %v2523, 16
        %v2615 = vrot.slane %v2613, 5
        %v2616 = vor.u32 %v2612, %v2615
        %v2617 = vrot.slane %v2616, 4
        %v2619 = vshll.u32 %v2524, 16
        %v2621 = vrot.slane %v2619, 5
        %v2622 = vsel %vm718, %v2617, %v2621
        %v2623 = vshrl.u32 %v2524, 16
        %v2625 = vrot.slane %v2623, 4
        %v2626 = vor.u32 %v2625, %v2621
        %v2627 = vrot.slane %v2626, 4
        %v2629 = vshll.u32 %v2525, 16
        %v2631 = vrot.slane %v2629, 5
        %v2632 = vsel %vm718, %v2627, %v2631
        %v2634 = vshrl.u32 %v2526, 16
        %v2636 = vrot.slane %v2634, 4
        %v2637 = vshll.u32 %v2526, 16
        %v2639 = vrot.slane %v2637, 5
        %v2640 = vor.u32 %v2636, %v2639
        %v2641 = vrot.slane %v2640, 4
        %v2643 = vshll.u32 %v2527, 16
        %v2645 = vrot.slane %v2643, 5
        %v2646 = vsel %vm718, %v2641, %v2645
        %v2647 = vshrl.u32 %v2527, 16
        %v2649 = vrot.slane %v2647, 4
        %v2650 = vor.u32 %v2649, %v2645
        %v2651 = vrot.slane %v2650, 4
        %v2653 = vshll.u32 %v2528, 16
        %v2655 = vrot.slane %v2653, 5
        %v2656 = vsel %vm718, %v2651, %v2655
        %v2658 = vshrl.u32 %v2529, 16
        %v2660 = vrot.slane %v2658, 4
        %v2661 = vshll.u32 %v2529, 16
        %v2663 = vrot.slane %v2661, 5
        %v2664 = vor.u32 %v2660, %v2663
        %v2665 = vrot.slane %v2664, 4
        %v2667 = vshll.u32 %v2530, 16
        %v2669 = vrot.slane %v2667, 5
        %v2670 = vsel %vm718, %v2665, %v2669
        %v2671 = vshrl.u32 %v2530, 16
        %v2673 = vrot.slane %v2671, 4
        %v2674 = vor.u32 %v2673, %v2669
        %v2675 = vrot.slane %v2674, 4
        %v2677 = vshll.u32 %v2531, 16
        %v2679 = vrot.slane %v2677, 5
        %v2680 = vsel %vm718, %v2675, %v2679
        %v2682 = vshrl.u32 %v2532, 16
        %v2684 = vrot.slane %v2682, 4
        %v2685 = vshll.u32 %v2532, 16
        %v2687 = vrot.slane %v2685, 5
        %v2688 = vor.u32 %v2684, %v2687
        %v2689 = vrot.slane %v2688, 4
        %v2691 = vshll.u32 %v2533, 16
        %v2693 = vrot.slane %v2691, 5
        %v2694 = vsel %vm718, %v2689, %v2693
        %v2695 = vshrl.u32 %v2533, 16
        %v2697 = vrot.slane %v2695, 4
        %v2698 = vor.u32 %v2697, %v2693
        %v2699 = vrot.slane %v2698, 4
        %v2701 = vshll.u32 %v2534, 16
        %v2703 = vrot.slane %v2701, 5
        %v2704 = vsel %vm718, %v2699, %v2703
        %v2706 = vshrl.u32 %v2535, 16
        %v2708 = vrot.slane %v2706, 4
        %v2709 = vshll.u32 %v2535, 16
        %v2711 = vrot.slane %v2709, 5
        %v2712 = vor.u32 %v2708, %v2711
        %v2713 = vrot.slane %v2712, 4
        %v2715 = vshll.u32 %v2536, 16
        %v2717 = vrot.slane %v2715, 5
        %v2718 = vsel %vm718, %v2713, %v2717
        %v2719 = vshrl.u32 %v2536, 16
        %v2721 = vrot.slane %v2719, 4
        %v2722 = vor.u32 %v2721, %v2717
        %v2723 = vrot.slane %v2722, 4
        %v2725 = vshll.u32 %v2537, 16
        %v2727 = vrot.slane %v2725, 5
        %v2728 = vsel %vm718, %v2723, %v2727
        %v2730 = vshrl.u32 %v2538, 16
        %v2732 = vrot.slane %v2730, 4
        %v2733 = vshll.u32 %v2538, 16
        %v2735 = vrot.slane %v2733, 5
        %v2736 = vor.u32 %v2732, %v2735
        %v2737 = vrot.slane %v2736, 4
        %v2739 = vshll.u32 %v2539, 16
        %v2741 = vrot.slane %v2739, 5
        %v2742 = vsel %vm718, %v2737, %v2741
        %v2743 = vshrl.u32 %v2539, 16
        %v2745 = vrot.slane %v2743, 4
        %v2746 = vor.u32 %v2745, %v2741
        %v2747 = vrot.slane %v2746, 4
        %v2749 = vshll.u32 %v2540, 16
        %v2751 = vrot.slane %v2749, 5
        %v2752 = vsel %vm718, %v2747, %v2751
        %v2754 = vshrl.u32 %v2541, 16
        %v2756 = vrot.slane %v2754, 4
        %v2757 = vshll.u32 %v2541, 16
        %v2759 = vrot.slane %v2757, 5
        %v2760 = vor.u32 %v2756, %v2759
        %v2761 = vrot.slane %v2760, 4
        %v2763 = vshll.u32 %v2542, 16
        %v2765 = vrot.slane %v2763, 5
        %v2766 = vsel %vm718, %v2761, %v2765
        %v2767 = vshrl.u32 %v2542, 16
        %v2769 = vrot.slane %v2767, 4
        %v2770 = vor.u32 %v2769, %v2765
        %v2771 = vrot.slane %v2770, 4
        %v2773 = vshll.u32 %v2543, 16
        %v2775 = vrot.slane %v2773, 5
        %v2776 = vsel %vm718, %v2771, %v2775
        %v2778 = vshrl.u32 %v2544, 16
        %v2780 = vrot.slane %v2778, 4
        %v2781 = vshll.u32 %v2544, 16
        %v2783 = vrot.slane %v2781, 5
        %v2784 = vor.u32 %v2780, %v2783
        %v2785 = vrot.slane %v2784, 4
        %v2787 = vshll.u32 %v2545, 16
        %v2789 = vrot.slane %v2787, 5
        %v2790 = vsel %vm718, %v2785, %v2789
        %v2791 = vshrl.u32 %v2545, 16
        %v2793 = vrot.slane %v2791, 4
        %v2794 = vor.u32 %v2793, %v2789
        %v2795 = vrot.slane %v2794, 4
        %v2797 = vshll.u32 %v2546, 16
        %v2799 = vrot.slane %v2797, 5
        %v2800 = vsel %vm718, %v2795, %v2799
        %v2802 = vshrl.u32 %v2547, 16
        %v2804 = vrot.slane %v2802, 4
        %v2805 = vshll.u32 %v2547, 16
        %v2807 = vrot.slane %v2805, 5
        %v2808 = vor.u32 %v2804, %v2807
        %v2809 = vrot.slane %v2808, 4
        %v2811 = vshll.u32 %v2548, 16
        %v2813 = vrot.slane %v2811, 5
        %v2814 = vsel %vm718, %v2809, %v2813
        %v2815 = vshrl.u32 %v2548, 16
        %v2817 = vrot.slane %v2815, 4
        %v2818 = vor.u32 %v2817, %v2813
        %v2819 = vrot.slane %v2818, 4
        %v2821 = vshll.u32 %v2549, 16
        %v2823 = vrot.slane %v2821, 5
        %v2824 = vsel %vm718, %v2819, %v2823
        %v2826 = vshrl.u32 %v2550, 16
        %v2828 = vrot.slane %v2826, 4
        %v2829 = vshll.u32 %v2550, 16
        %v2831 = vrot.slane %v2829, 5
        %v2832 = vor.u32 %v2828, %v2831
        %v2833 = vrot.slane %v2832, 4
        %v2835 = vshll.u32 %v2551, 16
        %v2837 = vrot.slane %v2835, 5
        %v2838 = vsel %vm718, %v2833, %v2837
        %v2839 = vshrl.u32 %v2551, 16
        %v2841 = vrot.slane %v2839, 4
        %v2842 = vor.u32 %v2841, %v2837
        %v2843 = vrot.slane %v2842, 4
        %v2845 = vshll.u32 %v2552, 16
        %v2847 = vrot.slane %v2845, 5
        %v2848 = vsel %vm718, %v2843, %v2847
        %v2850 = vshrl.u32 %v2553, 16
        %v2852 = vrot.slane %v2850, 4
        %v2853 = vshll.u32 %v2553, 16
        %v2855 = vrot.slane %v2853, 5
        %v2856 = vor.u32 %v2852, %v2855
        %v2857 = vrot.slane %v2856, 4
        %v2859 = vshll.u32 %v2554, 16
        %v2861 = vrot.slane %v2859, 5
        %v2862 = vsel %vm718, %v2857, %v2861
        %v2863 = vshrl.u32 %v2554, 16
        %v2865 = vrot.slane %v2863, 4
        %v2866 = vor.u32 %v2865, %v2861
        %v2867 = vrot.slane %v2866, 4
        %v2869 = vshll.u32 %v2555, 16
        %v2871 = vrot.slane %v2869, 5
        %v2872 = vsel %vm718, %v2867, %v2871
        %v2874 = vshrl.u32 %v2556, 16
        %v2876 = vrot.slane %v2874, 4
        %v2877 = vshll.u32 %v2556, 16
        %v2879 = vrot.slane %v2877, 5
        %v2880 = vor.u32 %v2876, %v2879
        %v2881 = vrot.slane %v2880, 4
        %v2883 = vshll.u32 %v2557, 16
        %v2885 = vrot.slane %v2883, 5
        %v2886 = vsel %vm718, %v2881, %v2885
        %v2887 = vshrl.u32 %v2557, 16
        %v2889 = vrot.slane %v2887, 4
        %v2890 = vor.u32 %v2889, %v2885
        %v2891 = vrot.slane %v2890, 4
        %v2893 = vshll.u32 %v2558, 16
        %v2895 = vrot.slane %v2893, 5
        %v2896 = vsel %vm718, %v2891, %v2895
        %v2898 = vshrl.u32 %v2559, 16
        %v2900 = vrot.slane %v2898, 4
        %v2901 = vshll.u32 %v2559, 16
        %v2903 = vrot.slane %v2901, 5
        %v2904 = vor.u32 %v2900, %v2903
        %v2905 = vrot.slane %v2904, 4
        %v2907 = vshll.u32 %v2560, 16
        %v2909 = vrot.slane %v2907, 5
        %v2910 = vsel %vm718, %v2905, %v2909
        %v2911 = vshrl.u32 %v2560, 16
        %v2913 = vrot.slane %v2911, 4
        %v2914 = vor.u32 %v2913, %v2909
        %v2915 = vrot.slane %v2914, 4
        %v2917 = vshll.u32 %v2561, 16
        %v2919 = vrot.slane %v2917, 5
        %v2920 = vsel %vm718, %v2915, %v2919
        %v2922 = vshrl.u32 %v2562, 16
        %v2924 = vrot.slane %v2922, 4
        %v2925 = vshll.u32 %v2562, 16
        %v2927 = vrot.slane %v2925, 5
        %v2928 = vor.u32 %v2924, %v2927
        %v2929 = vrot.slane %v2928, 4
        %v2931 = vshll.u32 %v2563, 16
        %v2933 = vrot.slane %v2931, 5
        %v2934 = vsel %vm718, %v2929, %v2933
        %v2935 = vshrl.u32 %v2563, 16
        %v2937 = vrot.slane %v2935, 4
        %v2938 = vor.u32 %v2937, %v2933
        %v2939 = vrot.slane %v2938, 4
        %v2941 = vshll.u32 %v2564, 16
        %v2943 = vrot.slane %v2941, 5
        %v2944 = vsel %vm718, %v2939, %v2943
        %v2946 = vshrl.u32 %v2565, 16
        %v2948 = vrot.slane %v2946, 4
        %v2949 = vshll.u32 %v2565, 16
        %v2951 = vrot.slane %v2949, 5
        %v2952 = vor.u32 %v2948, %v2951
        %v2953 = vrot.slane %v2952, 4
        %v2955 = vshll.u32 %v2566, 16
        %v2957 = vrot.slane %v2955, 5
        %v2958 = vsel %vm718, %v2953, %v2957
        %v2959 = vshrl.u32 %v2566, 16
        %v2961 = vrot.slane %v2959, 4
        %v2962 = vor.u32 %v2961, %v2957
        %v2963 = vrot.slane %v2962, 4
        %v2965 = vshll.u32 %v2567, 16
        %v2967 = vrot.slane %v2965, 5
        %v2968 = vsel %vm718, %v2963, %v2967
        %v2969 = vunpack.c.l.b16 %v2598
        %v2970 = vunpack.c.l.b16 %v2608
        %v2971 = vunpack.c.l.b16 %v2622
        %v2972 = vunpack.c.l.b16 %v2632
        %v2973 = vunpack.c.l.b16 %v2646
        %v2974 = vunpack.c.l.b16 %v2656
        %v2975 = vunpack.c.l.b16 %v2670
        %v2976 = vunpack.c.l.b16 %v2680
        %v2977 = vunpack.c.l.b16 %v2694
        %v2978 = vunpack.c.l.b16 %v2704
        %v2979 = vunpack.c.l.b16 %v2718
        %v2980 = vunpack.c.l.b16 %v2728
        %v2981 = vunpack.c.l.b16 %v2742
        %v2982 = vunpack.c.l.b16 %v2752
        %v2983 = vunpack.c.l.b16 %v2766
        %v2984 = vunpack.c.l.b16 %v2776
        %v2985 = vunpack.c.l.b16 %v2790
        %v2986 = vunpack.c.l.b16 %v2800
        %v2987 = vunpack.c.l.b16 %v2814
        %v2988 = vunpack.c.l.b16 %v2824
        %v2989 = vunpack.c.l.b16 %v2838
        %v2990 = vunpack.c.l.b16 %v2848
        %v2991 = vunpack.c.l.b16 %v2862
        %v2992 = vunpack.c.l.b16 %v2872
        %v2993 = vunpack.c.l.b16 %v2886
        %v2994 = vunpack.c.l.b16 %v2896
        %v2995 = vunpack.c.l.b16 %v2910
        %v2996 = vunpack.c.l.b16 %v2920
        %v2997 = vunpack.c.l.b16 %v2934
        %v2998 = vunpack.c.l.b16 %v2944
        %v2999 = vunpack.c.l.b16 %v2958
        %v3000 = vunpack.c.l.b16 %v2968
        %v3001 = vpack.c.b16 %v2970, %v2969
        %v3002 = vpack.c.b16 %v2972, %v2971
        %v3003 = vpack.c.b16 %v2974, %v2973
        %v3004 = vpack.c.b16 %v2976, %v2975
        %v3005 = vpack.c.b16 %v2978, %v2977
        %v3006 = vpack.c.b16 %v2980, %v2979
        %v3007 = vpack.c.b16 %v2982, %v2981
        %v3008 = vpack.c.b16 %v2984, %v2983
        %v3009 = vpack.c.b16 %v2986, %v2985
        %v3010 = vpack.c.b16 %v2988, %v2987
        %v3011 = vpack.c.b16 %v2990, %v2989
        %v3012 = vpack.c.b16 %v2992, %v2991
        %v3013 = vpack.c.b16 %v2994, %v2993
        %v3014 = vpack.c.b16 %v2996, %v2995
        %v3015 = vpack.c.b16 %v2998, %v2997
        %v3016 = vpack.c.b16 %v3000, %v2999
        %v3049 = vunpack.c.l.b16 %v2569
        %v3050 = vunpack.c.l.b16 %v2570
        %v3051 = vunpack.c.l.b16 %v2571
        %v3052 = vunpack.c.l.b16 %v2572
        %v3053 = vunpack.c.l.b16 %v2573
        %v3054 = vunpack.c.l.b16 %v2574
        %v3055 = vunpack.c.l.b16 %v2575
        %v3056 = vunpack.c.l.b16 %v2576
        %v3057 = vunpack.c.l.b16 %v2577
        %v3058 = vunpack.c.l.b16 %v2578
        %v3059 = vunpack.c.l.b16 %v2579
        %v3060 = vunpack.c.l.b16 %v2580
        %v3061 = vunpack.c.l.b16 %v2581
        %v3062 = vunpack.c.l.b16 %v2582
        %v3063 = vunpack.c.l.b16 %v2583
        %v3064 = vunpack.c.l.b16 %v2584
        %v3065 = vpack.c.b16 %v3050, %v3049
        %v3066 = vpack.c.b16 %v3052, %v3051
        %v3067 = vpack.c.b16 %v3054, %v3053
        %v3068 = vpack.c.b16 %v3056, %v3055
        %v3069 = vpack.c.b16 %v3058, %v3057
        %v3070 = vpack.c.b16 %v3060, %v3059
        %v3071 = vpack.c.b16 %v3062, %v3061
        %v3072 = vpack.c.b16 %v3064, %v3063
        %3081 = vmatprep.subr.bf16.mxu0 0
        %3082 = vmatpush1.bf16.msra.mxu0 %v3072
        %3083 = vmatprep.subr.bf16.mxu0 0
        %3084 = vmatpush1.bf16.msra.mxu0 %v3071
        %3085 = vmatprep.subr.bf16.mxu0 0
        %3086 = vmatpush1.bf16.msra.mxu0 %v3070
        %3087 = vmatprep.subr.bf16.mxu0 0
        %3088 = vmatpush1.bf16.msra.mxu0 %v3069
        %3089 = vmatprep.subr.bf16.mxu0 0
        %3090 = vmatpush1.bf16.msra.mxu0 %v3068
        %3091 = vmatprep.subr.bf16.mxu0 0
        %3092 = vmatpush1.bf16.msra.mxu0 %v3067
        %3093 = vmatprep.subr.bf16.mxu0 0
        %3094 = vmatpush1.bf16.msra.mxu0 %v3066
        %3095 = vmatprep.subr.bf16.mxu0 0
        %3096 = vmatpush1.bf16.msra.mxu0 %v3065
        %3097 = vmatprep.subr.bf16.mxu0 0
        %3098 = vmatpush2.bf16.msra.mxu0 0
        %3099 = vmatprep.subr.bf16.mxu0 0
        %3100 = vmatpush2.bf16.msra.mxu0 0
        %3101 = vmatprep.subr.bf16.mxu0 0
        %3102 = vmatpush2.bf16.msra.mxu0 0
        %3103 = vmatprep.subr.bf16.mxu0 0
        %3104 = vmatpush2.bf16.msra.mxu0 0
        %3105 = vmatprep.subr.bf16.mxu0 0
        %3106 = vmatpush2.bf16.msra.mxu0 0
        %3107 = vmatprep.subr.bf16.mxu0 0
        %3108 = vmatpush2.bf16.msra.mxu0 0
        %3109 = vmatprep.subr.bf16.mxu0 0
        %3110 = vmatpush2.bf16.msra.mxu0 0
        %3111 = vmatprep.subr.bf16.mxu0 0
        %3112 = vmatpush2.bf16.msra.mxu0 0
        %3113 = vmatprep.mubr.bf16.mxu0 0
        %3114 = vmatmul.mubr.bf16.gmra.mxu0 %v3001
        %v3115 = vpop.f32.mrf.mxu0
        %v3116 = vadd.f32 0.0, %v3115
        %v3117 = vpop.f32.mrf.mxu0
        %v3118 = vpop.f32.mrf.mxu0
        %v3119 = vadd.f32 0.0, %v3118
        %v3120 = vpop.f32.mrf.mxu0
        %3121 = vmatprep.mubr.bf16.mxu0 0
        %3122 = vmatmul.mubr.bf16.gmra.mxu0 %v3002
        %v3123 = vpop.f32.mrf.mxu0
        %v3124 = vadd.f32 0.0, %v3123
        %v3125 = vpop.f32.mrf.mxu0
        %v3126 = vpop.f32.mrf.mxu0
        %v3127 = vadd.f32 0.0, %v3126
        %v3128 = vpop.f32.mrf.mxu0
        %3129 = vmatprep.mubr.bf16.mxu0 0
        %3130 = vmatmul.mubr.bf16.gmra.mxu0 %v3003
        %v3131 = vpop.f32.mrf.mxu0
        %v3132 = vadd.f32 0.0, %v3131
        %v3133 = vpop.f32.mrf.mxu0
        %v3134 = vpop.f32.mrf.mxu0
        %v3135 = vadd.f32 0.0, %v3134
        %v3136 = vpop.f32.mrf.mxu0
        %3137 = vmatprep.mubr.bf16.mxu0 0
        %3138 = vmatmul.mubr.bf16.gmra.mxu0 %v3004
        %v3139 = vpop.f32.mrf.mxu0
        %v3140 = vadd.f32 0.0, %v3139
        %v3141 = vpop.f32.mrf.mxu0
        %v3142 = vpop.f32.mrf.mxu0
        %v3143 = vadd.f32 0.0, %v3142
        %v3144 = vpop.f32.mrf.mxu0
        %3145 = vmatprep.mubr.bf16.mxu0 0
        %3146 = vmatmul.mubr.bf16.gmra.mxu0 %v3005
        %v3147 = vpop.f32.mrf.mxu0
        %v3148 = vadd.f32 0.0, %v3147
        %v3149 = vpop.f32.mrf.mxu0
        %v3150 = vpop.f32.mrf.mxu0
        %v3151 = vadd.f32 0.0, %v3150
        %v3152 = vpop.f32.mrf.mxu0
        %3153 = vmatprep.mubr.bf16.mxu0 0
        %3154 = vmatmul.mubr.bf16.gmra.mxu0 %v3006
        %v3155 = vpop.f32.mrf.mxu0
        %v3156 = vadd.f32 0.0, %v3155
        %v3157 = vpop.f32.mrf.mxu0
        %v3158 = vpop.f32.mrf.mxu0
        %v3159 = vadd.f32 0.0, %v3158
        %v3160 = vpop.f32.mrf.mxu0
        %3161 = vmatprep.mubr.bf16.mxu0 0
        %3162 = vmatmul.mubr.bf16.gmra.mxu0 %v3007
        %v3163 = vpop.f32.mrf.mxu0
        %v3164 = vadd.f32 0.0, %v3163
        %v3165 = vpop.f32.mrf.mxu0
        %v3166 = vpop.f32.mrf.mxu0
        %v3167 = vadd.f32 0.0, %v3166
        %v3168 = vpop.f32.mrf.mxu0
        %3169 = vmatprep.mubr.bf16.mxu0 0
        %3170 = vmatmul.mubr.bf16.gmra.mxu0 %v3008
        %v3171 = vpop.f32.mrf.mxu0
        %v3172 = vadd.f32 0.0, %v3171
        %v3173 = vpop.f32.mrf.mxu0
        %v3174 = vpop.f32.mrf.mxu0
        %v3175 = vadd.f32 0.0, %v3174
        %v3176 = vpop.f32.mrf.mxu0
        %3177 = vmatprep.mubr.bf16.mxu0 0
        %3178 = vmatmul.mubr.bf16.gmra.mxu0 %v3009
        %v3179 = vpop.f32.mrf.mxu0
        %v3180 = vadd.f32 0.0, %v3179
        %v3181 = vpop.f32.mrf.mxu0
        %v3182 = vpop.f32.mrf.mxu0
        %v3183 = vadd.f32 0.0, %v3182
        %v3184 = vpop.f32.mrf.mxu0
        %3185 = vmatprep.mubr.bf16.mxu0 0
        %3186 = vmatmul.mubr.bf16.gmra.mxu0 %v3010
        %v3187 = vpop.f32.mrf.mxu0
        %v3188 = vadd.f32 0.0, %v3187
        %v3189 = vpop.f32.mrf.mxu0
        %v3190 = vpop.f32.mrf.mxu0
        %v3191 = vadd.f32 0.0, %v3190
        %v3192 = vpop.f32.mrf.mxu0
        %3193 = vmatprep.mubr.bf16.mxu0 0
        %3194 = vmatmul.mubr.bf16.gmra.mxu0 %v3011
        %v3195 = vpop.f32.mrf.mxu0
        %v3196 = vadd.f32 0.0, %v3195
        %v3197 = vpop.f32.mrf.mxu0
        %v3198 = vpop.f32.mrf.mxu0
        %v3199 = vadd.f32 0.0, %v3198
        %v3200 = vpop.f32.mrf.mxu0
        %3201 = vmatprep.mubr.bf16.mxu0 0
        %3202 = vmatmul.mubr.bf16.gmra.mxu0 %v3012
        %v3203 = vpop.f32.mrf.mxu0
        %v3204 = vadd.f32 0.0, %v3203
        %v3205 = vpop.f32.mrf.mxu0
        %v3206 = vpop.f32.mrf.mxu0
        %v3207 = vadd.f32 0.0, %v3206
        %v3208 = vpop.f32.mrf.mxu0
        %3209 = vmatprep.mubr.bf16.mxu0 0
        %3210 = vmatmul.mubr.bf16.gmra.mxu0 %v3013
        %v3211 = vpop.f32.mrf.mxu0
        %v3212 = vadd.f32 0.0, %v3211
        %v3213 = vpop.f32.mrf.mxu0
        %v3214 = vpop.f32.mrf.mxu0
        %v3215 = vadd.f32 0.0, %v3214
        %v3216 = vpop.f32.mrf.mxu0
        %3217 = vmatprep.mubr.bf16.mxu0 0
        %3218 = vmatmul.mubr.bf16.gmra.mxu0 %v3014
        %v3219 = vpop.f32.mrf.mxu0
        %v3220 = vadd.f32 0.0, %v3219
        %v3221 = vpop.f32.mrf.mxu0
        %v3222 = vpop.f32.mrf.mxu0
        %v3223 = vadd.f32 0.0, %v3222
        %v3224 = vpop.f32.mrf.mxu0
        %3225 = vmatprep.mubr.bf16.mxu0 0
        %3226 = vmatmul.mubr.bf16.gmra.mxu0 %v3015
        %v3227 = vpop.f32.mrf.mxu0
        %v3228 = vadd.f32 0.0, %v3227
        %v3229 = vpop.f32.mrf.mxu0
        %v3230 = vpop.f32.mrf.mxu0
        %v3231 = vadd.f32 0.0, %v3230
        %v3232 = vpop.f32.mrf.mxu0
        %3233 = vmatprep.mubr.bf16.mxu0 0
        %3234 = vmatmul.mubr.bf16.gmra.mxu0 %v3016
        %v3235 = vpop.f32.mrf.mxu0
        %v3236 = vadd.f32 0.0, %v3235
        %v3237 = vpop.f32.mrf.mxu0
        %v3238 = vpop.f32.mrf.mxu0
        %v3239 = vadd.f32 0.0, %v3238
        %v3240 = vpop.f32.mrf.mxu0
        %3241 = vdwg.mxu0
        %v3242 = vld [vmem:[%s248] sm:$0xff]
        %v3243 = vld [vmem:[%s248 + $0x8] sm:$0xff]
        %v3244 = vld [vmem:[%s248 + $0x10] sm:$0xff]
        %v3245 = vld [vmem:[%s248 + $0x18] sm:$0xff]
        %v3246 = vld [vmem:[%s248 + $0x20] sm:$0xff]
        %v3247 = vld [vmem:[%s248 + $0x28] sm:$0xff]
        %v3248 = vld [vmem:[%s248 + $0x30] sm:$0xff]
        %v3249 = vld [vmem:[%s248 + $0x38] sm:$0xff]
        %v3250 = vld [vmem:[%s248 + $0x40] sm:$0xff]
        %v3251 = vld [vmem:[%s248 + $0x48] sm:$0xff]
        %v3252 = vld [vmem:[%s248 + $0x50] sm:$0xff]
        %v3253 = vld [vmem:[%s248 + $0x58] sm:$0xff]
        %v3254 = vld [vmem:[%s248 + $0x60] sm:$0xff]
        %v3255 = vld [vmem:[%s248 + $0x68] sm:$0xff]
        %v3256 = vld [vmem:[%s248 + $0x70] sm:$0xff]
        %v3257 = vld [vmem:[%s248 + $0x78] sm:$0xff]
        %v3258 = vld [vmem:[%s248 + $0x80] sm:$0xff]
        %v3259 = vld [vmem:[%s248 + $0x88] sm:$0xff]
        %v3260 = vld [vmem:[%s248 + $0x90] sm:$0xff]
        %v3261 = vld [vmem:[%s248 + $0x98] sm:$0xff]
        %v3262 = vld [vmem:[%s248 + $0xa0] sm:$0xff]
        %v3263 = vld [vmem:[%s248 + $0xa8] sm:$0xff]
        %v3264 = vld [vmem:[%s248 + $0xb0] sm:$0xff]
        %v3265 = vld [vmem:[%s248 + $0xb8] sm:$0xff]
        %v3266 = vld [vmem:[%s248 + $0xc0] sm:$0xff]
        %v3267 = vld [vmem:[%s248 + $0xc8] sm:$0xff]
        %v3268 = vld [vmem:[%s248 + $0xd0] sm:$0xff]
        %v3269 = vld [vmem:[%s248 + $0xd8] sm:$0xff]
        %v3270 = vld [vmem:[%s248 + $0xe0] sm:$0xff]
        %v3271 = vld [vmem:[%s248 + $0xe8] sm:$0xff]
        %v3272 = vld [vmem:[%s248 + $0xf0] sm:$0xff]
        %v3273 = vld [vmem:[%s248 + $0xf8] sm:$0xff]
        %v3274 = vadd.f32 %v3242, %v3116
        %v3275 = vadd.f32 %v3243, %v3119
        %v3276 = vadd.f32 %v3244, %v3124
        %v3277 = vadd.f32 %v3245, %v3127
        %v3278 = vadd.f32 %v3246, %v3132
        %v3279 = vadd.f32 %v3247, %v3135
        %v3280 = vadd.f32 %v3248, %v3140
        %v3281 = vadd.f32 %v3249, %v3143
        %v3282 = vadd.f32 %v3250, %v3148
        %v3283 = vadd.f32 %v3251, %v3151
        %v3284 = vadd.f32 %v3252, %v3156
        %v3285 = vadd.f32 %v3253, %v3159
        %v3286 = vadd.f32 %v3254, %v3164
        %v3287 = vadd.f32 %v3255, %v3167
        %v3288 = vadd.f32 %v3256, %v3172
        %v3289 = vadd.f32 %v3257, %v3175
        %v3290 = vadd.f32 %v3258, %v3180
        %v3291 = vadd.f32 %v3259, %v3183
        %v3292 = vadd.f32 %v3260, %v3188
        %v3293 = vadd.f32 %v3261, %v3191
        %v3294 = vadd.f32 %v3262, %v3196
        %v3295 = vadd.f32 %v3263, %v3199
        %v3296 = vadd.f32 %v3264, %v3204
        %v3297 = vadd.f32 %v3265, %v3207
        %v3298 = vadd.f32 %v3266, %v3212
        %v3299 = vadd.f32 %v3267, %v3215
        %v3300 = vadd.f32 %v3268, %v3220
        %v3301 = vadd.f32 %v3269, %v3223
        %v3302 = vadd.f32 %v3270, %v3228
        %v3303 = vadd.f32 %v3271, %v3231
        %v3304 = vadd.f32 %v3272, %v3236
        %v3305 = vadd.f32 %v3273, %v3239
        %3306 = vst [vmem:[%s248] sm:$0xff] %v3274
        %3307 = vst [vmem:[%s248 + $0x8] sm:$0xff] %v3275
        %3308 = vst [vmem:[%s248 + $0x10] sm:$0xff] %v3276
        %3309 = vst [vmem:[%s248 + $0x18] sm:$0xff] %v3277
        %3310 = vst [vmem:[%s248 + $0x20] sm:$0xff] %v3278
        %3311 = vst [vmem:[%s248 + $0x28] sm:$0xff] %v3279
        %3312 = vst [vmem:[%s248 + $0x30] sm:$0xff] %v3280
        %3313 = vst [vmem:[%s248 + $0x38] sm:$0xff] %v3281
        %3314 = vst [vmem:[%s248 + $0x40] sm:$0xff] %v3282
        %3315 = vst [vmem:[%s248 + $0x48] sm:$0xff] %v3283
        %3316 = vst [vmem:[%s248 + $0x50] sm:$0xff] %v3284
        %3317 = vst [vmem:[%s248 + $0x58] sm:$0xff] %v3285
        %3318 = vst [vmem:[%s248 + $0x60] sm:$0xff] %v3286
        %3319 = vst [vmem:[%s248 + $0x68] sm:$0xff] %v3287
        %3320 = vst [vmem:[%s248 + $0x70] sm:$0xff] %v3288
        %3321 = vst [vmem:[%s248 + $0x78] sm:$0xff] %v3289
        %3322 = vst [vmem:[%s248 + $0x80] sm:$0xff] %v3290
        %3323 = vst [vmem:[%s248 + $0x88] sm:$0xff] %v3291
        %3324 = vst [vmem:[%s248 + $0x90] sm:$0xff] %v3292
        %3325 = vst [vmem:[%s248 + $0x98] sm:$0xff] %v3293
        %3326 = vst [vmem:[%s248 + $0xa0] sm:$0xff] %v3294
        %3327 = vst [vmem:[%s248 + $0xa8] sm:$0xff] %v3295
        %3328 = vst [vmem:[%s248 + $0xb0] sm:$0xff] %v3296
        %3329 = vst [vmem:[%s248 + $0xb8] sm:$0xff] %v3297
        %3330 = vst [vmem:[%s248 + $0xc0] sm:$0xff] %v3298
        %3331 = vst [vmem:[%s248 + $0xc8] sm:$0xff] %v3299
        %3332 = vst [vmem:[%s248 + $0xd0] sm:$0xff] %v3300
        %3333 = vst [vmem:[%s248 + $0xd8] sm:$0xff] %v3301
        %3334 = vst [vmem:[%s248 + $0xe0] sm:$0xff] %v3302
        %3335 = vst [vmem:[%s248 + $0xe8] sm:$0xff] %v3303
        %3336 = vst [vmem:[%s248 + $0xf0] sm:$0xff] %v3304
        %3337 = vst [vmem:[%s248 + $0xf8] sm:$0xff] %v3305
        %v3338 = vld [vmem:[%s2069] sm:$0xe]
        %v3339 = vld [vmem:[%s2069 + $0x4] sm:$0xf]
        %v3340 = vld [vmem:[%s2069 + $0x8] sm:$0x1]
        %v3341 = vld [vmem:[%s2069 + $0xc] sm:$0xe]
        %v3342 = vld [vmem:[%s2069 + $0x10] sm:$0xf]
        %v3343 = vld [vmem:[%s2069 + $0x14] sm:$0x1]
        %v3344 = vld [vmem:[%s2069 + $0x18] sm:$0xe]
        %v3345 = vld [vmem:[%s2069 + $0x1c] sm:$0xf]
        %v3346 = vld [vmem:[%s2069 + $0x20] sm:$0x1]
        %v3347 = vld [vmem:[%s2069 + $0x24] sm:$0xe]
        %v3348 = vld [vmem:[%s2069 + $0x28] sm:$0xf]
        %v3349 = vld [vmem:[%s2069 + $0x2c] sm:$0x1]
        %v3350 = vld [vmem:[%s2069 + $0x30] sm:$0xe]
        %v3351 = vld [vmem:[%s2069 + $0x34] sm:$0xf]
        %v3352 = vld [vmem:[%s2069 + $0x38] sm:$0x1]
        %v3353 = vld [vmem:[%s2069 + $0x3c] sm:$0xe]
        %v3354 = vld [vmem:[%s2069 + $0x40] sm:$0xf]
        %v3355 = vld [vmem:[%s2069 + $0x44] sm:$0x1]
        %v3356 = vld [vmem:[%s2069 + $0x48] sm:$0xe]
        %v3357 = vld [vmem:[%s2069 + $0x4c] sm:$0xf]
        %v3358 = vld [vmem:[%s2069 + $0x50] sm:$0x1]
        %v3359 = vld [vmem:[%s2069 + $0x54] sm:$0xe]
        %v3360 = vld [vmem:[%s2069 + $0x58] sm:$0xf]
        %v3361 = vld [vmem:[%s2069 + $0x5c] sm:$0x1]
        %v3362 = vld [vmem:[%s2069 + $0x60] sm:$0xe]
        %v3363 = vld [vmem:[%s2069 + $0x64] sm:$0xf]
        %v3364 = vld [vmem:[%s2069 + $0x68] sm:$0x1]
        %v3365 = vld [vmem:[%s2069 + $0x6c] sm:$0xe]
        %v3366 = vld [vmem:[%s2069 + $0x70] sm:$0xf]
        %v3367 = vld [vmem:[%s2069 + $0x74] sm:$0x1]
        %v3368 = vld [vmem:[%s2069 + $0x78] sm:$0xe]
        %v3369 = vld [vmem:[%s2069 + $0x7c] sm:$0xf]
        %v3370 = vld [vmem:[%s2069 + $0x80] sm:$0x1]
        %v3371 = vld [vmem:[%s2069 + $0x84] sm:$0xe]
        %v3372 = vld [vmem:[%s2069 + $0x88] sm:$0xf]
        %v3373 = vld [vmem:[%s2069 + $0x8c] sm:$0x1]
        %v3374 = vld [vmem:[%s2069 + $0x90] sm:$0xe]
        %v3375 = vld [vmem:[%s2069 + $0x94] sm:$0xf]
        %v3376 = vld [vmem:[%s2069 + $0x98] sm:$0x1]
        %v3377 = vld [vmem:[%s2069 + $0x9c] sm:$0xe]
        %v3378 = vld [vmem:[%s2069 + $0xa0] sm:$0xf]
        %v3379 = vld [vmem:[%s2069 + $0xa4] sm:$0x1]
        %v3380 = vld [vmem:[%s2069 + $0xa8] sm:$0xe]
        %v3381 = vld [vmem:[%s2069 + $0xac] sm:$0xf]
        %v3382 = vld [vmem:[%s2069 + $0xb0] sm:$0x1]
        %v3383 = vld [vmem:[%s2069 + $0xb4] sm:$0xe]
        %v3384 = vld [vmem:[%s2069 + $0xb8] sm:$0xf]
        %v3385 = vld [vmem:[%s2069 + $0xbc] sm:$0x1]
        %s3386 = scalar_lea.vmem %s257, 320
        %v3387 = vld [vmem:[%s3386] sm:$0xf]
        %v3388 = vld [vmem:[%s3386 + $0x4] sm:$0xf]
        %v3389 = vld [vmem:[%s3386 + $0x8] sm:$0xf]
        %v3390 = vld [vmem:[%s3386 + $0xc] sm:$0xf]
        %v3391 = vld [vmem:[%s3386 + $0x10] sm:$0xf]
        %v3392 = vld [vmem:[%s3386 + $0x14] sm:$0xf]
        %v3393 = vld [vmem:[%s3386 + $0x18] sm:$0xf]
        %v3394 = vld [vmem:[%s3386 + $0x1c] sm:$0xf]
        %v3395 = vld [vmem:[%s3386 + $0x20] sm:$0xf]
        %v3396 = vld [vmem:[%s3386 + $0x24] sm:$0xf]
        %v3397 = vld [vmem:[%s3386 + $0x28] sm:$0xf]
        %v3398 = vld [vmem:[%s3386 + $0x2c] sm:$0xf]
        %v3399 = vld [vmem:[%s3386 + $0x30] sm:$0xf]
        %v3400 = vld [vmem:[%s3386 + $0x34] sm:$0xf]
        %v3401 = vld [vmem:[%s3386 + $0x38] sm:$0xf]
        %v3402 = vld [vmem:[%s3386 + $0x3c] sm:$0xf]
        %v3451 = vrot.slane %v3338, 5
        %v3452 = vrot.slane %v3451, 4
        %v3453 = vrot.slane %v3339, 5
        %v3454 = vsel %vm1587, %v3452, %v3453
        %v3455 = vrot.slane %v3453, 4
        %v3456 = vrot.slane %v3340, 5
        %v3457 = vsel %vm1587, %v3455, %v3456
        %v3458 = vrot.slane %v3341, 5
        %v3459 = vrot.slane %v3458, 4
        %v3460 = vrot.slane %v3342, 5
        %v3461 = vsel %vm1587, %v3459, %v3460
        %v3462 = vrot.slane %v3460, 4
        %v3463 = vrot.slane %v3343, 5
        %v3464 = vsel %vm1587, %v3462, %v3463
        %v3465 = vrot.slane %v3344, 5
        %v3466 = vrot.slane %v3465, 4
        %v3467 = vrot.slane %v3345, 5
        %v3468 = vsel %vm1587, %v3466, %v3467
        %v3469 = vrot.slane %v3467, 4
        %v3470 = vrot.slane %v3346, 5
        %v3471 = vsel %vm1587, %v3469, %v3470
        %v3472 = vrot.slane %v3347, 5
        %v3473 = vrot.slane %v3472, 4
        %v3474 = vrot.slane %v3348, 5
        %v3475 = vsel %vm1587, %v3473, %v3474
        %v3476 = vrot.slane %v3474, 4
        %v3477 = vrot.slane %v3349, 5
        %v3478 = vsel %vm1587, %v3476, %v3477
        %v3479 = vrot.slane %v3350, 5
        %v3480 = vrot.slane %v3479, 4
        %v3481 = vrot.slane %v3351, 5
        %v3482 = vsel %vm1587, %v3480, %v3481
        %v3483 = vrot.slane %v3481, 4
        %v3484 = vrot.slane %v3352, 5
        %v3485 = vsel %vm1587, %v3483, %v3484
        %v3486 = vrot.slane %v3353, 5
        %v3487 = vrot.slane %v3486, 4
        %v3488 = vrot.slane %v3354, 5
        %v3489 = vsel %vm1587, %v3487, %v3488
        %v3490 = vrot.slane %v3488, 4
        %v3491 = vrot.slane %v3355, 5
        %v3492 = vsel %vm1587, %v3490, %v3491
        %v3493 = vrot.slane %v3356, 5
        %v3494 = vrot.slane %v3493, 4
        %v3495 = vrot.slane %v3357, 5
        %v3496 = vsel %vm1587, %v3494, %v3495
        %v3497 = vrot.slane %v3495, 4
        %v3498 = vrot.slane %v3358, 5
        %v3499 = vsel %vm1587, %v3497, %v3498
        %v3500 = vrot.slane %v3359, 5
        %v3501 = vrot.slane %v3500, 4
        %v3502 = vrot.slane %v3360, 5
        %v3503 = vsel %vm1587, %v3501, %v3502
        %v3504 = vrot.slane %v3502, 4
        %v3505 = vrot.slane %v3361, 5
        %v3506 = vsel %vm1587, %v3504, %v3505
        %v3507 = vrot.slane %v3362, 5
        %v3508 = vrot.slane %v3507, 4
        %v3509 = vrot.slane %v3363, 5
        %v3510 = vsel %vm1587, %v3508, %v3509
        %v3511 = vrot.slane %v3509, 4
        %v3512 = vrot.slane %v3364, 5
        %v3513 = vsel %vm1587, %v3511, %v3512
        %v3514 = vrot.slane %v3365, 5
        %v3515 = vrot.slane %v3514, 4
        %v3516 = vrot.slane %v3366, 5
        %v3517 = vsel %vm1587, %v3515, %v3516
        %v3518 = vrot.slane %v3516, 4
        %v3519 = vrot.slane %v3367, 5
        %v3520 = vsel %vm1587, %v3518, %v3519
        %v3521 = vrot.slane %v3368, 5
        %v3522 = vrot.slane %v3521, 4
        %v3523 = vrot.slane %v3369, 5
        %v3524 = vsel %vm1587, %v3522, %v3523
        %v3525 = vrot.slane %v3523, 4
        %v3526 = vrot.slane %v3370, 5
        %v3527 = vsel %vm1587, %v3525, %v3526
        %v3528 = vrot.slane %v3371, 5
        %v3529 = vrot.slane %v3528, 4
        %v3530 = vrot.slane %v3372, 5
        %v3531 = vsel %vm1587, %v3529, %v3530
        %v3532 = vrot.slane %v3530, 4
        %v3533 = vrot.slane %v3373, 5
        %v3534 = vsel %vm1587, %v3532, %v3533
        %v3535 = vrot.slane %v3374, 5
        %v3536 = vrot.slane %v3535, 4
        %v3537 = vrot.slane %v3375, 5
        %v3538 = vsel %vm1587, %v3536, %v3537
        %v3539 = vrot.slane %v3537, 4
        %v3540 = vrot.slane %v3376, 5
        %v3541 = vsel %vm1587, %v3539, %v3540
        %v3542 = vrot.slane %v3377, 5
        %v3543 = vrot.slane %v3542, 4
        %v3544 = vrot.slane %v3378, 5
        %v3545 = vsel %vm1587, %v3543, %v3544
        %v3546 = vrot.slane %v3544, 4
        %v3547 = vrot.slane %v3379, 5
        %v3548 = vsel %vm1587, %v3546, %v3547
        %v3549 = vrot.slane %v3380, 5
        %v3550 = vrot.slane %v3549, 4
        %v3551 = vrot.slane %v3381, 5
        %v3552 = vsel %vm1587, %v3550, %v3551
        %v3553 = vrot.slane %v3551, 4
        %v3554 = vrot.slane %v3382, 5
        %v3555 = vsel %vm1587, %v3553, %v3554
        %v3556 = vrot.slane %v3383, 5
        %v3557 = vrot.slane %v3556, 4
        %v3558 = vrot.slane %v3384, 5
        %v3559 = vsel %vm1587, %v3557, %v3558
        %v3560 = vrot.slane %v3558, 4
        %v3561 = vrot.slane %v3385, 5
        %v3562 = vsel %vm1587, %v3560, %v3561
        %v3563 = vunpack.c.l.b16 %v3454
        %v3564 = vunpack.c.l.b16 %v3457
        %v3565 = vunpack.c.l.b16 %v3461
        %v3566 = vunpack.c.l.b16 %v3464
        %v3567 = vunpack.c.l.b16 %v3468
        %v3568 = vunpack.c.l.b16 %v3471
        %v3569 = vunpack.c.l.b16 %v3475
        %v3570 = vunpack.c.l.b16 %v3478
        %v3571 = vunpack.c.l.b16 %v3482
        %v3572 = vunpack.c.l.b16 %v3485
        %v3573 = vunpack.c.l.b16 %v3489
        %v3574 = vunpack.c.l.b16 %v3492
        %v3575 = vunpack.c.l.b16 %v3496
        %v3576 = vunpack.c.l.b16 %v3499
        %v3577 = vunpack.c.l.b16 %v3503
        %v3578 = vunpack.c.l.b16 %v3506
        %v3579 = vunpack.c.l.b16 %v3510
        %v3580 = vunpack.c.l.b16 %v3513
        %v3581 = vunpack.c.l.b16 %v3517
        %v3582 = vunpack.c.l.b16 %v3520
        %v3583 = vunpack.c.l.b16 %v3524
        %v3584 = vunpack.c.l.b16 %v3527
        %v3585 = vunpack.c.l.b16 %v3531
        %v3586 = vunpack.c.l.b16 %v3534
        %v3587 = vunpack.c.l.b16 %v3538
        %v3588 = vunpack.c.l.b16 %v3541
        %v3589 = vunpack.c.l.b16 %v3545
        %v3590 = vunpack.c.l.b16 %v3548
        %v3591 = vunpack.c.l.b16 %v3552
        %v3592 = vunpack.c.l.b16 %v3555
        %v3593 = vunpack.c.l.b16 %v3559
        %v3594 = vunpack.c.l.b16 %v3562
        %v3595 = vpack.c.b16 %v3564, %v3563
        %v3596 = vpack.c.b16 %v3566, %v3565
        %v3597 = vpack.c.b16 %v3568, %v3567
        %v3598 = vpack.c.b16 %v3570, %v3569
        %v3599 = vpack.c.b16 %v3572, %v3571
        %v3600 = vpack.c.b16 %v3574, %v3573
        %v3601 = vpack.c.b16 %v3576, %v3575
        %v3602 = vpack.c.b16 %v3578, %v3577
        %v3603 = vpack.c.b16 %v3580, %v3579
        %v3604 = vpack.c.b16 %v3582, %v3581
        %v3605 = vpack.c.b16 %v3584, %v3583
        %v3606 = vpack.c.b16 %v3586, %v3585
        %v3607 = vpack.c.b16 %v3588, %v3587
        %v3608 = vpack.c.b16 %v3590, %v3589
        %v3609 = vpack.c.b16 %v3592, %v3591
        %v3610 = vpack.c.b16 %v3594, %v3593
        %v3643 = vunpack.c.l.b16 %v3387
        %v3644 = vunpack.c.l.b16 %v3388
        %v3645 = vunpack.c.l.b16 %v3389
        %v3646 = vunpack.c.l.b16 %v3390
        %v3647 = vunpack.c.l.b16 %v3391
        %v3648 = vunpack.c.l.b16 %v3392
        %v3649 = vunpack.c.l.b16 %v3393
        %v3650 = vunpack.c.l.b16 %v3394
        %v3651 = vunpack.c.l.b16 %v3395
        %v3652 = vunpack.c.l.b16 %v3396
        %v3653 = vunpack.c.l.b16 %v3397
        %v3654 = vunpack.c.l.b16 %v3398
        %v3655 = vunpack.c.l.b16 %v3399
        %v3656 = vunpack.c.l.b16 %v3400
        %v3657 = vunpack.c.l.b16 %v3401
        %v3658 = vunpack.c.l.b16 %v3402
        %v3659 = vpack.c.b16 %v3644, %v3643
        %v3660 = vpack.c.b16 %v3646, %v3645
        %v3661 = vpack.c.b16 %v3648, %v3647
        %v3662 = vpack.c.b16 %v3650, %v3649
        %v3663 = vpack.c.b16 %v3652, %v3651
        %v3664 = vpack.c.b16 %v3654, %v3653
        %v3665 = vpack.c.b16 %v3656, %v3655
        %v3666 = vpack.c.b16 %v3658, %v3657
        %3675 = vmatprep.subr.bf16.mxu0 0
        %3676 = vmatpush1.bf16.msra.mxu0 %v3666
        %3677 = vmatprep.subr.bf16.mxu0 0
        %3678 = vmatpush1.bf16.msra.mxu0 %v3665
        %3679 = vmatprep.subr.bf16.mxu0 0
        %3680 = vmatpush1.bf16.msra.mxu0 %v3664
        %3681 = vmatprep.subr.bf16.mxu0 0
        %3682 = vmatpush1.bf16.msra.mxu0 %v3663
        %3683 = vmatprep.subr.bf16.mxu0 0
        %3684 = vmatpush1.bf16.msra.mxu0 %v3662
        %3685 = vmatprep.subr.bf16.mxu0 0
        %3686 = vmatpush1.bf16.msra.mxu0 %v3661
        %3687 = vmatprep.subr.bf16.mxu0 0
        %3688 = vmatpush1.bf16.msra.mxu0 %v3660
        %3689 = vmatprep.subr.bf16.mxu0 0
        %3690 = vmatpush1.bf16.msra.mxu0 %v3659
        %3691 = vmatprep.subr.bf16.mxu0 0
        %3692 = vmatpush2.bf16.msra.mxu0 0
        %3693 = vmatprep.subr.bf16.mxu0 0
        %3694 = vmatpush2.bf16.msra.mxu0 0
        %3695 = vmatprep.subr.bf16.mxu0 0
        %3696 = vmatpush2.bf16.msra.mxu0 0
        %3697 = vmatprep.subr.bf16.mxu0 0
        %3698 = vmatpush2.bf16.msra.mxu0 0
        %3699 = vmatprep.subr.bf16.mxu0 0
        %3700 = vmatpush2.bf16.msra.mxu0 0
        %3701 = vmatprep.subr.bf16.mxu0 0
        %3702 = vmatpush2.bf16.msra.mxu0 0
        %3703 = vmatprep.subr.bf16.mxu0 0
        %3704 = vmatpush2.bf16.msra.mxu0 0
        %3705 = vmatprep.subr.bf16.mxu0 0
        %3706 = vmatpush2.bf16.msra.mxu0 0
        %3707 = vmatprep.mubr.bf16.mxu0 0
        %3708 = vmatmul.mubr.bf16.gmra.mxu0 %v3595
        %v3709 = vpop.f32.mrf.mxu0
        %v3710 = vadd.f32 0.0, %v3709
        %v3711 = vpop.f32.mrf.mxu0
        %v3712 = vpop.f32.mrf.mxu0
        %v3713 = vadd.f32 0.0, %v3712
        %v3714 = vpop.f32.mrf.mxu0
        %3715 = vmatprep.mubr.bf16.mxu0 0
        %3716 = vmatmul.mubr.bf16.gmra.mxu0 %v3596
        %v3717 = vpop.f32.mrf.mxu0
        %v3718 = vadd.f32 0.0, %v3717
        %v3719 = vpop.f32.mrf.mxu0
        %v3720 = vpop.f32.mrf.mxu0
        %v3721 = vadd.f32 0.0, %v3720
        %v3722 = vpop.f32.mrf.mxu0
        %3723 = vmatprep.mubr.bf16.mxu0 0
        %3724 = vmatmul.mubr.bf16.gmra.mxu0 %v3597
        %v3725 = vpop.f32.mrf.mxu0
        %v3726 = vadd.f32 0.0, %v3725
        %v3727 = vpop.f32.mrf.mxu0
        %v3728 = vpop.f32.mrf.mxu0
        %v3729 = vadd.f32 0.0, %v3728
        %v3730 = vpop.f32.mrf.mxu0
        %3731 = vmatprep.mubr.bf16.mxu0 0
        %3732 = vmatmul.mubr.bf16.gmra.mxu0 %v3598
        %v3733 = vpop.f32.mrf.mxu0
        %v3734 = vadd.f32 0.0, %v3733
        %v3735 = vpop.f32.mrf.mxu0
        %v3736 = vpop.f32.mrf.mxu0
        %v3737 = vadd.f32 0.0, %v3736
        %v3738 = vpop.f32.mrf.mxu0
        %3739 = vmatprep.mubr.bf16.mxu0 0
        %3740 = vmatmul.mubr.bf16.gmra.mxu0 %v3599
        %v3741 = vpop.f32.mrf.mxu0
        %v3742 = vadd.f32 0.0, %v3741
        %v3743 = vpop.f32.mrf.mxu0
        %v3744 = vpop.f32.mrf.mxu0
        %v3745 = vadd.f32 0.0, %v3744
        %v3746 = vpop.f32.mrf.mxu0
        %3747 = vmatprep.mubr.bf16.mxu0 0
        %3748 = vmatmul.mubr.bf16.gmra.mxu0 %v3600
        %v3749 = vpop.f32.mrf.mxu0
        %v3750 = vadd.f32 0.0, %v3749
        %v3751 = vpop.f32.mrf.mxu0
        %v3752 = vpop.f32.mrf.mxu0
        %v3753 = vadd.f32 0.0, %v3752
        %v3754 = vpop.f32.mrf.mxu0
        %3755 = vmatprep.mubr.bf16.mxu0 0
        %3756 = vmatmul.mubr.bf16.gmra.mxu0 %v3601
        %v3757 = vpop.f32.mrf.mxu0
        %v3758 = vadd.f32 0.0, %v3757
        %v3759 = vpop.f32.mrf.mxu0
        %v3760 = vpop.f32.mrf.mxu0
        %v3761 = vadd.f32 0.0, %v3760
        %v3762 = vpop.f32.mrf.mxu0
        %3763 = vmatprep.mubr.bf16.mxu0 0
        %3764 = vmatmul.mubr.bf16.gmra.mxu0 %v3602
        %v3765 = vpop.f32.mrf.mxu0
        %v3766 = vadd.f32 0.0, %v3765
        %v3767 = vpop.f32.mrf.mxu0
        %v3768 = vpop.f32.mrf.mxu0
        %v3769 = vadd.f32 0.0, %v3768
        %v3770 = vpop.f32.mrf.mxu0
        %3771 = vmatprep.mubr.bf16.mxu0 0
        %3772 = vmatmul.mubr.bf16.gmra.mxu0 %v3603
        %v3773 = vpop.f32.mrf.mxu0
        %v3774 = vadd.f32 0.0, %v3773
        %v3775 = vpop.f32.mrf.mxu0
        %v3776 = vpop.f32.mrf.mxu0
        %v3777 = vadd.f32 0.0, %v3776
        %v3778 = vpop.f32.mrf.mxu0
        %3779 = vmatprep.mubr.bf16.mxu0 0
        %3780 = vmatmul.mubr.bf16.gmra.mxu0 %v3604
        %v3781 = vpop.f32.mrf.mxu0
        %v3782 = vadd.f32 0.0, %v3781
        %v3783 = vpop.f32.mrf.mxu0
        %v3784 = vpop.f32.mrf.mxu0
        %v3785 = vadd.f32 0.0, %v3784
        %v3786 = vpop.f32.mrf.mxu0
        %3787 = vmatprep.mubr.bf16.mxu0 0
        %3788 = vmatmul.mubr.bf16.gmra.mxu0 %v3605
        %v3789 = vpop.f32.mrf.mxu0
        %v3790 = vadd.f32 0.0, %v3789
        %v3791 = vpop.f32.mrf.mxu0
        %v3792 = vpop.f32.mrf.mxu0
        %v3793 = vadd.f32 0.0, %v3792
        %v3794 = vpop.f32.mrf.mxu0
        %3795 = vmatprep.mubr.bf16.mxu0 0
        %3796 = vmatmul.mubr.bf16.gmra.mxu0 %v3606
        %v3797 = vpop.f32.mrf.mxu0
        %v3798 = vadd.f32 0.0, %v3797
        %v3799 = vpop.f32.mrf.mxu0
        %v3800 = vpop.f32.mrf.mxu0
        %v3801 = vadd.f32 0.0, %v3800
        %v3802 = vpop.f32.mrf.mxu0
        %3803 = vmatprep.mubr.bf16.mxu0 0
        %3804 = vmatmul.mubr.bf16.gmra.mxu0 %v3607
        %v3805 = vpop.f32.mrf.mxu0
        %v3806 = vadd.f32 0.0, %v3805
        %v3807 = vpop.f32.mrf.mxu0
        %v3808 = vpop.f32.mrf.mxu0
        %v3809 = vadd.f32 0.0, %v3808
        %v3810 = vpop.f32.mrf.mxu0
        %3811 = vmatprep.mubr.bf16.mxu0 0
        %3812 = vmatmul.mubr.bf16.gmra.mxu0 %v3608
        %v3813 = vpop.f32.mrf.mxu0
        %v3814 = vadd.f32 0.0, %v3813
        %v3815 = vpop.f32.mrf.mxu0
        %v3816 = vpop.f32.mrf.mxu0
        %v3817 = vadd.f32 0.0, %v3816
        %v3818 = vpop.f32.mrf.mxu0
        %3819 = vmatprep.mubr.bf16.mxu0 0
        %3820 = vmatmul.mubr.bf16.gmra.mxu0 %v3609
        %v3821 = vpop.f32.mrf.mxu0
        %v3822 = vadd.f32 0.0, %v3821
        %v3823 = vpop.f32.mrf.mxu0
        %v3824 = vpop.f32.mrf.mxu0
        %v3825 = vadd.f32 0.0, %v3824
        %v3826 = vpop.f32.mrf.mxu0
        %3827 = vmatprep.mubr.bf16.mxu0 0
        %3828 = vmatmul.mubr.bf16.gmra.mxu0 %v3610
        %v3829 = vpop.f32.mrf.mxu0
        %v3830 = vadd.f32 0.0, %v3829
        %v3831 = vpop.f32.mrf.mxu0
        %v3832 = vpop.f32.mrf.mxu0
        %v3833 = vadd.f32 0.0, %v3832
        %v3834 = vpop.f32.mrf.mxu0
        %3835 = vdwg.mxu0
        %v3836 = vld [vmem:[%s248] sm:$0xff]
        %v3837 = vld [vmem:[%s248 + $0x8] sm:$0xff]
        %v3838 = vld [vmem:[%s248 + $0x10] sm:$0xff]
        %v3839 = vld [vmem:[%s248 + $0x18] sm:$0xff]
        %v3840 = vld [vmem:[%s248 + $0x20] sm:$0xff]
        %v3841 = vld [vmem:[%s248 + $0x28] sm:$0xff]
        %v3842 = vld [vmem:[%s248 + $0x30] sm:$0xff]
        %v3843 = vld [vmem:[%s248 + $0x38] sm:$0xff]
        %v3844 = vld [vmem:[%s248 + $0x40] sm:$0xff]
        %v3845 = vld [vmem:[%s248 + $0x48] sm:$0xff]
        %v3846 = vld [vmem:[%s248 + $0x50] sm:$0xff]
        %v3847 = vld [vmem:[%s248 + $0x58] sm:$0xff]
        %v3848 = vld [vmem:[%s248 + $0x60] sm:$0xff]
        %v3849 = vld [vmem:[%s248 + $0x68] sm:$0xff]
        %v3850 = vld [vmem:[%s248 + $0x70] sm:$0xff]
        %v3851 = vld [vmem:[%s248 + $0x78] sm:$0xff]
        %v3852 = vld [vmem:[%s248 + $0x80] sm:$0xff]
        %v3853 = vld [vmem:[%s248 + $0x88] sm:$0xff]
        %v3854 = vld [vmem:[%s248 + $0x90] sm:$0xff]
        %v3855 = vld [vmem:[%s248 + $0x98] sm:$0xff]
        %v3856 = vld [vmem:[%s248 + $0xa0] sm:$0xff]
        %v3857 = vld [vmem:[%s248 + $0xa8] sm:$0xff]
        %v3858 = vld [vmem:[%s248 + $0xb0] sm:$0xff]
        %v3859 = vld [vmem:[%s248 + $0xb8] sm:$0xff]
        %v3860 = vld [vmem:[%s248 + $0xc0] sm:$0xff]
        %v3861 = vld [vmem:[%s248 + $0xc8] sm:$0xff]
        %v3862 = vld [vmem:[%s248 + $0xd0] sm:$0xff]
        %v3863 = vld [vmem:[%s248 + $0xd8] sm:$0xff]
        %v3864 = vld [vmem:[%s248 + $0xe0] sm:$0xff]
        %v3865 = vld [vmem:[%s248 + $0xe8] sm:$0xff]
        %v3866 = vld [vmem:[%s248 + $0xf0] sm:$0xff]
        %v3867 = vld [vmem:[%s248 + $0xf8] sm:$0xff]
        %v3868 = vadd.f32 %v3836, %v3710
        %v3869 = vadd.f32 %v3837, %v3713
        %v3870 = vadd.f32 %v3838, %v3718
        %v3871 = vadd.f32 %v3839, %v3721
        %v3872 = vadd.f32 %v3840, %v3726
        %v3873 = vadd.f32 %v3841, %v3729
        %v3874 = vadd.f32 %v3842, %v3734
        %v3875 = vadd.f32 %v3843, %v3737
        %v3876 = vadd.f32 %v3844, %v3742
        %v3877 = vadd.f32 %v3845, %v3745
        %v3878 = vadd.f32 %v3846, %v3750
        %v3879 = vadd.f32 %v3847, %v3753
        %v3880 = vadd.f32 %v3848, %v3758
        %v3881 = vadd.f32 %v3849, %v3761
        %v3882 = vadd.f32 %v3850, %v3766
        %v3883 = vadd.f32 %v3851, %v3769
        %v3884 = vadd.f32 %v3852, %v3774
        %v3885 = vadd.f32 %v3853, %v3777
        %v3886 = vadd.f32 %v3854, %v3782
        %v3887 = vadd.f32 %v3855, %v3785
        %v3888 = vadd.f32 %v3856, %v3790
        %v3889 = vadd.f32 %v3857, %v3793
        %v3890 = vadd.f32 %v3858, %v3798
        %v3891 = vadd.f32 %v3859, %v3801
        %v3892 = vadd.f32 %v3860, %v3806
        %v3893 = vadd.f32 %v3861, %v3809
        %v3894 = vadd.f32 %v3862, %v3814
        %v3895 = vadd.f32 %v3863, %v3817
        %v3896 = vadd.f32 %v3864, %v3822
        %v3897 = vadd.f32 %v3865, %v3825
        %v3898 = vadd.f32 %v3866, %v3830
        %v3899 = vadd.f32 %v3867, %v3833
        %3900 = vst [vmem:[%s248] sm:$0xff] %v3868
        %3901 = vst [vmem:[%s248 + $0x8] sm:$0xff] %v3869
        %3902 = vst [vmem:[%s248 + $0x10] sm:$0xff] %v3870
        %3903 = vst [vmem:[%s248 + $0x18] sm:$0xff] %v3871
        %3904 = vst [vmem:[%s248 + $0x20] sm:$0xff] %v3872
        %3905 = vst [vmem:[%s248 + $0x28] sm:$0xff] %v3873
        %3906 = vst [vmem:[%s248 + $0x30] sm:$0xff] %v3874
        %3907 = vst [vmem:[%s248 + $0x38] sm:$0xff] %v3875
        %3908 = vst [vmem:[%s248 + $0x40] sm:$0xff] %v3876
        %3909 = vst [vmem:[%s248 + $0x48] sm:$0xff] %v3877
        %3910 = vst [vmem:[%s248 + $0x50] sm:$0xff] %v3878
        %3911 = vst [vmem:[%s248 + $0x58] sm:$0xff] %v3879
        %3912 = vst [vmem:[%s248 + $0x60] sm:$0xff] %v3880
        %3913 = vst [vmem:[%s248 + $0x68] sm:$0xff] %v3881
        %3914 = vst [vmem:[%s248 + $0x70] sm:$0xff] %v3882
        %3915 = vst [vmem:[%s248 + $0x78] sm:$0xff] %v3883
        %3916 = vst [vmem:[%s248 + $0x80] sm:$0xff] %v3884
        %3917 = vst [vmem:[%s248 + $0x88] sm:$0xff] %v3885
        %3918 = vst [vmem:[%s248 + $0x90] sm:$0xff] %v3886
        %3919 = vst [vmem:[%s248 + $0x98] sm:$0xff] %v3887
        %3920 = vst [vmem:[%s248 + $0xa0] sm:$0xff] %v3888
        %3921 = vst [vmem:[%s248 + $0xa8] sm:$0xff] %v3889
        %3922 = vst [vmem:[%s248 + $0xb0] sm:$0xff] %v3890
        %3923 = vst [vmem:[%s248 + $0xb8] sm:$0xff] %v3891
        %3924 = vst [vmem:[%s248 + $0xc0] sm:$0xff] %v3892
        %3925 = vst [vmem:[%s248 + $0xc8] sm:$0xff] %v3893
        %3926 = vst [vmem:[%s248 + $0xd0] sm:$0xff] %v3894
        %3927 = vst [vmem:[%s248 + $0xd8] sm:$0xff] %v3895
        %3928 = vst [vmem:[%s248 + $0xe0] sm:$0xff] %v3896
        %3929 = vst [vmem:[%s248 + $0xe8] sm:$0xff] %v3897
        %3930 = vst [vmem:[%s248 + $0xf0] sm:$0xff] %v3898
        %3931 = vst [vmem:[%s248 + $0xf8] sm:$0xff] %v3899
        %s3932 = scalar_lea.vmem %s253, 24
        %v3933 = vld [vmem:[%s3932] sm:$0xf]
        %v3934 = vld [vmem:[%s3932 + $0x4] sm:$0xf]
        %v3935 = vld [vmem:[%s3932 + $0xc] sm:$0xf]
        %v3936 = vld [vmem:[%s3932 + $0x10] sm:$0xf]
        %v3937 = vld [vmem:[%s3932 + $0x18] sm:$0xf]
        %v3938 = vld [vmem:[%s3932 + $0x1c] sm:$0xf]
        %v3939 = vld [vmem:[%s3932 + $0x24] sm:$0xf]
        %v3940 = vld [vmem:[%s3932 + $0x28] sm:$0xf]
        %v3941 = vld [vmem:[%s3932 + $0x30] sm:$0xf]
        %v3942 = vld [vmem:[%s3932 + $0x34] sm:$0xf]
        %v3943 = vld [vmem:[%s3932 + $0x3c] sm:$0xf]
        %v3944 = vld [vmem:[%s3932 + $0x40] sm:$0xf]
        %v3945 = vld [vmem:[%s3932 + $0x48] sm:$0xf]
        %v3946 = vld [vmem:[%s3932 + $0x4c] sm:$0xf]
        %v3947 = vld [vmem:[%s3932 + $0x54] sm:$0xf]
        %v3948 = vld [vmem:[%s3932 + $0x58] sm:$0xf]
        %v3949 = vld [vmem:[%s3932 + $0x60] sm:$0xf]
        %v3950 = vld [vmem:[%s3932 + $0x64] sm:$0xf]
        %v3951 = vld [vmem:[%s3932 + $0x6c] sm:$0xf]
        %v3952 = vld [vmem:[%s3932 + $0x70] sm:$0xf]
        %v3953 = vld [vmem:[%s3932 + $0x78] sm:$0xf]
        %v3954 = vld [vmem:[%s3932 + $0x7c] sm:$0xf]
        %v3955 = vld [vmem:[%s3932 + $0x84] sm:$0xf]
        %v3956 = vld [vmem:[%s3932 + $0x88] sm:$0xf]
        %v3957 = vld [vmem:[%s3932 + $0x90] sm:$0xf]
        %v3958 = vld [vmem:[%s3932 + $0x94] sm:$0xf]
        %v3959 = vld [vmem:[%s3932 + $0x9c] sm:$0xf]
        %v3960 = vld [vmem:[%s3932 + $0xa0] sm:$0xf]
        %v3961 = vld [vmem:[%s3932 + $0xa8] sm:$0xf]
        %v3962 = vld [vmem:[%s3932 + $0xac] sm:$0xf]
        %v3963 = vld [vmem:[%s3932 + $0xb4] sm:$0xf]
        %v3964 = vld [vmem:[%s3932 + $0xb8] sm:$0xf]
        %s3965 = scalar_lea.vmem %s257, 384
        %v3966 = vld [vmem:[%s3965] sm:$0xf]
        %v3967 = vld [vmem:[%s3965 + $0x4] sm:$0xf]
        %v3968 = vld [vmem:[%s3965 + $0x8] sm:$0xf]
        %v3969 = vld [vmem:[%s3965 + $0xc] sm:$0xf]
        %v3970 = vld [vmem:[%s3965 + $0x10] sm:$0xf]
        %v3971 = vld [vmem:[%s3965 + $0x14] sm:$0xf]
        %v3972 = vld [vmem:[%s3965 + $0x18] sm:$0xf]
        %v3973 = vld [vmem:[%s3965 + $0x1c] sm:$0xf]
        %v3974 = vld [vmem:[%s3965 + $0x20] sm:$0xf]
        %v3975 = vld [vmem:[%s3965 + $0x24] sm:$0xf]
        %v3976 = vld [vmem:[%s3965 + $0x28] sm:$0xf]
        %v3977 = vld [vmem:[%s3965 + $0x2c] sm:$0xf]
        %v3978 = vld [vmem:[%s3965 + $0x30] sm:$0xf]
        %v3979 = vld [vmem:[%s3965 + $0x34] sm:$0xf]
        %v3980 = vld [vmem:[%s3965 + $0x38] sm:$0xf]
        %v3981 = vld [vmem:[%s3965 + $0x3c] sm:$0xf]
        %v4014 = vunpack.c.l.b16 %v3933
        %v4015 = vunpack.c.l.b16 %v3934
        %v4016 = vunpack.c.l.b16 %v3935
        %v4017 = vunpack.c.l.b16 %v3936
        %v4018 = vunpack.c.l.b16 %v3937
        %v4019 = vunpack.c.l.b16 %v3938
        %v4020 = vunpack.c.l.b16 %v3939
        %v4021 = vunpack.c.l.b16 %v3940
        %v4022 = vunpack.c.l.b16 %v3941
        %v4023 = vunpack.c.l.b16 %v3942
        %v4024 = vunpack.c.l.b16 %v3943
        %v4025 = vunpack.c.l.b16 %v3944
        %v4026 = vunpack.c.l.b16 %v3945
        %v4027 = vunpack.c.l.b16 %v3946
        %v4028 = vunpack.c.l.b16 %v3947
        %v4029 = vunpack.c.l.b16 %v3948
        %v4030 = vunpack.c.l.b16 %v3949
        %v4031 = vunpack.c.l.b16 %v3950
        %v4032 = vunpack.c.l.b16 %v3951
        %v4033 = vunpack.c.l.b16 %v3952
        %v4034 = vunpack.c.l.b16 %v3953
        %v4035 = vunpack.c.l.b16 %v3954
        %v4036 = vunpack.c.l.b16 %v3955
        %v4037 = vunpack.c.l.b16 %v3956
        %v4038 = vunpack.c.l.b16 %v3957
        %v4039 = vunpack.c.l.b16 %v3958
        %v4040 = vunpack.c.l.b16 %v3959
        %v4041 = vunpack.c.l.b16 %v3960
        %v4042 = vunpack.c.l.b16 %v3961
        %v4043 = vunpack.c.l.b16 %v3962
        %v4044 = vunpack.c.l.b16 %v3963
        %v4045 = vunpack.c.l.b16 %v3964
        %v4046 = vpack.c.b16 %v4015, %v4014
        %v4047 = vpack.c.b16 %v4017, %v4016
        %v4048 = vpack.c.b16 %v4019, %v4018
        %v4049 = vpack.c.b16 %v4021, %v4020
        %v4050 = vpack.c.b16 %v4023, %v4022
        %v4051 = vpack.c.b16 %v4025, %v4024
        %v4052 = vpack.c.b16 %v4027, %v4026
        %v4053 = vpack.c.b16 %v4029, %v4028
        %v4054 = vpack.c.b16 %v4031, %v4030
        %v4055 = vpack.c.b16 %v4033, %v4032
        %v4056 = vpack.c.b16 %v4035, %v4034
        %v4057 = vpack.c.b16 %v4037, %v4036
        %v4058 = vpack.c.b16 %v4039, %v4038
        %v4059 = vpack.c.b16 %v4041, %v4040
        %v4060 = vpack.c.b16 %v4043, %v4042
        %v4061 = vpack.c.b16 %v4045, %v4044
        %v4094 = vunpack.c.l.b16 %v3966
        %v4095 = vunpack.c.l.b16 %v3967
        %v4096 = vunpack.c.l.b16 %v3968
        %v4097 = vunpack.c.l.b16 %v3969
        %v4098 = vunpack.c.l.b16 %v3970
        %v4099 = vunpack.c.l.b16 %v3971
        %v4100 = vunpack.c.l.b16 %v3972
        %v4101 = vunpack.c.l.b16 %v3973
        %v4102 = vunpack.c.l.b16 %v3974
        %v4103 = vunpack.c.l.b16 %v3975
        %v4104 = vunpack.c.l.b16 %v3976
        %v4105 = vunpack.c.l.b16 %v3977
        %v4106 = vunpack.c.l.b16 %v3978
        %v4107 = vunpack.c.l.b16 %v3979
        %v4108 = vunpack.c.l.b16 %v3980
        %v4109 = vunpack.c.l.b16 %v3981
        %v4110 = vpack.c.b16 %v4095, %v4094
        %v4111 = vpack.c.b16 %v4097, %v4096
        %v4112 = vpack.c.b16 %v4099, %v4098
        %v4113 = vpack.c.b16 %v4101, %v4100
        %v4114 = vpack.c.b16 %v4103, %v4102
        %v4115 = vpack.c.b16 %v4105, %v4104
        %v4116 = vpack.c.b16 %v4107, %v4106
        %v4117 = vpack.c.b16 %v4109, %v4108
        %4126 = vmatprep.subr.bf16.mxu0 0
        %4127 = vmatpush1.bf16.msra.mxu0 %v4117
        %4128 = vmatprep.subr.bf16.mxu0 0
        %4129 = vmatpush1.bf16.msra.mxu0 %v4116
        %4130 = vmatprep.subr.bf16.mxu0 0
        %4131 = vmatpush1.bf16.msra.mxu0 %v4115
        %4132 = vmatprep.subr.bf16.mxu0 0
        %4133 = vmatpush1.bf16.msra.mxu0 %v4114
        %4134 = vmatprep.subr.bf16.mxu0 0
        %4135 = vmatpush1.bf16.msra.mxu0 %v4113
        %4136 = vmatprep.subr.bf16.mxu0 0
        %4137 = vmatpush1.bf16.msra.mxu0 %v4112
        %4138 = vmatprep.subr.bf16.mxu0 0
        %4139 = vmatpush1.bf16.msra.mxu0 %v4111
        %4140 = vmatprep.subr.bf16.mxu0 0
        %4141 = vmatpush1.bf16.msra.mxu0 %v4110
        %4142 = vmatprep.subr.bf16.mxu0 0
        %4143 = vmatpush2.bf16.msra.mxu0 0
        %4144 = vmatprep.subr.bf16.mxu0 0
        %4145 = vmatpush2.bf16.msra.mxu0 0
        %4146 = vmatprep.subr.bf16.mxu0 0
        %4147 = vmatpush2.bf16.msra.mxu0 0
        %4148 = vmatprep.subr.bf16.mxu0 0
        %4149 = vmatpush2.bf16.msra.mxu0 0
        %4150 = vmatprep.subr.bf16.mxu0 0
        %4151 = vmatpush2.bf16.msra.mxu0 0
        %4152 = vmatprep.subr.bf16.mxu0 0
        %4153 = vmatpush2.bf16.msra.mxu0 0
        %4154 = vmatprep.subr.bf16.mxu0 0
        %4155 = vmatpush2.bf16.msra.mxu0 0
        %4156 = vmatprep.subr.bf16.mxu0 0
        %4157 = vmatpush2.bf16.msra.mxu0 0
        %4158 = vmatprep.mubr.bf16.mxu0 0
        %4159 = vmatmul.mubr.bf16.gmra.mxu0 %v4046
        %v4160 = vpop.f32.mrf.mxu0
        %v4161 = vadd.f32 0.0, %v4160
        %v4162 = vpop.f32.mrf.mxu0
        %v4163 = vpop.f32.mrf.mxu0
        %v4164 = vadd.f32 0.0, %v4163
        %v4165 = vpop.f32.mrf.mxu0
        %4166 = vmatprep.mubr.bf16.mxu0 0
        %4167 = vmatmul.mubr.bf16.gmra.mxu0 %v4047
        %v4168 = vpop.f32.mrf.mxu0
        %v4169 = vadd.f32 0.0, %v4168
        %v4170 = vpop.f32.mrf.mxu0
        %v4171 = vpop.f32.mrf.mxu0
        %v4172 = vadd.f32 0.0, %v4171
        %v4173 = vpop.f32.mrf.mxu0
        %4174 = vmatprep.mubr.bf16.mxu0 0
        %4175 = vmatmul.mubr.bf16.gmra.mxu0 %v4048
        %v4176 = vpop.f32.mrf.mxu0
        %v4177 = vadd.f32 0.0, %v4176
        %v4178 = vpop.f32.mrf.mxu0
        %v4179 = vpop.f32.mrf.mxu0
        %v4180 = vadd.f32 0.0, %v4179
        %v4181 = vpop.f32.mrf.mxu0
        %4182 = vmatprep.mubr.bf16.mxu0 0
        %4183 = vmatmul.mubr.bf16.gmra.mxu0 %v4049
        %v4184 = vpop.f32.mrf.mxu0
        %v4185 = vadd.f32 0.0, %v4184
        %v4186 = vpop.f32.mrf.mxu0
        %v4187 = vpop.f32.mrf.mxu0
        %v4188 = vadd.f32 0.0, %v4187
        %v4189 = vpop.f32.mrf.mxu0
        %4190 = vmatprep.mubr.bf16.mxu0 0
        %4191 = vmatmul.mubr.bf16.gmra.mxu0 %v4050
        %v4192 = vpop.f32.mrf.mxu0
        %v4193 = vadd.f32 0.0, %v4192
        %v4194 = vpop.f32.mrf.mxu0
        %v4195 = vpop.f32.mrf.mxu0
        %v4196 = vadd.f32 0.0, %v4195
        %v4197 = vpop.f32.mrf.mxu0
        %4198 = vmatprep.mubr.bf16.mxu0 0
        %4199 = vmatmul.mubr.bf16.gmra.mxu0 %v4051
        %v4200 = vpop.f32.mrf.mxu0
        %v4201 = vadd.f32 0.0, %v4200
        %v4202 = vpop.f32.mrf.mxu0
        %v4203 = vpop.f32.mrf.mxu0
        %v4204 = vadd.f32 0.0, %v4203
        %v4205 = vpop.f32.mrf.mxu0
        %4206 = vmatprep.mubr.bf16.mxu0 0
        %4207 = vmatmul.mubr.bf16.gmra.mxu0 %v4052
        %v4208 = vpop.f32.mrf.mxu0
        %v4209 = vadd.f32 0.0, %v4208
        %v4210 = vpop.f32.mrf.mxu0
        %v4211 = vpop.f32.mrf.mxu0
        %v4212 = vadd.f32 0.0, %v4211
        %v4213 = vpop.f32.mrf.mxu0
        %4214 = vmatprep.mubr.bf16.mxu0 0
        %4215 = vmatmul.mubr.bf16.gmra.mxu0 %v4053
        %v4216 = vpop.f32.mrf.mxu0
        %v4217 = vadd.f32 0.0, %v4216
        %v4218 = vpop.f32.mrf.mxu0
        %v4219 = vpop.f32.mrf.mxu0
        %v4220 = vadd.f32 0.0, %v4219
        %v4221 = vpop.f32.mrf.mxu0
        %4222 = vmatprep.mubr.bf16.mxu0 0
        %4223 = vmatmul.mubr.bf16.gmra.mxu0 %v4054
        %v4224 = vpop.f32.mrf.mxu0
        %v4225 = vadd.f32 0.0, %v4224
        %v4226 = vpop.f32.mrf.mxu0
        %v4227 = vpop.f32.mrf.mxu0
        %v4228 = vadd.f32 0.0, %v4227
        %v4229 = vpop.f32.mrf.mxu0
        %4230 = vmatprep.mubr.bf16.mxu0 0
        %4231 = vmatmul.mubr.bf16.gmra.mxu0 %v4055
        %v4232 = vpop.f32.mrf.mxu0
        %v4233 = vadd.f32 0.0, %v4232
        %v4234 = vpop.f32.mrf.mxu0
        %v4235 = vpop.f32.mrf.mxu0
        %v4236 = vadd.f32 0.0, %v4235
        %v4237 = vpop.f32.mrf.mxu0
        %4238 = vmatprep.mubr.bf16.mxu0 0
        %4239 = vmatmul.mubr.bf16.gmra.mxu0 %v4056
        %v4240 = vpop.f32.mrf.mxu0
        %v4241 = vadd.f32 0.0, %v4240
        %v4242 = vpop.f32.mrf.mxu0
        %v4243 = vpop.f32.mrf.mxu0
        %v4244 = vadd.f32 0.0, %v4243
        %v4245 = vpop.f32.mrf.mxu0
        %4246 = vmatprep.mubr.bf16.mxu0 0
        %4247 = vmatmul.mubr.bf16.gmra.mxu0 %v4057
        %v4248 = vpop.f32.mrf.mxu0
        %v4249 = vadd.f32 0.0, %v4248
        %v4250 = vpop.f32.mrf.mxu0
        %v4251 = vpop.f32.mrf.mxu0
        %v4252 = vadd.f32 0.0, %v4251
        %v4253 = vpop.f32.mrf.mxu0
        %4254 = vmatprep.mubr.bf16.mxu0 0
        %4255 = vmatmul.mubr.bf16.gmra.mxu0 %v4058
        %v4256 = vpop.f32.mrf.mxu0
        %v4257 = vadd.f32 0.0, %v4256
        %v4258 = vpop.f32.mrf.mxu0
        %v4259 = vpop.f32.mrf.mxu0
        %v4260 = vadd.f32 0.0, %v4259
        %v4261 = vpop.f32.mrf.mxu0
        %4262 = vmatprep.mubr.bf16.mxu0 0
        %4263 = vmatmul.mubr.bf16.gmra.mxu0 %v4059
        %v4264 = vpop.f32.mrf.mxu0
        %v4265 = vadd.f32 0.0, %v4264
        %v4266 = vpop.f32.mrf.mxu0
        %v4267 = vpop.f32.mrf.mxu0
        %v4268 = vadd.f32 0.0, %v4267
        %v4269 = vpop.f32.mrf.mxu0
        %4270 = vmatprep.mubr.bf16.mxu0 0
        %4271 = vmatmul.mubr.bf16.gmra.mxu0 %v4060
        %v4272 = vpop.f32.mrf.mxu0
        %v4273 = vadd.f32 0.0, %v4272
        %v4274 = vpop.f32.mrf.mxu0
        %v4275 = vpop.f32.mrf.mxu0
        %v4276 = vadd.f32 0.0, %v4275
        %v4277 = vpop.f32.mrf.mxu0
        %4278 = vmatprep.mubr.bf16.mxu0 0
        %4279 = vmatmul.mubr.bf16.gmra.mxu0 %v4061
        %v4280 = vpop.f32.mrf.mxu0
        %v4281 = vadd.f32 0.0, %v4280
        %v4282 = vpop.f32.mrf.mxu0
        %v4283 = vpop.f32.mrf.mxu0
        %v4284 = vadd.f32 0.0, %v4283
        %v4285 = vpop.f32.mrf.mxu0
        %4286 = vdwg.mxu0
        %v4287 = vld [vmem:[%s248] sm:$0xff]
        %v4288 = vld [vmem:[%s248 + $0x8] sm:$0xff]
        %v4289 = vld [vmem:[%s248 + $0x10] sm:$0xff]
        %v4290 = vld [vmem:[%s248 + $0x18] sm:$0xff]
        %v4291 = vld [vmem:[%s248 + $0x20] sm:$0xff]
        %v4292 = vld [vmem:[%s248 + $0x28] sm:$0xff]
        %v4293 = vld [vmem:[%s248 + $0x30] sm:$0xff]
        %v4294 = vld [vmem:[%s248 + $0x38] sm:$0xff]
        %v4295 = vld [vmem:[%s248 + $0x40] sm:$0xff]
        %v4296 = vld [vmem:[%s248 + $0x48] sm:$0xff]
        %v4297 = vld [vmem:[%s248 + $0x50] sm:$0xff]
        %v4298 = vld [vmem:[%s248 + $0x58] sm:$0xff]
        %v4299 = vld [vmem:[%s248 + $0x60] sm:$0xff]
        %v4300 = vld [vmem:[%s248 + $0x68] sm:$0xff]
        %v4301 = vld [vmem:[%s248 + $0x70] sm:$0xff]
        %v4302 = vld [vmem:[%s248 + $0x78] sm:$0xff]
        %v4303 = vld [vmem:[%s248 + $0x80] sm:$0xff]
        %v4304 = vld [vmem:[%s248 + $0x88] sm:$0xff]
        %v4305 = vld [vmem:[%s248 + $0x90] sm:$0xff]
        %v4306 = vld [vmem:[%s248 + $0x98] sm:$0xff]
        %v4307 = vld [vmem:[%s248 + $0xa0] sm:$0xff]
        %v4308 = vld [vmem:[%s248 + $0xa8] sm:$0xff]
        %v4309 = vld [vmem:[%s248 + $0xb0] sm:$0xff]
        %v4310 = vld [vmem:[%s248 + $0xb8] sm:$0xff]
        %v4311 = vld [vmem:[%s248 + $0xc0] sm:$0xff]
        %v4312 = vld [vmem:[%s248 + $0xc8] sm:$0xff]
        %v4313 = vld [vmem:[%s248 + $0xd0] sm:$0xff]
        %v4314 = vld [vmem:[%s248 + $0xd8] sm:$0xff]
        %v4315 = vld [vmem:[%s248 + $0xe0] sm:$0xff]
        %v4316 = vld [vmem:[%s248 + $0xe8] sm:$0xff]
        %v4317 = vld [vmem:[%s248 + $0xf0] sm:$0xff]
        %v4318 = vld [vmem:[%s248 + $0xf8] sm:$0xff]
        %v4319 = vadd.f32 %v4287, %v4161
        %v4320 = vadd.f32 %v4288, %v4164
        %v4321 = vadd.f32 %v4289, %v4169
        %v4322 = vadd.f32 %v4290, %v4172
        %v4323 = vadd.f32 %v4291, %v4177
        %v4324 = vadd.f32 %v4292, %v4180
        %v4325 = vadd.f32 %v4293, %v4185
        %v4326 = vadd.f32 %v4294, %v4188
        %v4327 = vadd.f32 %v4295, %v4193
        %v4328 = vadd.f32 %v4296, %v4196
        %v4329 = vadd.f32 %v4297, %v4201
        %v4330 = vadd.f32 %v4298, %v4204
        %v4331 = vadd.f32 %v4299, %v4209
        %v4332 = vadd.f32 %v4300, %v4212
        %v4333 = vadd.f32 %v4301, %v4217
        %v4334 = vadd.f32 %v4302, %v4220
        %v4335 = vadd.f32 %v4303, %v4225
        %v4336 = vadd.f32 %v4304, %v4228
        %v4337 = vadd.f32 %v4305, %v4233
        %v4338 = vadd.f32 %v4306, %v4236
        %v4339 = vadd.f32 %v4307, %v4241
        %v4340 = vadd.f32 %v4308, %v4244
        %v4341 = vadd.f32 %v4309, %v4249
        %v4342 = vadd.f32 %v4310, %v4252
        %v4343 = vadd.f32 %v4311, %v4257
        %v4344 = vadd.f32 %v4312, %v4260
        %v4345 = vadd.f32 %v4313, %v4265
        %v4346 = vadd.f32 %v4314, %v4268
        %v4347 = vadd.f32 %v4315, %v4273
        %v4348 = vadd.f32 %v4316, %v4276
        %v4349 = vadd.f32 %v4317, %v4281
        %v4350 = vadd.f32 %v4318, %v4284
        %4351 = vst [vmem:[%s248] sm:$0xff] %v4319
        %4352 = vst [vmem:[%s248 + $0x8] sm:$0xff] %v4320
        %4353 = vst [vmem:[%s248 + $0x10] sm:$0xff] %v4321
        %4354 = vst [vmem:[%s248 + $0x18] sm:$0xff] %v4322
        %4355 = vst [vmem:[%s248 + $0x20] sm:$0xff] %v4323
        %4356 = vst [vmem:[%s248 + $0x28] sm:$0xff] %v4324
        %4357 = vst [vmem:[%s248 + $0x30] sm:$0xff] %v4325
        %4358 = vst [vmem:[%s248 + $0x38] sm:$0xff] %v4326
        %4359 = vst [vmem:[%s248 + $0x40] sm:$0xff] %v4327
        %4360 = vst [vmem:[%s248 + $0x48] sm:$0xff] %v4328
        %4361 = vst [vmem:[%s248 + $0x50] sm:$0xff] %v4329
        %4362 = vst [vmem:[%s248 + $0x58] sm:$0xff] %v4330
        %4363 = vst [vmem:[%s248 + $0x60] sm:$0xff] %v4331
        %4364 = vst [vmem:[%s248 + $0x68] sm:$0xff] %v4332
        %4365 = vst [vmem:[%s248 + $0x70] sm:$0xff] %v4333
        %4366 = vst [vmem:[%s248 + $0x78] sm:$0xff] %v4334
        %4367 = vst [vmem:[%s248 + $0x80] sm:$0xff] %v4335
        %4368 = vst [vmem:[%s248 + $0x88] sm:$0xff] %v4336
        %4369 = vst [vmem:[%s248 + $0x90] sm:$0xff] %v4337
        %4370 = vst [vmem:[%s248 + $0x98] sm:$0xff] %v4338
        %4371 = vst [vmem:[%s248 + $0xa0] sm:$0xff] %v4339
        %4372 = vst [vmem:[%s248 + $0xa8] sm:$0xff] %v4340
        %4373 = vst [vmem:[%s248 + $0xb0] sm:$0xff] %v4341
        %4374 = vst [vmem:[%s248 + $0xb8] sm:$0xff] %v4342
        %4375 = vst [vmem:[%s248 + $0xc0] sm:$0xff] %v4343
        %4376 = vst [vmem:[%s248 + $0xc8] sm:$0xff] %v4344
        %4377 = vst [vmem:[%s248 + $0xd0] sm:$0xff] %v4345
        %4378 = vst [vmem:[%s248 + $0xd8] sm:$0xff] %v4346
        %4379 = vst [vmem:[%s248 + $0xe0] sm:$0xff] %v4347
        %4380 = vst [vmem:[%s248 + $0xe8] sm:$0xff] %v4348
        %4381 = vst [vmem:[%s248 + $0xf0] sm:$0xff] %v4349
        %4382 = vst [vmem:[%s248 + $0xf8] sm:$0xff] %v4350
        %v4383 = vld [vmem:[%s3932] sm:$0xf]
        %v4384 = vld [vmem:[%s3932 + $0x4] sm:$0xf]
        %v4385 = vld [vmem:[%s3932 + $0x8] sm:$0x1]
        %v4386 = vld [vmem:[%s3932 + $0xc] sm:$0xf]
        %v4387 = vld [vmem:[%s3932 + $0x10] sm:$0xf]
        %v4388 = vld [vmem:[%s3932 + $0x14] sm:$0x1]
        %v4389 = vld [vmem:[%s3932 + $0x18] sm:$0xf]
        %v4390 = vld [vmem:[%s3932 + $0x1c] sm:$0xf]
        %v4391 = vld [vmem:[%s3932 + $0x20] sm:$0x1]
        %v4392 = vld [vmem:[%s3932 + $0x24] sm:$0xf]
        %v4393 = vld [vmem:[%s3932 + $0x28] sm:$0xf]
        %v4394 = vld [vmem:[%s3932 + $0x2c] sm:$0x1]
        %v4395 = vld [vmem:[%s3932 + $0x30] sm:$0xf]
        %v4396 = vld [vmem:[%s3932 + $0x34] sm:$0xf]
        %v4397 = vld [vmem:[%s3932 + $0x38] sm:$0x1]
        %v4398 = vld [vmem:[%s3932 + $0x3c] sm:$0xf]
        %v4399 = vld [vmem:[%s3932 + $0x40] sm:$0xf]
        %v4400 = vld [vmem:[%s3932 + $0x44] sm:$0x1]
        %v4401 = vld [vmem:[%s3932 + $0x48] sm:$0xf]
        %v4402 = vld [vmem:[%s3932 + $0x4c] sm:$0xf]
        %v4403 = vld [vmem:[%s3932 + $0x50] sm:$0x1]
        %v4404 = vld [vmem:[%s3932 + $0x54] sm:$0xf]
        %v4405 = vld [vmem:[%s3932 + $0x58] sm:$0xf]
        %v4406 = vld [vmem:[%s3932 + $0x5c] sm:$0x1]
        %v4407 = vld [vmem:[%s3932 + $0x60] sm:$0xf]
        %v4408 = vld [vmem:[%s3932 + $0x64] sm:$0xf]
        %v4409 = vld [vmem:[%s3932 + $0x68] sm:$0x1]
        %v4410 = vld [vmem:[%s3932 + $0x6c] sm:$0xf]
        %v4411 = vld [vmem:[%s3932 + $0x70] sm:$0xf]
        %v4412 = vld [vmem:[%s3932 + $0x74] sm:$0x1]
        %v4413 = vld [vmem:[%s3932 + $0x78] sm:$0xf]
        %v4414 = vld [vmem:[%s3932 + $0x7c] sm:$0xf]
        %v4415 = vld [vmem:[%s3932 + $0x80] sm:$0x1]
        %v4416 = vld [vmem:[%s3932 + $0x84] sm:$0xf]
        %v4417 = vld [vmem:[%s3932 + $0x88] sm:$0xf]
        %v4418 = vld [vmem:[%s3932 + $0x8c] sm:$0x1]
        %v4419 = vld [vmem:[%s3932 + $0x90] sm:$0xf]
        %v4420 = vld [vmem:[%s3932 + $0x94] sm:$0xf]
        %v4421 = vld [vmem:[%s3932 + $0x98] sm:$0x1]
        %v4422 = vld [vmem:[%s3932 + $0x9c] sm:$0xf]
        %v4423 = vld [vmem:[%s3932 + $0xa0] sm:$0xf]
        %v4424 = vld [vmem:[%s3932 + $0xa4] sm:$0x1]
        %v4425 = vld [vmem:[%s3932 + $0xa8] sm:$0xf]
        %v4426 = vld [vmem:[%s3932 + $0xac] sm:$0xf]
        %v4427 = vld [vmem:[%s3932 + $0xb0] sm:$0x1]
        %v4428 = vld [vmem:[%s3932 + $0xb4] sm:$0xf]
        %v4429 = vld [vmem:[%s3932 + $0xb8] sm:$0xf]
        %v4430 = vld [vmem:[%s3932 + $0xbc] sm:$0x1]
        %s4431 = scalar_lea.vmem %s257, 448
        %v4432 = vld [vmem:[%s4431] sm:$0xf]
        %v4433 = vld [vmem:[%s4431 + $0x4] sm:$0xf]
        %v4434 = vld [vmem:[%s4431 + $0x8] sm:$0xf]
        %v4435 = vld [vmem:[%s4431 + $0xc] sm:$0xf]
        %v4436 = vld [vmem:[%s4431 + $0x10] sm:$0xf]
        %v4437 = vld [vmem:[%s4431 + $0x14] sm:$0xf]
        %v4438 = vld [vmem:[%s4431 + $0x18] sm:$0xf]
        %v4439 = vld [vmem:[%s4431 + $0x1c] sm:$0xf]
        %v4440 = vld [vmem:[%s4431 + $0x20] sm:$0xf]
        %v4441 = vld [vmem:[%s4431 + $0x24] sm:$0xf]
        %v4442 = vld [vmem:[%s4431 + $0x28] sm:$0xf]
        %v4443 = vld [vmem:[%s4431 + $0x2c] sm:$0xf]
        %v4444 = vld [vmem:[%s4431 + $0x30] sm:$0xf]
        %v4445 = vld [vmem:[%s4431 + $0x34] sm:$0xf]
        %v4446 = vld [vmem:[%s4431 + $0x38] sm:$0xf]
        %v4447 = vld [vmem:[%s4431 + $0x3c] sm:$0xf]
        %v4449 = vshrl.u32 %v4383, 16
        %v4451 = vrot.slane %v4449, 4
        %v4452 = vshll.u32 %v4383, 16
        %v4454 = vrot.slane %v4452, 5
        %v4455 = vor.u32 %v4451, %v4454
        %v4456 = vrot.slane %v4455, 4
        %v4458 = vshll.u32 %v4384, 16
        %v4460 = vrot.slane %v4458, 5
        %v4461 = vsel %vm718, %v4456, %v4460
        %v4462 = vshrl.u32 %v4384, 16
        %v4464 = vrot.slane %v4462, 4
        %v4465 = vor.u32 %v4464, %v4460
        %v4466 = vrot.slane %v4465, 4
        %v4468 = vshll.u32 %v4385, 16
        %v4470 = vrot.slane %v4468, 5
        %v4471 = vsel %vm718, %v4466, %v4470
        %v4473 = vshrl.u32 %v4386, 16
        %v4475 = vrot.slane %v4473, 4
        %v4476 = vshll.u32 %v4386, 16
        %v4478 = vrot.slane %v4476, 5
        %v4479 = vor.u32 %v4475, %v4478
        %v4480 = vrot.slane %v4479, 4
        %v4482 = vshll.u32 %v4387, 16
        %v4484 = vrot.slane %v4482, 5
        %v4485 = vsel %vm718, %v4480, %v4484
        %v4486 = vshrl.u32 %v4387, 16
        %v4488 = vrot.slane %v4486, 4
        %v4489 = vor.u32 %v4488, %v4484
        %v4490 = vrot.slane %v4489, 4
        %v4492 = vshll.u32 %v4388, 16
        %v4494 = vrot.slane %v4492, 5
        %v4495 = vsel %vm718, %v4490, %v4494
        %v4497 = vshrl.u32 %v4389, 16
        %v4499 = vrot.slane %v4497, 4
        %v4500 = vshll.u32 %v4389, 16
        %v4502 = vrot.slane %v4500, 5
        %v4503 = vor.u32 %v4499, %v4502
        %v4504 = vrot.slane %v4503, 4
        %v4506 = vshll.u32 %v4390, 16
        %v4508 = vrot.slane %v4506, 5
        %v4509 = vsel %vm718, %v4504, %v4508
        %v4510 = vshrl.u32 %v4390, 16
        %v4512 = vrot.slane %v4510, 4
        %v4513 = vor.u32 %v4512, %v4508
        %v4514 = vrot.slane %v4513, 4
        %v4516 = vshll.u32 %v4391, 16
        %v4518 = vrot.slane %v4516, 5
        %v4519 = vsel %vm718, %v4514, %v4518
        %v4521 = vshrl.u32 %v4392, 16
        %v4523 = vrot.slane %v4521, 4
        %v4524 = vshll.u32 %v4392, 16
        %v4526 = vrot.slane %v4524, 5
        %v4527 = vor.u32 %v4523, %v4526
        %v4528 = vrot.slane %v4527, 4
        %v4530 = vshll.u32 %v4393, 16
        %v4532 = vrot.slane %v4530, 5
        %v4533 = vsel %vm718, %v4528, %v4532
        %v4534 = vshrl.u32 %v4393, 16
        %v4536 = vrot.slane %v4534, 4
        %v4537 = vor.u32 %v4536, %v4532
        %v4538 = vrot.slane %v4537, 4
        %v4540 = vshll.u32 %v4394, 16
        %v4542 = vrot.slane %v4540, 5
        %v4543 = vsel %vm718, %v4538, %v4542
        %v4545 = vshrl.u32 %v4395, 16
        %v4547 = vrot.slane %v4545, 4
        %v4548 = vshll.u32 %v4395, 16
        %v4550 = vrot.slane %v4548, 5
        %v4551 = vor.u32 %v4547, %v4550
        %v4552 = vrot.slane %v4551, 4
        %v4554 = vshll.u32 %v4396, 16
        %v4556 = vrot.slane %v4554, 5
        %v4557 = vsel %vm718, %v4552, %v4556
        %v4558 = vshrl.u32 %v4396, 16
        %v4560 = vrot.slane %v4558, 4
        %v4561 = vor.u32 %v4560, %v4556
        %v4562 = vrot.slane %v4561, 4
        %v4564 = vshll.u32 %v4397, 16
        %v4566 = vrot.slane %v4564, 5
        %v4567 = vsel %vm718, %v4562, %v4566
        %v4569 = vshrl.u32 %v4398, 16
        %v4571 = vrot.slane %v4569, 4
        %v4572 = vshll.u32 %v4398, 16
        %v4574 = vrot.slane %v4572, 5
        %v4575 = vor.u32 %v4571, %v4574
        %v4576 = vrot.slane %v4575, 4
        %v4578 = vshll.u32 %v4399, 16
        %v4580 = vrot.slane %v4578, 5
        %v4581 = vsel %vm718, %v4576, %v4580
        %v4582 = vshrl.u32 %v4399, 16
        %v4584 = vrot.slane %v4582, 4
        %v4585 = vor.u32 %v4584, %v4580
        %v4586 = vrot.slane %v4585, 4
        %v4588 = vshll.u32 %v4400, 16
        %v4590 = vrot.slane %v4588, 5
        %v4591 = vsel %vm718, %v4586, %v4590
        %v4593 = vshrl.u32 %v4401, 16
        %v4595 = vrot.slane %v4593, 4
        %v4596 = vshll.u32 %v4401, 16
        %v4598 = vrot.slane %v4596, 5
        %v4599 = vor.u32 %v4595, %v4598
        %v4600 = vrot.slane %v4599, 4
        %v4602 = vshll.u32 %v4402, 16
        %v4604 = vrot.slane %v4602, 5
        %v4605 = vsel %vm718, %v4600, %v4604
        %v4606 = vshrl.u32 %v4402, 16
        %v4608 = vrot.slane %v4606, 4
        %v4609 = vor.u32 %v4608, %v4604
        %v4610 = vrot.slane %v4609, 4
        %v4612 = vshll.u32 %v4403, 16
        %v4614 = vrot.slane %v4612, 5
        %v4615 = vsel %vm718, %v4610, %v4614
        %v4617 = vshrl.u32 %v4404, 16
        %v4619 = vrot.slane %v4617, 4
        %v4620 = vshll.u32 %v4404, 16
        %v4622 = vrot.slane %v4620, 5
        %v4623 = vor.u32 %v4619, %v4622
        %v4624 = vrot.slane %v4623, 4
        %v4626 = vshll.u32 %v4405, 16
        %v4628 = vrot.slane %v4626, 5
        %v4629 = vsel %vm718, %v4624, %v4628
        %v4630 = vshrl.u32 %v4405, 16
        %v4632 = vrot.slane %v4630, 4
        %v4633 = vor.u32 %v4632, %v4628
        %v4634 = vrot.slane %v4633, 4
        %v4636 = vshll.u32 %v4406, 16
        %v4638 = vrot.slane %v4636, 5
        %v4639 = vsel %vm718, %v4634, %v4638
        %v4641 = vshrl.u32 %v4407, 16
        %v4643 = vrot.slane %v4641, 4
        %v4644 = vshll.u32 %v4407, 16
        %v4646 = vrot.slane %v4644, 5
        %v4647 = vor.u32 %v4643, %v4646
        %v4648 = vrot.slane %v4647, 4
        %v4650 = vshll.u32 %v4408, 16
        %v4652 = vrot.slane %v4650, 5
        %v4653 = vsel %vm718, %v4648, %v4652
        %v4654 = vshrl.u32 %v4408, 16
        %v4656 = vrot.slane %v4654, 4
        %v4657 = vor.u32 %v4656, %v4652
        %v4658 = vrot.slane %v4657, 4
        %v4660 = vshll.u32 %v4409, 16
        %v4662 = vrot.slane %v4660, 5
        %v4663 = vsel %vm718, %v4658, %v4662
        %v4665 = vshrl.u32 %v4410, 16
        %v4667 = vrot.slane %v4665, 4
        %v4668 = vshll.u32 %v4410, 16
        %v4670 = vrot.slane %v4668, 5
        %v4671 = vor.u32 %v4667, %v4670
        %v4672 = vrot.slane %v4671, 4
        %v4674 = vshll.u32 %v4411, 16
        %v4676 = vrot.slane %v4674, 5
        %v4677 = vsel %vm718, %v4672, %v4676
        %v4678 = vshrl.u32 %v4411, 16
        %v4680 = vrot.slane %v4678, 4
        %v4681 = vor.u32 %v4680, %v4676
        %v4682 = vrot.slane %v4681, 4
        %v4684 = vshll.u32 %v4412, 16
        %v4686 = vrot.slane %v4684, 5
        %v4687 = vsel %vm718, %v4682, %v4686
        %v4689 = vshrl.u32 %v4413, 16
        %v4691 = vrot.slane %v4689, 4
        %v4692 = vshll.u32 %v4413, 16
        %v4694 = vrot.slane %v4692, 5
        %v4695 = vor.u32 %v4691, %v4694
        %v4696 = vrot.slane %v4695, 4
        %v4698 = vshll.u32 %v4414, 16
        %v4700 = vrot.slane %v4698, 5
        %v4701 = vsel %vm718, %v4696, %v4700
        %v4702 = vshrl.u32 %v4414, 16
        %v4704 = vrot.slane %v4702, 4
        %v4705 = vor.u32 %v4704, %v4700
        %v4706 = vrot.slane %v4705, 4
        %v4708 = vshll.u32 %v4415, 16
        %v4710 = vrot.slane %v4708, 5
        %v4711 = vsel %vm718, %v4706, %v4710
        %v4713 = vshrl.u32 %v4416, 16
        %v4715 = vrot.slane %v4713, 4
        %v4716 = vshll.u32 %v4416, 16
        %v4718 = vrot.slane %v4716, 5
        %v4719 = vor.u32 %v4715, %v4718
        %v4720 = vrot.slane %v4719, 4
        %v4722 = vshll.u32 %v4417, 16
        %v4724 = vrot.slane %v4722, 5
        %v4725 = vsel %vm718, %v4720, %v4724
        %v4726 = vshrl.u32 %v4417, 16
        %v4728 = vrot.slane %v4726, 4
        %v4729 = vor.u32 %v4728, %v4724
        %v4730 = vrot.slane %v4729, 4
        %v4732 = vshll.u32 %v4418, 16
        %v4734 = vrot.slane %v4732, 5
        %v4735 = vsel %vm718, %v4730, %v4734
        %v4737 = vshrl.u32 %v4419, 16
        %v4739 = vrot.slane %v4737, 4
        %v4740 = vshll.u32 %v4419, 16
        %v4742 = vrot.slane %v4740, 5
        %v4743 = vor.u32 %v4739, %v4742
        %v4744 = vrot.slane %v4743, 4
        %v4746 = vshll.u32 %v4420, 16
        %v4748 = vrot.slane %v4746, 5
        %v4749 = vsel %vm718, %v4744, %v4748
        %v4750 = vshrl.u32 %v4420, 16
        %v4752 = vrot.slane %v4750, 4
        %v4753 = vor.u32 %v4752, %v4748
        %v4754 = vrot.slane %v4753, 4
        %v4756 = vshll.u32 %v4421, 16
        %v4758 = vrot.slane %v4756, 5
        %v4759 = vsel %vm718, %v4754, %v4758
        %v4761 = vshrl.u32 %v4422, 16
        %v4763 = vrot.slane %v4761, 4
        %v4764 = vshll.u32 %v4422, 16
        %v4766 = vrot.slane %v4764, 5
        %v4767 = vor.u32 %v4763, %v4766
        %v4768 = vrot.slane %v4767, 4
        %v4770 = vshll.u32 %v4423, 16
        %v4772 = vrot.slane %v4770, 5
        %v4773 = vsel %vm718, %v4768, %v4772
        %v4774 = vshrl.u32 %v4423, 16
        %v4776 = vrot.slane %v4774, 4
        %v4777 = vor.u32 %v4776, %v4772
        %v4778 = vrot.slane %v4777, 4
        %v4780 = vshll.u32 %v4424, 16
        %v4782 = vrot.slane %v4780, 5
        %v4783 = vsel %vm718, %v4778, %v4782
        %v4785 = vshrl.u32 %v4425, 16
        %v4787 = vrot.slane %v4785, 4
        %v4788 = vshll.u32 %v4425, 16
        %v4790 = vrot.slane %v4788, 5
        %v4791 = vor.u32 %v4787, %v4790
        %v4792 = vrot.slane %v4791, 4
        %v4794 = vshll.u32 %v4426, 16
        %v4796 = vrot.slane %v4794, 5
        %v4797 = vsel %vm718, %v4792, %v4796
        %v4798 = vshrl.u32 %v4426, 16
        %v4800 = vrot.slane %v4798, 4
        %v4801 = vor.u32 %v4800, %v4796
        %v4802 = vrot.slane %v4801, 4
        %v4804 = vshll.u32 %v4427, 16
        %v4806 = vrot.slane %v4804, 5
        %v4807 = vsel %vm718, %v4802, %v4806
        %v4809 = vshrl.u32 %v4428, 16
        %v4811 = vrot.slane %v4809, 4
        %v4812 = vshll.u32 %v4428, 16
        %v4814 = vrot.slane %v4812, 5
        %v4815 = vor.u32 %v4811, %v4814
        %v4816 = vrot.slane %v4815, 4
        %v4818 = vshll.u32 %v4429, 16
        %v4820 = vrot.slane %v4818, 5
        %v4821 = vsel %vm718, %v4816, %v4820
        %v4822 = vshrl.u32 %v4429, 16
        %v4824 = vrot.slane %v4822, 4
        %v4825 = vor.u32 %v4824, %v4820
        %v4826 = vrot.slane %v4825, 4
        %v4828 = vshll.u32 %v4430, 16
        %v4830 = vrot.slane %v4828, 5
        %v4831 = vsel %vm718, %v4826, %v4830
        %v4832 = vunpack.c.l.b16 %v4461
        %v4833 = vunpack.c.l.b16 %v4471
        %v4834 = vunpack.c.l.b16 %v4485
        %v4835 = vunpack.c.l.b16 %v4495
        %v4836 = vunpack.c.l.b16 %v4509
        %v4837 = vunpack.c.l.b16 %v4519
        %v4838 = vunpack.c.l.b16 %v4533
        %v4839 = vunpack.c.l.b16 %v4543
        %v4840 = vunpack.c.l.b16 %v4557
        %v4841 = vunpack.c.l.b16 %v4567
        %v4842 = vunpack.c.l.b16 %v4581
        %v4843 = vunpack.c.l.b16 %v4591
        %v4844 = vunpack.c.l.b16 %v4605
        %v4845 = vunpack.c.l.b16 %v4615
        %v4846 = vunpack.c.l.b16 %v4629
        %v4847 = vunpack.c.l.b16 %v4639
        %v4848 = vunpack.c.l.b16 %v4653
        %v4849 = vunpack.c.l.b16 %v4663
        %v4850 = vunpack.c.l.b16 %v4677
        %v4851 = vunpack.c.l.b16 %v4687
        %v4852 = vunpack.c.l.b16 %v4701
        %v4853 = vunpack.c.l.b16 %v4711
        %v4854 = vunpack.c.l.b16 %v4725
        %v4855 = vunpack.c.l.b16 %v4735
        %v4856 = vunpack.c.l.b16 %v4749
        %v4857 = vunpack.c.l.b16 %v4759
        %v4858 = vunpack.c.l.b16 %v4773
        %v4859 = vunpack.c.l.b16 %v4783
        %v4860 = vunpack.c.l.b16 %v4797
        %v4861 = vunpack.c.l.b16 %v4807
        %v4862 = vunpack.c.l.b16 %v4821
        %v4863 = vunpack.c.l.b16 %v4831
        %v4864 = vpack.c.b16 %v4833, %v4832
        %v4865 = vpack.c.b16 %v4835, %v4834
        %v4866 = vpack.c.b16 %v4837, %v4836
        %v4867 = vpack.c.b16 %v4839, %v4838
        %v4868 = vpack.c.b16 %v4841, %v4840
        %v4869 = vpack.c.b16 %v4843, %v4842
        %v4870 = vpack.c.b16 %v4845, %v4844
        %v4871 = vpack.c.b16 %v4847, %v4846
        %v4872 = vpack.c.b16 %v4849, %v4848
        %v4873 = vpack.c.b16 %v4851, %v4850
        %v4874 = vpack.c.b16 %v4853, %v4852
        %v4875 = vpack.c.b16 %v4855, %v4854
        %v4876 = vpack.c.b16 %v4857, %v4856
        %v4877 = vpack.c.b16 %v4859, %v4858
        %v4878 = vpack.c.b16 %v4861, %v4860
        %v4879 = vpack.c.b16 %v4863, %v4862
        %v4912 = vunpack.c.l.b16 %v4432
        %v4913 = vunpack.c.l.b16 %v4433
        %v4914 = vunpack.c.l.b16 %v4434
        %v4915 = vunpack.c.l.b16 %v4435
        %v4916 = vunpack.c.l.b16 %v4436
        %v4917 = vunpack.c.l.b16 %v4437
        %v4918 = vunpack.c.l.b16 %v4438
        %v4919 = vunpack.c.l.b16 %v4439
        %v4920 = vunpack.c.l.b16 %v4440
        %v4921 = vunpack.c.l.b16 %v4441
        %v4922 = vunpack.c.l.b16 %v4442
        %v4923 = vunpack.c.l.b16 %v4443
        %v4924 = vunpack.c.l.b16 %v4444
        %v4925 = vunpack.c.l.b16 %v4445
        %v4926 = vunpack.c.l.b16 %v4446
        %v4927 = vunpack.c.l.b16 %v4447
        %v4928 = vpack.c.b16 %v4913, %v4912
        %v4929 = vpack.c.b16 %v4915, %v4914
        %v4930 = vpack.c.b16 %v4917, %v4916
        %v4931 = vpack.c.b16 %v4919, %v4918
        %v4932 = vpack.c.b16 %v4921, %v4920
        %v4933 = vpack.c.b16 %v4923, %v4922
        %v4934 = vpack.c.b16 %v4925, %v4924
        %v4935 = vpack.c.b16 %v4927, %v4926
        %4944 = vmatprep.subr.bf16.mxu0 0
        %4945 = vmatpush1.bf16.msra.mxu0 %v4935
        %4946 = vmatprep.subr.bf16.mxu0 0
        %4947 = vmatpush1.bf16.msra.mxu0 %v4934
        %4948 = vmatprep.subr.bf16.mxu0 0
        %4949 = vmatpush1.bf16.msra.mxu0 %v4933
        %4950 = vmatprep.subr.bf16.mxu0 0
        %4951 = vmatpush1.bf16.msra.mxu0 %v4932
        %4952 = vmatprep.subr.bf16.mxu0 0
        %4953 = vmatpush1.bf16.msra.mxu0 %v4931
        %4954 = vmatprep.subr.bf16.mxu0 0
        %4955 = vmatpush1.bf16.msra.mxu0 %v4930
        %4956 = vmatprep.subr.bf16.mxu0 0
        %4957 = vmatpush1.bf16.msra.mxu0 %v4929
        %4958 = vmatprep.subr.bf16.mxu0 0
        %4959 = vmatpush1.bf16.msra.mxu0 %v4928
        %4960 = vmatprep.subr.bf16.mxu0 0
        %4961 = vmatpush2.bf16.msra.mxu0 0
        %4962 = vmatprep.subr.bf16.mxu0 0
        %4963 = vmatpush2.bf16.msra.mxu0 0
        %4964 = vmatprep.subr.bf16.mxu0 0
        %4965 = vmatpush2.bf16.msra.mxu0 0
        %4966 = vmatprep.subr.bf16.mxu0 0
        %4967 = vmatpush2.bf16.msra.mxu0 0
        %4968 = vmatprep.subr.bf16.mxu0 0
        %4969 = vmatpush2.bf16.msra.mxu0 0
        %4970 = vmatprep.subr.bf16.mxu0 0
        %4971 = vmatpush2.bf16.msra.mxu0 0
        %4972 = vmatprep.subr.bf16.mxu0 0
        %4973 = vmatpush2.bf16.msra.mxu0 0
        %4974 = vmatprep.subr.bf16.mxu0 0
        %4975 = vmatpush2.bf16.msra.mxu0 0
        %4976 = vmatprep.mubr.bf16.mxu0 0
        %4977 = vmatmul.mubr.bf16.gmra.mxu0 %v4864
        %v4978 = vpop.f32.mrf.mxu0
        %v4979 = vadd.f32 0.0, %v4978
        %v4980 = vpop.f32.mrf.mxu0
        %v4981 = vpop.f32.mrf.mxu0
        %v4982 = vadd.f32 0.0, %v4981
        %v4983 = vpop.f32.mrf.mxu0
        %4984 = vmatprep.mubr.bf16.mxu0 0
        %4985 = vmatmul.mubr.bf16.gmra.mxu0 %v4865
        %v4986 = vpop.f32.mrf.mxu0
        %v4987 = vadd.f32 0.0, %v4986
        %v4988 = vpop.f32.mrf.mxu0
        %v4989 = vpop.f32.mrf.mxu0
        %v4990 = vadd.f32 0.0, %v4989
        %v4991 = vpop.f32.mrf.mxu0
        %4992 = vmatprep.mubr.bf16.mxu0 0
        %4993 = vmatmul.mubr.bf16.gmra.mxu0 %v4866
        %v4994 = vpop.f32.mrf.mxu0
        %v4995 = vadd.f32 0.0, %v4994
        %v4996 = vpop.f32.mrf.mxu0
        %v4997 = vpop.f32.mrf.mxu0
        %v4998 = vadd.f32 0.0, %v4997
        %v4999 = vpop.f32.mrf.mxu0
        %5000 = vmatprep.mubr.bf16.mxu0 0
        %5001 = vmatmul.mubr.bf16.gmra.mxu0 %v4867
        %v5002 = vpop.f32.mrf.mxu0
        %v5003 = vadd.f32 0.0, %v5002
        %v5004 = vpop.f32.mrf.mxu0
        %v5005 = vpop.f32.mrf.mxu0
        %v5006 = vadd.f32 0.0, %v5005
        %v5007 = vpop.f32.mrf.mxu0
        %5008 = vmatprep.mubr.bf16.mxu0 0
        %5009 = vmatmul.mubr.bf16.gmra.mxu0 %v4868
        %v5010 = vpop.f32.mrf.mxu0
        %v5011 = vadd.f32 0.0, %v5010
        %v5012 = vpop.f32.mrf.mxu0
        %v5013 = vpop.f32.mrf.mxu0
        %v5014 = vadd.f32 0.0, %v5013
        %v5015 = vpop.f32.mrf.mxu0
        %5016 = vmatprep.mubr.bf16.mxu0 0
        %5017 = vmatmul.mubr.bf16.gmra.mxu0 %v4869
        %v5018 = vpop.f32.mrf.mxu0
        %v5019 = vadd.f32 0.0, %v5018
        %v5020 = vpop.f32.mrf.mxu0
        %v5021 = vpop.f32.mrf.mxu0
        %v5022 = vadd.f32 0.0, %v5021
        %v5023 = vpop.f32.mrf.mxu0
        %5024 = vmatprep.mubr.bf16.mxu0 0
        %5025 = vmatmul.mubr.bf16.gmra.mxu0 %v4870
        %v5026 = vpop.f32.mrf.mxu0
        %v5027 = vadd.f32 0.0, %v5026
        %v5028 = vpop.f32.mrf.mxu0
        %v5029 = vpop.f32.mrf.mxu0
        %v5030 = vadd.f32 0.0, %v5029
        %v5031 = vpop.f32.mrf.mxu0
        %5032 = vmatprep.mubr.bf16.mxu0 0
        %5033 = vmatmul.mubr.bf16.gmra.mxu0 %v4871
        %v5034 = vpop.f32.mrf.mxu0
        %v5035 = vadd.f32 0.0, %v5034
        %v5036 = vpop.f32.mrf.mxu0
        %v5037 = vpop.f32.mrf.mxu0
        %v5038 = vadd.f32 0.0, %v5037
        %v5039 = vpop.f32.mrf.mxu0
        %5040 = vmatprep.mubr.bf16.mxu0 0
        %5041 = vmatmul.mubr.bf16.gmra.mxu0 %v4872
        %v5042 = vpop.f32.mrf.mxu0
        %v5043 = vadd.f32 0.0, %v5042
        %v5044 = vpop.f32.mrf.mxu0
        %v5045 = vpop.f32.mrf.mxu0
        %v5046 = vadd.f32 0.0, %v5045
        %v5047 = vpop.f32.mrf.mxu0
        %5048 = vmatprep.mubr.bf16.mxu0 0
        %5049 = vmatmul.mubr.bf16.gmra.mxu0 %v4873
        %v5050 = vpop.f32.mrf.mxu0
        %v5051 = vadd.f32 0.0, %v5050
        %v5052 = vpop.f32.mrf.mxu0
        %v5053 = vpop.f32.mrf.mxu0
        %v5054 = vadd.f32 0.0, %v5053
        %v5055 = vpop.f32.mrf.mxu0
        %5056 = vmatprep.mubr.bf16.mxu0 0
        %5057 = vmatmul.mubr.bf16.gmra.mxu0 %v4874
        %v5058 = vpop.f32.mrf.mxu0
        %v5059 = vadd.f32 0.0, %v5058
        %v5060 = vpop.f32.mrf.mxu0
        %v5061 = vpop.f32.mrf.mxu0
        %v5062 = vadd.f32 0.0, %v5061
        %v5063 = vpop.f32.mrf.mxu0
        %5064 = vmatprep.mubr.bf16.mxu0 0
        %5065 = vmatmul.mubr.bf16.gmra.mxu0 %v4875
        %v5066 = vpop.f32.mrf.mxu0
        %v5067 = vadd.f32 0.0, %v5066
        %v5068 = vpop.f32.mrf.mxu0
        %v5069 = vpop.f32.mrf.mxu0
        %v5070 = vadd.f32 0.0, %v5069
        %v5071 = vpop.f32.mrf.mxu0
        %5072 = vmatprep.mubr.bf16.mxu0 0
        %5073 = vmatmul.mubr.bf16.gmra.mxu0 %v4876
        %v5074 = vpop.f32.mrf.mxu0
        %v5075 = vadd.f32 0.0, %v5074
        %v5076 = vpop.f32.mrf.mxu0
        %v5077 = vpop.f32.mrf.mxu0
        %v5078 = vadd.f32 0.0, %v5077
        %v5079 = vpop.f32.mrf.mxu0
        %5080 = vmatprep.mubr.bf16.mxu0 0
        %5081 = vmatmul.mubr.bf16.gmra.mxu0 %v4877
        %v5082 = vpop.f32.mrf.mxu0
        %v5083 = vadd.f32 0.0, %v5082
        %v5084 = vpop.f32.mrf.mxu0
        %v5085 = vpop.f32.mrf.mxu0
        %v5086 = vadd.f32 0.0, %v5085
        %v5087 = vpop.f32.mrf.mxu0
        %5088 = vmatprep.mubr.bf16.mxu0 0
        %5089 = vmatmul.mubr.bf16.gmra.mxu0 %v4878
        %v5090 = vpop.f32.mrf.mxu0
        %v5091 = vadd.f32 0.0, %v5090
        %v5092 = vpop.f32.mrf.mxu0
        %v5093 = vpop.f32.mrf.mxu0
        %v5094 = vadd.f32 0.0, %v5093
        %v5095 = vpop.f32.mrf.mxu0
        %5096 = vmatprep.mubr.bf16.mxu0 0
        %5097 = vmatmul.mubr.bf16.gmra.mxu0 %v4879
        %v5098 = vpop.f32.mrf.mxu0
        %v5099 = vadd.f32 0.0, %v5098
        %v5100 = vpop.f32.mrf.mxu0
        %v5101 = vpop.f32.mrf.mxu0
        %v5102 = vadd.f32 0.0, %v5101
        %v5103 = vpop.f32.mrf.mxu0
        %5104 = vdwg.mxu0
        %v5105 = vld [vmem:[%s248] sm:$0xff]
        %v5106 = vld [vmem:[%s248 + $0x8] sm:$0xff]
        %v5107 = vld [vmem:[%s248 + $0x10] sm:$0xff]
        %v5108 = vld [vmem:[%s248 + $0x18] sm:$0xff]
        %v5109 = vld [vmem:[%s248 + $0x20] sm:$0xff]
        %v5110 = vld [vmem:[%s248 + $0x28] sm:$0xff]
        %v5111 = vld [vmem:[%s248 + $0x30] sm:$0xff]
        %v5112 = vld [vmem:[%s248 + $0x38] sm:$0xff]
        %v5113 = vld [vmem:[%s248 + $0x40] sm:$0xff]
        %v5114 = vld [vmem:[%s248 + $0x48] sm:$0xff]
        %v5115 = vld [vmem:[%s248 + $0x50] sm:$0xff]
        %v5116 = vld [vmem:[%s248 + $0x58] sm:$0xff]
        %v5117 = vld [vmem:[%s248 + $0x60] sm:$0xff]
        %v5118 = vld [vmem:[%s248 + $0x68] sm:$0xff]
        %v5119 = vld [vmem:[%s248 + $0x70] sm:$0xff]
        %v5120 = vld [vmem:[%s248 + $0x78] sm:$0xff]
        %v5121 = vld [vmem:[%s248 + $0x80] sm:$0xff]
        %v5122 = vld [vmem:[%s248 + $0x88] sm:$0xff]
        %v5123 = vld [vmem:[%s248 + $0x90] sm:$0xff]
        %v5124 = vld [vmem:[%s248 + $0x98] sm:$0xff]
        %v5125 = vld [vmem:[%s248 + $0xa0] sm:$0xff]
        %v5126 = vld [vmem:[%s248 + $0xa8] sm:$0xff]
        %v5127 = vld [vmem:[%s248 + $0xb0] sm:$0xff]
        %v5128 = vld [vmem:[%s248 + $0xb8] sm:$0xff]
        %v5129 = vld [vmem:[%s248 + $0xc0] sm:$0xff]
        %v5130 = vld [vmem:[%s248 + $0xc8] sm:$0xff]
        %v5131 = vld [vmem:[%s248 + $0xd0] sm:$0xff]
        %v5132 = vld [vmem:[%s248 + $0xd8] sm:$0xff]
        %v5133 = vld [vmem:[%s248 + $0xe0] sm:$0xff]
        %v5134 = vld [vmem:[%s248 + $0xe8] sm:$0xff]
        %v5135 = vld [vmem:[%s248 + $0xf0] sm:$0xff]
        %v5136 = vld [vmem:[%s248 + $0xf8] sm:$0xff]
        %v5137 = vadd.f32 %v5105, %v4979
        %v5138 = vadd.f32 %v5106, %v4982
        %v5139 = vadd.f32 %v5107, %v4987
        %v5140 = vadd.f32 %v5108, %v4990
        %v5141 = vadd.f32 %v5109, %v4995
        %v5142 = vadd.f32 %v5110, %v4998
        %v5143 = vadd.f32 %v5111, %v5003
        %v5144 = vadd.f32 %v5112, %v5006
        %v5145 = vadd.f32 %v5113, %v5011
        %v5146 = vadd.f32 %v5114, %v5014
        %v5147 = vadd.f32 %v5115, %v5019
        %v5148 = vadd.f32 %v5116, %v5022
        %v5149 = vadd.f32 %v5117, %v5027
        %v5150 = vadd.f32 %v5118, %v5030
        %v5151 = vadd.f32 %v5119, %v5035
        %v5152 = vadd.f32 %v5120, %v5038
        %v5153 = vadd.f32 %v5121, %v5043
        %v5154 = vadd.f32 %v5122, %v5046
        %v5155 = vadd.f32 %v5123, %v5051
        %v5156 = vadd.f32 %v5124, %v5054
        %v5157 = vadd.f32 %v5125, %v5059
        %v5158 = vadd.f32 %v5126, %v5062
        %v5159 = vadd.f32 %v5127, %v5067
        %v5160 = vadd.f32 %v5128, %v5070
        %v5161 = vadd.f32 %v5129, %v5075
        %v5162 = vadd.f32 %v5130, %v5078
        %v5163 = vadd.f32 %v5131, %v5083
        %v5164 = vadd.f32 %v5132, %v5086
        %v5165 = vadd.f32 %v5133, %v5091
        %v5166 = vadd.f32 %v5134, %v5094
        %v5167 = vadd.f32 %v5135, %v5099
        %v5168 = vadd.f32 %v5136, %v5102
        %5169 = vst [vmem:[%s248] sm:$0xff] %v5137
        %5170 = vst [vmem:[%s248 + $0x8] sm:$0xff] %v5138
        %5171 = vst [vmem:[%s248 + $0x10] sm:$0xff] %v5139
        %5172 = vst [vmem:[%s248 + $0x18] sm:$0xff] %v5140
        %5173 = vst [vmem:[%s248 + $0x20] sm:$0xff] %v5141
        %5174 = vst [vmem:[%s248 + $0x28] sm:$0xff] %v5142
        %5175 = vst [vmem:[%s248 + $0x30] sm:$0xff] %v5143
        %5176 = vst [vmem:[%s248 + $0x38] sm:$0xff] %v5144
        %5177 = vst [vmem:[%s248 + $0x40] sm:$0xff] %v5145
        %5178 = vst [vmem:[%s248 + $0x48] sm:$0xff] %v5146
        %5179 = vst [vmem:[%s248 + $0x50] sm:$0xff] %v5147
        %5180 = vst [vmem:[%s248 + $0x58] sm:$0xff] %v5148
        %5181 = vst [vmem:[%s248 + $0x60] sm:$0xff] %v5149
        %5182 = vst [vmem:[%s248 + $0x68] sm:$0xff] %v5150
        %5183 = vst [vmem:[%s248 + $0x70] sm:$0xff] %v5151
        %5184 = vst [vmem:[%s248 + $0x78] sm:$0xff] %v5152
        %5185 = vst [vmem:[%s248 + $0x80] sm:$0xff] %v5153
        %5186 = vst [vmem:[%s248 + $0x88] sm:$0xff] %v5154
        %5187 = vst [vmem:[%s248 + $0x90] sm:$0xff] %v5155
        %5188 = vst [vmem:[%s248 + $0x98] sm:$0xff] %v5156
        %5189 = vst [vmem:[%s248 + $0xa0] sm:$0xff] %v5157
        %5190 = vst [vmem:[%s248 + $0xa8] sm:$0xff] %v5158
        %5191 = vst [vmem:[%s248 + $0xb0] sm:$0xff] %v5159
        %5192 = vst [vmem:[%s248 + $0xb8] sm:$0xff] %v5160
        %5193 = vst [vmem:[%s248 + $0xc0] sm:$0xff] %v5161
        %5194 = vst [vmem:[%s248 + $0xc8] sm:$0xff] %v5162
        %5195 = vst [vmem:[%s248 + $0xd0] sm:$0xff] %v5163
        %5196 = vst [vmem:[%s248 + $0xd8] sm:$0xff] %v5164
        %5197 = vst [vmem:[%s248 + $0xe0] sm:$0xff] %v5165
        %5198 = vst [vmem:[%s248 + $0xe8] sm:$0xff] %v5166
        %5199 = vst [vmem:[%s248 + $0xf0] sm:$0xff] %v5167
        %5200 = vst [vmem:[%s248 + $0xf8] sm:$0xff] %v5168
        %v5201 = vld [vmem:[%s3932] sm:$0xe]
        %v5202 = vld [vmem:[%s3932 + $0x4] sm:$0xf]
        %v5203 = vld [vmem:[%s3932 + $0x8] sm:$0x1]
        %v5204 = vld [vmem:[%s3932 + $0xc] sm:$0xe]
        %v5205 = vld [vmem:[%s3932 + $0x10] sm:$0xf]
        %v5206 = vld [vmem:[%s3932 + $0x14] sm:$0x1]
        %v5207 = vld [vmem:[%s3932 + $0x18] sm:$0xe]
        %v5208 = vld [vmem:[%s3932 + $0x1c] sm:$0xf]
        %v5209 = vld [vmem:[%s3932 + $0x20] sm:$0x1]
        %v5210 = vld [vmem:[%s3932 + $0x24] sm:$0xe]
        %v5211 = vld [vmem:[%s3932 + $0x28] sm:$0xf]
        %v5212 = vld [vmem:[%s3932 + $0x2c] sm:$0x1]
        %v5213 = vld [vmem:[%s3932 + $0x30] sm:$0xe]
        %v5214 = vld [vmem:[%s3932 + $0x34] sm:$0xf]
        %v5215 = vld [vmem:[%s3932 + $0x38] sm:$0x1]
        %v5216 = vld [vmem:[%s3932 + $0x3c] sm:$0xe]
        %v5217 = vld [vmem:[%s3932 + $0x40] sm:$0xf]
        %v5218 = vld [vmem:[%s3932 + $0x44] sm:$0x1]
        %v5219 = vld [vmem:[%s3932 + $0x48] sm:$0xe]
        %v5220 = vld [vmem:[%s3932 + $0x4c] sm:$0xf]
        %v5221 = vld [vmem:[%s3932 + $0x50] sm:$0x1]
        %v5222 = vld [vmem:[%s3932 + $0x54] sm:$0xe]
        %v5223 = vld [vmem:[%s3932 + $0x58] sm:$0xf]
        %v5224 = vld [vmem:[%s3932 + $0x5c] sm:$0x1]
        %v5225 = vld [vmem:[%s3932 + $0x60] sm:$0xe]
        %v5226 = vld [vmem:[%s3932 + $0x64] sm:$0xf]
        %v5227 = vld [vmem:[%s3932 + $0x68] sm:$0x1]
        %v5228 = vld [vmem:[%s3932 + $0x6c] sm:$0xe]
        %v5229 = vld [vmem:[%s3932 + $0x70] sm:$0xf]
        %v5230 = vld [vmem:[%s3932 + $0x74] sm:$0x1]
        %v5231 = vld [vmem:[%s3932 + $0x78] sm:$0xe]
        %v5232 = vld [vmem:[%s3932 + $0x7c] sm:$0xf]
        %v5233 = vld [vmem:[%s3932 + $0x80] sm:$0x1]
        %v5234 = vld [vmem:[%s3932 + $0x84] sm:$0xe]
        %v5235 = vld [vmem:[%s3932 + $0x88] sm:$0xf]
        %v5236 = vld [vmem:[%s3932 + $0x8c] sm:$0x1]
        %v5237 = vld [vmem:[%s3932 + $0x90] sm:$0xe]
        %v5238 = vld [vmem:[%s3932 + $0x94] sm:$0xf]
        %v5239 = vld [vmem:[%s3932 + $0x98] sm:$0x1]
        %v5240 = vld [vmem:[%s3932 + $0x9c] sm:$0xe]
        %v5241 = vld [vmem:[%s3932 + $0xa0] sm:$0xf]
        %v5242 = vld [vmem:[%s3932 + $0xa4] sm:$0x1]
        %v5243 = vld [vmem:[%s3932 + $0xa8] sm:$0xe]
        %v5244 = vld [vmem:[%s3932 + $0xac] sm:$0xf]
        %v5245 = vld [vmem:[%s3932 + $0xb0] sm:$0x1]
        %v5246 = vld [vmem:[%s3932 + $0xb4] sm:$0xe]
        %v5247 = vld [vmem:[%s3932 + $0xb8] sm:$0xf]
        %v5248 = vld [vmem:[%s3932 + $0xbc] sm:$0x1]
        %s5249 = scalar_lea.vmem %s257, 512
        %v5250 = vld [vmem:[%s5249] sm:$0xf]
        %v5251 = vld [vmem:[%s5249 + $0x4] sm:$0xf]
        %v5252 = vld [vmem:[%s5249 + $0x8] sm:$0xf]
        %v5253 = vld [vmem:[%s5249 + $0xc] sm:$0xf]
        %v5254 = vld [vmem:[%s5249 + $0x10] sm:$0xf]
        %v5255 = vld [vmem:[%s5249 + $0x14] sm:$0xf]
        %v5256 = vld [vmem:[%s5249 + $0x18] sm:$0xf]
        %v5257 = vld [vmem:[%s5249 + $0x1c] sm:$0xf]
        %v5258 = vld [vmem:[%s5249 + $0x20] sm:$0xf]
        %v5259 = vld [vmem:[%s5249 + $0x24] sm:$0xf]
        %v5260 = vld [vmem:[%s5249 + $0x28] sm:$0xf]
        %v5261 = vld [vmem:[%s5249 + $0x2c] sm:$0xf]
        %v5262 = vld [vmem:[%s5249 + $0x30] sm:$0xf]
        %v5263 = vld [vmem:[%s5249 + $0x34] sm:$0xf]
        %v5264 = vld [vmem:[%s5249 + $0x38] sm:$0xf]
        %v5265 = vld [vmem:[%s5249 + $0x3c] sm:$0xf]
        %v5314 = vrot.slane %v5201, 5
        %v5315 = vrot.slane %v5314, 4
        %v5316 = vrot.slane %v5202, 5
        %v5317 = vsel %vm1587, %v5315, %v5316
        %v5318 = vrot.slane %v5316, 4
        %v5319 = vrot.slane %v5203, 5
        %v5320 = vsel %vm1587, %v5318, %v5319
        %v5321 = vrot.slane %v5204, 5
        %v5322 = vrot.slane %v5321, 4
        %v5323 = vrot.slane %v5205, 5
        %v5324 = vsel %vm1587, %v5322, %v5323
        %v5325 = vrot.slane %v5323, 4
        %v5326 = vrot.slane %v5206, 5
        %v5327 = vsel %vm1587, %v5325, %v5326
        %v5328 = vrot.slane %v5207, 5
        %v5329 = vrot.slane %v5328, 4
        %v5330 = vrot.slane %v5208, 5
        %v5331 = vsel %vm1587, %v5329, %v5330
        %v5332 = vrot.slane %v5330, 4
        %v5333 = vrot.slane %v5209, 5
        %v5334 = vsel %vm1587, %v5332, %v5333
        %v5335 = vrot.slane %v5210, 5
        %v5336 = vrot.slane %v5335, 4
        %v5337 = vrot.slane %v5211, 5
        %v5338 = vsel %vm1587, %v5336, %v5337
        %v5339 = vrot.slane %v5337, 4
        %v5340 = vrot.slane %v5212, 5
        %v5341 = vsel %vm1587, %v5339, %v5340
        %v5342 = vrot.slane %v5213, 5
        %v5343 = vrot.slane %v5342, 4
        %v5344 = vrot.slane %v5214, 5
        %v5345 = vsel %vm1587, %v5343, %v5344
        %v5346 = vrot.slane %v5344, 4
        %v5347 = vrot.slane %v5215, 5
        %v5348 = vsel %vm1587, %v5346, %v5347
        %v5349 = vrot.slane %v5216, 5
        %v5350 = vrot.slane %v5349, 4
        %v5351 = vrot.slane %v5217, 5
        %v5352 = vsel %vm1587, %v5350, %v5351
        %v5353 = vrot.slane %v5351, 4
        %v5354 = vrot.slane %v5218, 5
        %v5355 = vsel %vm1587, %v5353, %v5354
        %v5356 = vrot.slane %v5219, 5
        %v5357 = vrot.slane %v5356, 4
        %v5358 = vrot.slane %v5220, 5
        %v5359 = vsel %vm1587, %v5357, %v5358
        %v5360 = vrot.slane %v5358, 4
        %v5361 = vrot.slane %v5221, 5
        %v5362 = vsel %vm1587, %v5360, %v5361
        %v5363 = vrot.slane %v5222, 5
        %v5364 = vrot.slane %v5363, 4
        %v5365 = vrot.slane %v5223, 5
        %v5366 = vsel %vm1587, %v5364, %v5365
        %v5367 = vrot.slane %v5365, 4
        %v5368 = vrot.slane %v5224, 5
        %v5369 = vsel %vm1587, %v5367, %v5368
        %v5370 = vrot.slane %v5225, 5
        %v5371 = vrot.slane %v5370, 4
        %v5372 = vrot.slane %v5226, 5
        %v5373 = vsel %vm1587, %v5371, %v5372
        %v5374 = vrot.slane %v5372, 4
        %v5375 = vrot.slane %v5227, 5
        %v5376 = vsel %vm1587, %v5374, %v5375
        %v5377 = vrot.slane %v5228, 5
        %v5378 = vrot.slane %v5377, 4
        %v5379 = vrot.slane %v5229, 5
        %v5380 = vsel %vm1587, %v5378, %v5379
        %v5381 = vrot.slane %v5379, 4
        %v5382 = vrot.slane %v5230, 5
        %v5383 = vsel %vm1587, %v5381, %v5382
        %v5384 = vrot.slane %v5231, 5
        %v5385 = vrot.slane %v5384, 4
        %v5386 = vrot.slane %v5232, 5
        %v5387 = vsel %vm1587, %v5385, %v5386
        %v5388 = vrot.slane %v5386, 4
        %v5389 = vrot.slane %v5233, 5
        %v5390 = vsel %vm1587, %v5388, %v5389
        %v5391 = vrot.slane %v5234, 5
        %v5392 = vrot.slane %v5391, 4
        %v5393 = vrot.slane %v5235, 5
        %v5394 = vsel %vm1587, %v5392, %v5393
        %v5395 = vrot.slane %v5393, 4
        %v5396 = vrot.slane %v5236, 5
        %v5397 = vsel %vm1587, %v5395, %v5396
        %v5398 = vrot.slane %v5237, 5
        %v5399 = vrot.slane %v5398, 4
        %v5400 = vrot.slane %v5238, 5
        %v5401 = vsel %vm1587, %v5399, %v5400
        %v5402 = vrot.slane %v5400, 4
        %v5403 = vrot.slane %v5239, 5
        %v5404 = vsel %vm1587, %v5402, %v5403
        %v5405 = vrot.slane %v5240, 5
        %v5406 = vrot.slane %v5405, 4
        %v5407 = vrot.slane %v5241, 5
        %v5408 = vsel %vm1587, %v5406, %v5407
        %v5409 = vrot.slane %v5407, 4
        %v5410 = vrot.slane %v5242, 5
        %v5411 = vsel %vm1587, %v5409, %v5410
        %v5412 = vrot.slane %v5243, 5
        %v5413 = vrot.slane %v5412, 4
        %v5414 = vrot.slane %v5244, 5
        %v5415 = vsel %vm1587, %v5413, %v5414
        %v5416 = vrot.slane %v5414, 4
        %v5417 = vrot.slane %v5245, 5
        %v5418 = vsel %vm1587, %v5416, %v5417
        %v5419 = vrot.slane %v5246, 5
        %v5420 = vrot.slane %v5419, 4
        %v5421 = vrot.slane %v5247, 5
        %v5422 = vsel %vm1587, %v5420, %v5421
        %v5423 = vrot.slane %v5421, 4
        %v5424 = vrot.slane %v5248, 5
        %v5425 = vsel %vm1587, %v5423, %v5424
        %v5426 = vunpack.c.l.b16 %v5317
        %v5427 = vunpack.c.l.b16 %v5320
        %v5428 = vunpack.c.l.b16 %v5324
        %v5429 = vunpack.c.l.b16 %v5327
        %v5430 = vunpack.c.l.b16 %v5331
        %v5431 = vunpack.c.l.b16 %v5334
        %v5432 = vunpack.c.l.b16 %v5338
        %v5433 = vunpack.c.l.b16 %v5341
        %v5434 = vunpack.c.l.b16 %v5345
        %v5435 = vunpack.c.l.b16 %v5348
        %v5436 = vunpack.c.l.b16 %v5352
        %v5437 = vunpack.c.l.b16 %v5355
        %v5438 = vunpack.c.l.b16 %v5359
        %v5439 = vunpack.c.l.b16 %v5362
        %v5440 = vunpack.c.l.b16 %v5366
        %v5441 = vunpack.c.l.b16 %v5369
        %v5442 = vunpack.c.l.b16 %v5373
        %v5443 = vunpack.c.l.b16 %v5376
        %v5444 = vunpack.c.l.b16 %v5380
        %v5445 = vunpack.c.l.b16 %v5383
        %v5446 = vunpack.c.l.b16 %v5387
        %v5447 = vunpack.c.l.b16 %v5390
        %v5448 = vunpack.c.l.b16 %v5394
        %v5449 = vunpack.c.l.b16 %v5397
        %v5450 = vunpack.c.l.b16 %v5401
        %v5451 = vunpack.c.l.b16 %v5404
        %v5452 = vunpack.c.l.b16 %v5408
        %v5453 = vunpack.c.l.b16 %v5411
        %v5454 = vunpack.c.l.b16 %v5415
        %v5455 = vunpack.c.l.b16 %v5418
        %v5456 = vunpack.c.l.b16 %v5422
        %v5457 = vunpack.c.l.b16 %v5425
        %v5458 = vpack.c.b16 %v5427, %v5426
        %v5459 = vpack.c.b16 %v5429, %v5428
        %v5460 = vpack.c.b16 %v5431, %v5430
        %v5461 = vpack.c.b16 %v5433, %v5432
        %v5462 = vpack.c.b16 %v5435, %v5434
        %v5463 = vpack.c.b16 %v5437, %v5436
        %v5464 = vpack.c.b16 %v5439, %v5438
        %v5465 = vpack.c.b16 %v5441, %v5440
        %v5466 = vpack.c.b16 %v5443, %v5442
        %v5467 = vpack.c.b16 %v5445, %v5444
        %v5468 = vpack.c.b16 %v5447, %v5446
        %v5469 = vpack.c.b16 %v5449, %v5448
        %v5470 = vpack.c.b16 %v5451, %v5450
        %v5471 = vpack.c.b16 %v5453, %v5452
        %v5472 = vpack.c.b16 %v5455, %v5454
        %v5473 = vpack.c.b16 %v5457, %v5456
        %v5506 = vunpack.c.l.b16 %v5250
        %v5507 = vunpack.c.l.b16 %v5251
        %v5508 = vunpack.c.l.b16 %v5252
        %v5509 = vunpack.c.l.b16 %v5253
        %v5510 = vunpack.c.l.b16 %v5254
        %v5511 = vunpack.c.l.b16 %v5255
        %v5512 = vunpack.c.l.b16 %v5256
        %v5513 = vunpack.c.l.b16 %v5257
        %v5514 = vunpack.c.l.b16 %v5258
        %v5515 = vunpack.c.l.b16 %v5259
        %v5516 = vunpack.c.l.b16 %v5260
        %v5517 = vunpack.c.l.b16 %v5261
        %v5518 = vunpack.c.l.b16 %v5262
        %v5519 = vunpack.c.l.b16 %v5263
        %v5520 = vunpack.c.l.b16 %v5264
        %v5521 = vunpack.c.l.b16 %v5265
        %v5522 = vpack.c.b16 %v5507, %v5506
        %v5523 = vpack.c.b16 %v5509, %v5508
        %v5524 = vpack.c.b16 %v5511, %v5510
        %v5525 = vpack.c.b16 %v5513, %v5512
        %v5526 = vpack.c.b16 %v5515, %v5514
        %v5527 = vpack.c.b16 %v5517, %v5516
        %v5528 = vpack.c.b16 %v5519, %v5518
        %v5529 = vpack.c.b16 %v5521, %v5520
        %5538 = vmatprep.subr.bf16.mxu0 0
        %5539 = vmatpush1.bf16.msra.mxu0 %v5529
        %5540 = vmatprep.subr.bf16.mxu0 0
        %5541 = vmatpush1.bf16.msra.mxu0 %v5528
        %5542 = vmatprep.subr.bf16.mxu0 0
        %5543 = vmatpush1.bf16.msra.mxu0 %v5527
        %5544 = vmatprep.subr.bf16.mxu0 0
        %5545 = vmatpush1.bf16.msra.mxu0 %v5526
        %5546 = vmatprep.subr.bf16.mxu0 0
        %5547 = vmatpush1.bf16.msra.mxu0 %v5525
        %5548 = vmatprep.subr.bf16.mxu0 0
        %5549 = vmatpush1.bf16.msra.mxu0 %v5524
        %5550 = vmatprep.subr.bf16.mxu0 0
        %5551 = vmatpush1.bf16.msra.mxu0 %v5523
        %5552 = vmatprep.subr.bf16.mxu0 0
        %5553 = vmatpush1.bf16.msra.mxu0 %v5522
        %5554 = vmatprep.subr.bf16.mxu0 0
        %5555 = vmatpush2.bf16.msra.mxu0 0
        %5556 = vmatprep.subr.bf16.mxu0 0
        %5557 = vmatpush2.bf16.msra.mxu0 0
        %5558 = vmatprep.subr.bf16.mxu0 0
        %5559 = vmatpush2.bf16.msra.mxu0 0
        %5560 = vmatprep.subr.bf16.mxu0 0
        %5561 = vmatpush2.bf16.msra.mxu0 0
        %5562 = vmatprep.subr.bf16.mxu0 0
        %5563 = vmatpush2.bf16.msra.mxu0 0
        %5564 = vmatprep.subr.bf16.mxu0 0
        %5565 = vmatpush2.bf16.msra.mxu0 0
        %5566 = vmatprep.subr.bf16.mxu0 0
        %5567 = vmatpush2.bf16.msra.mxu0 0
        %5568 = vmatprep.subr.bf16.mxu0 0
        %5569 = vmatpush2.bf16.msra.mxu0 0
        %5570 = vmatprep.mubr.bf16.mxu0 0
        %5571 = vmatmul.mubr.bf16.gmra.mxu0 %v5458
        %v5572 = vpop.f32.mrf.mxu0
        %v5573 = vadd.f32 0.0, %v5572
        %v5574 = vpop.f32.mrf.mxu0
        %v5575 = vpop.f32.mrf.mxu0
        %v5576 = vadd.f32 0.0, %v5575
        %v5577 = vpop.f32.mrf.mxu0
        %5578 = vmatprep.mubr.bf16.mxu0 0
        %5579 = vmatmul.mubr.bf16.gmra.mxu0 %v5459
        %v5580 = vpop.f32.mrf.mxu0
        %v5581 = vadd.f32 0.0, %v5580
        %v5582 = vpop.f32.mrf.mxu0
        %v5583 = vpop.f32.mrf.mxu0
        %v5584 = vadd.f32 0.0, %v5583
        %v5585 = vpop.f32.mrf.mxu0
        %5586 = vmatprep.mubr.bf16.mxu0 0
        %5587 = vmatmul.mubr.bf16.gmra.mxu0 %v5460
        %v5588 = vpop.f32.mrf.mxu0
        %v5589 = vadd.f32 0.0, %v5588
        %v5590 = vpop.f32.mrf.mxu0
        %v5591 = vpop.f32.mrf.mxu0
        %v5592 = vadd.f32 0.0, %v5591
        %v5593 = vpop.f32.mrf.mxu0
        %5594 = vmatprep.mubr.bf16.mxu0 0
        %5595 = vmatmul.mubr.bf16.gmra.mxu0 %v5461
        %v5596 = vpop.f32.mrf.mxu0
        %v5597 = vadd.f32 0.0, %v5596
        %v5598 = vpop.f32.mrf.mxu0
        %v5599 = vpop.f32.mrf.mxu0
        %v5600 = vadd.f32 0.0, %v5599
        %v5601 = vpop.f32.mrf.mxu0
        %5602 = vmatprep.mubr.bf16.mxu0 0
        %5603 = vmatmul.mubr.bf16.gmra.mxu0 %v5462
        %v5604 = vpop.f32.mrf.mxu0
        %v5605 = vadd.f32 0.0, %v5604
        %v5606 = vpop.f32.mrf.mxu0
        %v5607 = vpop.f32.mrf.mxu0
        %v5608 = vadd.f32 0.0, %v5607
        %v5609 = vpop.f32.mrf.mxu0
        %5610 = vmatprep.mubr.bf16.mxu0 0
        %5611 = vmatmul.mubr.bf16.gmra.mxu0 %v5463
        %v5612 = vpop.f32.mrf.mxu0
        %v5613 = vadd.f32 0.0, %v5612
        %v5614 = vpop.f32.mrf.mxu0
        %v5615 = vpop.f32.mrf.mxu0
        %v5616 = vadd.f32 0.0, %v5615
        %v5617 = vpop.f32.mrf.mxu0
        %5618 = vmatprep.mubr.bf16.mxu0 0
        %5619 = vmatmul.mubr.bf16.gmra.mxu0 %v5464
        %v5620 = vpop.f32.mrf.mxu0
        %v5621 = vadd.f32 0.0, %v5620
        %v5622 = vpop.f32.mrf.mxu0
        %v5623 = vpop.f32.mrf.mxu0
        %v5624 = vadd.f32 0.0, %v5623
        %v5625 = vpop.f32.mrf.mxu0
        %5626 = vmatprep.mubr.bf16.mxu0 0
        %5627 = vmatmul.mubr.bf16.gmra.mxu0 %v5465
        %v5628 = vpop.f32.mrf.mxu0
        %v5629 = vadd.f32 0.0, %v5628
        %v5630 = vpop.f32.mrf.mxu0
        %v5631 = vpop.f32.mrf.mxu0
        %v5632 = vadd.f32 0.0, %v5631
        %v5633 = vpop.f32.mrf.mxu0
        %5634 = vmatprep.mubr.bf16.mxu0 0
        %5635 = vmatmul.mubr.bf16.gmra.mxu0 %v5466
        %v5636 = vpop.f32.mrf.mxu0
        %v5637 = vadd.f32 0.0, %v5636
        %v5638 = vpop.f32.mrf.mxu0
        %v5639 = vpop.f32.mrf.mxu0
        %v5640 = vadd.f32 0.0, %v5639
        %v5641 = vpop.f32.mrf.mxu0
        %5642 = vmatprep.mubr.bf16.mxu0 0
        %5643 = vmatmul.mubr.bf16.gmra.mxu0 %v5467
        %v5644 = vpop.f32.mrf.mxu0
        %v5645 = vadd.f32 0.0, %v5644
        %v5646 = vpop.f32.mrf.mxu0
        %v5647 = vpop.f32.mrf.mxu0
        %v5648 = vadd.f32 0.0, %v5647
        %v5649 = vpop.f32.mrf.mxu0
        %5650 = vmatprep.mubr.bf16.mxu0 0
        %5651 = vmatmul.mubr.bf16.gmra.mxu0 %v5468
        %v5652 = vpop.f32.mrf.mxu0
        %v5653 = vadd.f32 0.0, %v5652
        %v5654 = vpop.f32.mrf.mxu0
        %v5655 = vpop.f32.mrf.mxu0
        %v5656 = vadd.f32 0.0, %v5655
        %v5657 = vpop.f32.mrf.mxu0
        %5658 = vmatprep.mubr.bf16.mxu0 0
        %5659 = vmatmul.mubr.bf16.gmra.mxu0 %v5469
        %v5660 = vpop.f32.mrf.mxu0
        %v5661 = vadd.f32 0.0, %v5660
        %v5662 = vpop.f32.mrf.mxu0
        %v5663 = vpop.f32.mrf.mxu0
        %v5664 = vadd.f32 0.0, %v5663
        %v5665 = vpop.f32.mrf.mxu0
        %5666 = vmatprep.mubr.bf16.mxu0 0
        %5667 = vmatmul.mubr.bf16.gmra.mxu0 %v5470
        %v5668 = vpop.f32.mrf.mxu0
        %v5669 = vadd.f32 0.0, %v5668
        %v5670 = vpop.f32.mrf.mxu0
        %v5671 = vpop.f32.mrf.mxu0
        %v5672 = vadd.f32 0.0, %v5671
        %v5673 = vpop.f32.mrf.mxu0
        %5674 = vmatprep.mubr.bf16.mxu0 0
        %5675 = vmatmul.mubr.bf16.gmra.mxu0 %v5471
        %v5676 = vpop.f32.mrf.mxu0
        %v5677 = vadd.f32 0.0, %v5676
        %v5678 = vpop.f32.mrf.mxu0
        %v5679 = vpop.f32.mrf.mxu0
        %v5680 = vadd.f32 0.0, %v5679
        %v5681 = vpop.f32.mrf.mxu0
        %5682 = vmatprep.mubr.bf16.mxu0 0
        %5683 = vmatmul.mubr.bf16.gmra.mxu0 %v5472
        %v5684 = vpop.f32.mrf.mxu0
        %v5685 = vadd.f32 0.0, %v5684
        %v5686 = vpop.f32.mrf.mxu0
        %v5687 = vpop.f32.mrf.mxu0
        %v5688 = vadd.f32 0.0, %v5687
        %v5689 = vpop.f32.mrf.mxu0
        %5690 = vmatprep.mubr.bf16.mxu0 0
        %5691 = vmatmul.mubr.bf16.gmra.mxu0 %v5473
        %v5692 = vpop.f32.mrf.mxu0
        %v5693 = vadd.f32 0.0, %v5692
        %v5694 = vpop.f32.mrf.mxu0
        %v5695 = vpop.f32.mrf.mxu0
        %v5696 = vadd.f32 0.0, %v5695
        %v5697 = vpop.f32.mrf.mxu0
        %5698 = vdwg.mxu0
        %v5699 = vld [vmem:[%s248] sm:$0xff]
        %v5700 = vld [vmem:[%s248 + $0x8] sm:$0xff]
        %v5701 = vld [vmem:[%s248 + $0x10] sm:$0xff]
        %v5702 = vld [vmem:[%s248 + $0x18] sm:$0xff]
        %v5703 = vld [vmem:[%s248 + $0x20] sm:$0xff]
        %v5704 = vld [vmem:[%s248 + $0x28] sm:$0xff]
        %v5705 = vld [vmem:[%s248 + $0x30] sm:$0xff]
        %v5706 = vld [vmem:[%s248 + $0x38] sm:$0xff]
        %v5707 = vld [vmem:[%s248 + $0x40] sm:$0xff]
        %v5708 = vld [vmem:[%s248 + $0x48] sm:$0xff]
        %v5709 = vld [vmem:[%s248 + $0x50] sm:$0xff]
        %v5710 = vld [vmem:[%s248 + $0x58] sm:$0xff]
        %v5711 = vld [vmem:[%s248 + $0x60] sm:$0xff]
        %v5712 = vld [vmem:[%s248 + $0x68] sm:$0xff]
        %v5713 = vld [vmem:[%s248 + $0x70] sm:$0xff]
        %v5714 = vld [vmem:[%s248 + $0x78] sm:$0xff]
        %v5715 = vld [vmem:[%s248 + $0x80] sm:$0xff]
        %v5716 = vld [vmem:[%s248 + $0x88] sm:$0xff]
        %v5717 = vld [vmem:[%s248 + $0x90] sm:$0xff]
        %v5718 = vld [vmem:[%s248 + $0x98] sm:$0xff]
        %v5719 = vld [vmem:[%s248 + $0xa0] sm:$0xff]
        %v5720 = vld [vmem:[%s248 + $0xa8] sm:$0xff]
        %v5721 = vld [vmem:[%s248 + $0xb0] sm:$0xff]
        %v5722 = vld [vmem:[%s248 + $0xb8] sm:$0xff]
        %v5723 = vld [vmem:[%s248 + $0xc0] sm:$0xff]
        %v5724 = vld [vmem:[%s248 + $0xc8] sm:$0xff]
        %v5725 = vld [vmem:[%s248 + $0xd0] sm:$0xff]
        %v5726 = vld [vmem:[%s248 + $0xd8] sm:$0xff]
        %v5727 = vld [vmem:[%s248 + $0xe0] sm:$0xff]
        %v5728 = vld [vmem:[%s248 + $0xe8] sm:$0xff]
        %v5729 = vld [vmem:[%s248 + $0xf0] sm:$0xff]
        %v5730 = vld [vmem:[%s248 + $0xf8] sm:$0xff]
        %v5731 = vadd.f32 %v5699, %v5573
        %v5732 = vadd.f32 %v5700, %v5576
        %v5733 = vadd.f32 %v5701, %v5581
        %v5734 = vadd.f32 %v5702, %v5584
        %v5735 = vadd.f32 %v5703, %v5589
        %v5736 = vadd.f32 %v5704, %v5592
        %v5737 = vadd.f32 %v5705, %v5597
        %v5738 = vadd.f32 %v5706, %v5600
        %v5739 = vadd.f32 %v5707, %v5605
        %v5740 = vadd.f32 %v5708, %v5608
        %v5741 = vadd.f32 %v5709, %v5613
        %v5742 = vadd.f32 %v5710, %v5616
        %v5743 = vadd.f32 %v5711, %v5621
        %v5744 = vadd.f32 %v5712, %v5624
        %v5745 = vadd.f32 %v5713, %v5629
        %v5746 = vadd.f32 %v5714, %v5632
        %v5747 = vadd.f32 %v5715, %v5637
        %v5748 = vadd.f32 %v5716, %v5640
        %v5749 = vadd.f32 %v5717, %v5645
        %v5750 = vadd.f32 %v5718, %v5648
        %v5751 = vadd.f32 %v5719, %v5653
        %v5752 = vadd.f32 %v5720, %v5656
        %v5753 = vadd.f32 %v5721, %v5661
        %v5754 = vadd.f32 %v5722, %v5664
        %v5755 = vadd.f32 %v5723, %v5669
        %v5756 = vadd.f32 %v5724, %v5672
        %v5757 = vadd.f32 %v5725, %v5677
        %v5758 = vadd.f32 %v5726, %v5680
        %v5759 = vadd.f32 %v5727, %v5685
        %v5760 = vadd.f32 %v5728, %v5688
        %v5761 = vadd.f32 %v5729, %v5693
        %v5762 = vadd.f32 %v5730, %v5696
        %5763 = vst [vmem:[%s248] sm:$0xff] %v5731
        %5764 = vst [vmem:[%s248 + $0x8] sm:$0xff] %v5732
        %5765 = vst [vmem:[%s248 + $0x10] sm:$0xff] %v5733
        %5766 = vst [vmem:[%s248 + $0x18] sm:$0xff] %v5734
        %5767 = vst [vmem:[%s248 + $0x20] sm:$0xff] %v5735
        %5768 = vst [vmem:[%s248 + $0x28] sm:$0xff] %v5736
        %5769 = vst [vmem:[%s248 + $0x30] sm:$0xff] %v5737
        %5770 = vst [vmem:[%s248 + $0x38] sm:$0xff] %v5738
        %5771 = vst [vmem:[%s248 + $0x40] sm:$0xff] %v5739
        %5772 = vst [vmem:[%s248 + $0x48] sm:$0xff] %v5740
        %5773 = vst [vmem:[%s248 + $0x50] sm:$0xff] %v5741
        %5774 = vst [vmem:[%s248 + $0x58] sm:$0xff] %v5742
        %5775 = vst [vmem:[%s248 + $0x60] sm:$0xff] %v5743
        %5776 = vst [vmem:[%s248 + $0x68] sm:$0xff] %v5744
        %5777 = vst [vmem:[%s248 + $0x70] sm:$0xff] %v5745
        %5778 = vst [vmem:[%s248 + $0x78] sm:$0xff] %v5746
        %5779 = vst [vmem:[%s248 + $0x80] sm:$0xff] %v5747
        %5780 = vst [vmem:[%s248 + $0x88] sm:$0xff] %v5748
        %5781 = vst [vmem:[%s248 + $0x90] sm:$0xff] %v5749
        %5782 = vst [vmem:[%s248 + $0x98] sm:$0xff] %v5750
        %5783 = vst [vmem:[%s248 + $0xa0] sm:$0xff] %v5751
        %5784 = vst [vmem:[%s248 + $0xa8] sm:$0xff] %v5752
        %5785 = vst [vmem:[%s248 + $0xb0] sm:$0xff] %v5753
        %5786 = vst [vmem:[%s248 + $0xb8] sm:$0xff] %v5754
        %5787 = vst [vmem:[%s248 + $0xc0] sm:$0xff] %v5755
        %5788 = vst [vmem:[%s248 + $0xc8] sm:$0xff] %v5756
        %5789 = vst [vmem:[%s248 + $0xd0] sm:$0xff] %v5757
        %5790 = vst [vmem:[%s248 + $0xd8] sm:$0xff] %v5758
        %5791 = vst [vmem:[%s248 + $0xe0] sm:$0xff] %v5759
        %5792 = vst [vmem:[%s248 + $0xe8] sm:$0xff] %v5760
        %5793 = vst [vmem:[%s248 + $0xf0] sm:$0xff] %v5761
        %5794 = vst [vmem:[%s248 + $0xf8] sm:$0xff] %v5762
        %v5795 = vld [vmem:[%s248] sm:$0xff]
        %v5796 = vld [vmem:[%s248 + $0x8] sm:$0xff]
        %v5797 = vld [vmem:[%s248 + $0x10] sm:$0xff]
        %v5798 = vld [vmem:[%s248 + $0x18] sm:$0xff]
        %v5799 = vld [vmem:[%s248 + $0x20] sm:$0xff]
        %v5800 = vld [vmem:[%s248 + $0x28] sm:$0xff]
        %v5801 = vld [vmem:[%s248 + $0x30] sm:$0xff]
        %v5802 = vld [vmem:[%s248 + $0x38] sm:$0xff]
        %v5803 = vld [vmem:[%s248 + $0x40] sm:$0xff]
        %v5804 = vld [vmem:[%s248 + $0x48] sm:$0xff]
        %v5805 = vld [vmem:[%s248 + $0x50] sm:$0xff]
        %v5806 = vld [vmem:[%s248 + $0x58] sm:$0xff]
        %v5807 = vld [vmem:[%s248 + $0x60] sm:$0xff]
        %v5808 = vld [vmem:[%s248 + $0x68] sm:$0xff]
        %v5809 = vld [vmem:[%s248 + $0x70] sm:$0xff]
        %v5810 = vld [vmem:[%s248 + $0x78] sm:$0xff]
        %v5811 = vld [vmem:[%s248 + $0x80] sm:$0xff]
        %v5812 = vld [vmem:[%s248 + $0x88] sm:$0xff]
        %v5813 = vld [vmem:[%s248 + $0x90] sm:$0xff]
        %v5814 = vld [vmem:[%s248 + $0x98] sm:$0xff]
        %v5815 = vld [vmem:[%s248 + $0xa0] sm:$0xff]
        %v5816 = vld [vmem:[%s248 + $0xa8] sm:$0xff]
        %v5817 = vld [vmem:[%s248 + $0xb0] sm:$0xff]
        %v5818 = vld [vmem:[%s248 + $0xb8] sm:$0xff]
        %v5819 = vld [vmem:[%s248 + $0xc0] sm:$0xff]
        %v5820 = vld [vmem:[%s248 + $0xc8] sm:$0xff]
        %v5821 = vld [vmem:[%s248 + $0xd0] sm:$0xff]
        %v5822 = vld [vmem:[%s248 + $0xd8] sm:$0xff]
        %v5823 = vld [vmem:[%s248 + $0xe0] sm:$0xff]
        %v5824 = vld [vmem:[%s248 + $0xe8] sm:$0xff]
        %v5825 = vld [vmem:[%s248 + $0xf0] sm:$0xff]
        %v5826 = vld [vmem:[%s248 + $0xf8] sm:$0xff]
        %v5827 = vld [vmem:[%s260] sm:$0x1]
        %v5829 = vlaneseq
        %v5830 = vshrl.u32 %v5829, 7
        %v5831 = vsub.s32 0, %v5830
        %v5832 = vrot.slane %v5827, %v5831
        %v5834 = vmul.f32 %v5795, %v5832
        %v5835 = vmul.f32 %v5796, %v5832
        %v5836 = vmul.f32 %v5797, %v5832
        %v5837 = vmul.f32 %v5798, %v5832
        %v5838 = vmul.f32 %v5799, %v5832
        %v5839 = vmul.f32 %v5800, %v5832
        %v5840 = vmul.f32 %v5801, %v5832
        %v5841 = vmul.f32 %v5802, %v5832
        %v5842 = vmul.f32 %v5803, %v5832
        %v5843 = vmul.f32 %v5804, %v5832
        %v5844 = vmul.f32 %v5805, %v5832
        %v5845 = vmul.f32 %v5806, %v5832
        %v5846 = vmul.f32 %v5807, %v5832
        %v5847 = vmul.f32 %v5808, %v5832
        %v5848 = vmul.f32 %v5809, %v5832
        %v5849 = vmul.f32 %v5810, %v5832
        %v5850 = vmul.f32 %v5811, %v5832
        %v5851 = vmul.f32 %v5812, %v5832
        %v5852 = vmul.f32 %v5813, %v5832
        %v5853 = vmul.f32 %v5814, %v5832
        %v5854 = vmul.f32 %v5815, %v5832
        %v5855 = vmul.f32 %v5816, %v5832
        %v5856 = vmul.f32 %v5817, %v5832
        %v5857 = vmul.f32 %v5818, %v5832
        %v5858 = vmul.f32 %v5819, %v5832
        %v5859 = vmul.f32 %v5820, %v5832
        %v5860 = vmul.f32 %v5821, %v5832
        %v5861 = vmul.f32 %v5822, %v5832
        %v5862 = vmul.f32 %v5823, %v5832
        %v5863 = vmul.f32 %v5824, %v5832
        %v5864 = vmul.f32 %v5825, %v5832
        %v5865 = vmul.f32 %v5826, %v5832
        %v5866 = vld [vmem:[%s263] sm:$0x1]
        %v5868 = vlaneseq
        %v5869 = vshrl.u32 %v5868, 7
        %v5870 = vsub.s32 0, %v5869
        %v5871 = vrot.slane %v5866, %v5870
        %v5873 = vadd.f32 %v5834, %v5871
        %v5874 = vadd.f32 %v5835, %v5871
        %v5875 = vadd.f32 %v5836, %v5871
        %v5876 = vadd.f32 %v5837, %v5871
        %v5877 = vadd.f32 %v5838, %v5871
        %v5878 = vadd.f32 %v5839, %v5871
        %v5879 = vadd.f32 %v5840, %v5871
        %v5880 = vadd.f32 %v5841, %v5871
        %v5881 = vadd.f32 %v5842, %v5871
        %v5882 = vadd.f32 %v5843, %v5871
        %v5883 = vadd.f32 %v5844, %v5871
        %v5884 = vadd.f32 %v5845, %v5871
        %v5885 = vadd.f32 %v5846, %v5871
        %v5886 = vadd.f32 %v5847, %v5871
        %v5887 = vadd.f32 %v5848, %v5871
        %v5888 = vadd.f32 %v5849, %v5871
        %v5889 = vadd.f32 %v5850, %v5871
        %v5890 = vadd.f32 %v5851, %v5871
        %v5891 = vadd.f32 %v5852, %v5871
        %v5892 = vadd.f32 %v5853, %v5871
        %v5893 = vadd.f32 %v5854, %v5871
        %v5894 = vadd.f32 %v5855, %v5871
        %v5895 = vadd.f32 %v5856, %v5871
        %v5896 = vadd.f32 %v5857, %v5871
        %v5897 = vadd.f32 %v5858, %v5871
        %v5898 = vadd.f32 %v5859, %v5871
        %v5899 = vadd.f32 %v5860, %v5871
        %v5900 = vadd.f32 %v5861, %v5871
        %v5901 = vadd.f32 %v5862, %v5871
        %v5902 = vadd.f32 %v5863, %v5871
        %v5903 = vadd.f32 %v5864, %v5871
        %v5904 = vadd.f32 %v5865, %v5871
        %v5905 = vmax.f32 %v5873, 0.0
        %v5906 = vmax.f32 %v5874, 0.0
        %v5907 = vmax.f32 %v5875, 0.0
        %v5908 = vmax.f32 %v5876, 0.0
        %v5909 = vmax.f32 %v5877, 0.0
        %v5910 = vmax.f32 %v5878, 0.0
        %v5911 = vmax.f32 %v5879, 0.0
        %v5912 = vmax.f32 %v5880, 0.0
        %v5913 = vmax.f32 %v5881, 0.0
        %v5914 = vmax.f32 %v5882, 0.0
        %v5915 = vmax.f32 %v5883, 0.0
        %v5916 = vmax.f32 %v5884, 0.0
        %v5917 = vmax.f32 %v5885, 0.0
        %v5918 = vmax.f32 %v5886, 0.0
        %v5919 = vmax.f32 %v5887, 0.0
        %v5920 = vmax.f32 %v5888, 0.0
        %v5921 = vmax.f32 %v5889, 0.0
        %v5922 = vmax.f32 %v5890, 0.0
        %v5923 = vmax.f32 %v5891, 0.0
        %v5924 = vmax.f32 %v5892, 0.0
        %v5925 = vmax.f32 %v5893, 0.0
        %v5926 = vmax.f32 %v5894, 0.0
        %v5927 = vmax.f32 %v5895, 0.0
        %v5928 = vmax.f32 %v5896, 0.0
        %v5929 = vmax.f32 %v5897, 0.0
        %v5930 = vmax.f32 %v5898, 0.0
        %v5931 = vmax.f32 %v5899, 0.0
        %v5932 = vmax.f32 %v5900, 0.0
        %v5933 = vmax.f32 %v5901, 0.0
        %v5934 = vmax.f32 %v5902, 0.0
        %v5935 = vmax.f32 %v5903, 0.0
        %v5936 = vmax.f32 %v5904, 0.0
        %5937 = vst [vmem:[%s248] sm:$0xff] %v5905
        %5938 = vst [vmem:[%s248 + $0x8] sm:$0xff] %v5906
        %5939 = vst [vmem:[%s248 + $0x10] sm:$0xff] %v5907
        %5940 = vst [vmem:[%s248 + $0x18] sm:$0xff] %v5908
        %5941 = vst [vmem:[%s248 + $0x20] sm:$0xff] %v5909
        %5942 = vst [vmem:[%s248 + $0x28] sm:$0xff] %v5910
        %5943 = vst [vmem:[%s248 + $0x30] sm:$0xff] %v5911
        %5944 = vst [vmem:[%s248 + $0x38] sm:$0xff] %v5912
        %5945 = vst [vmem:[%s248 + $0x40] sm:$0xff] %v5913
        %5946 = vst [vmem:[%s248 + $0x48] sm:$0xff] %v5914
        %5947 = vst [vmem:[%s248 + $0x50] sm:$0xff] %v5915
        %5948 = vst [vmem:[%s248 + $0x58] sm:$0xff] %v5916
        %5949 = vst [vmem:[%s248 + $0x60] sm:$0xff] %v5917
        %5950 = vst [vmem:[%s248 + $0x68] sm:$0xff] %v5918
        %5951 = vst [vmem:[%s248 + $0x70] sm:$0xff] %v5919
        %5952 = vst [vmem:[%s248 + $0x78] sm:$0xff] %v5920
        %5953 = vst [vmem:[%s248 + $0x80] sm:$0xff] %v5921
        %5954 = vst [vmem:[%s248 + $0x88] sm:$0xff] %v5922
        %5955 = vst [vmem:[%s248 + $0x90] sm:$0xff] %v5923
        %5956 = vst [vmem:[%s248 + $0x98] sm:$0xff] %v5924
        %5957 = vst [vmem:[%s248 + $0xa0] sm:$0xff] %v5925
        %5958 = vst [vmem:[%s248 + $0xa8] sm:$0xff] %v5926
        %5959 = vst [vmem:[%s248 + $0xb0] sm:$0xff] %v5927
        %5960 = vst [vmem:[%s248 + $0xb8] sm:$0xff] %v5928
        %5961 = vst [vmem:[%s248 + $0xc0] sm:$0xff] %v5929
        %5962 = vst [vmem:[%s248 + $0xc8] sm:$0xff] %v5930
        %5963 = vst [vmem:[%s248 + $0xd0] sm:$0xff] %v5931
        %5964 = vst [vmem:[%s248 + $0xd8] sm:$0xff] %v5932
        %5965 = vst [vmem:[%s248 + $0xe0] sm:$0xff] %v5933
        %5966 = vst [vmem:[%s248 + $0xe8] sm:$0xff] %v5934
        %5967 = vst [vmem:[%s248 + $0xf0] sm:$0xff] %v5935
        %5968 = vst [vmem:[%s248 + $0xf8] sm:$0xff] %v5936
        %s5969 = sand.u32 %s153, 1
        %s5970 = scalar_lea.sflag [#allocation3], %s5969
        %s5971 = sand.u32 %s153, 1
        %s5972 = smul.addr %s5971, 256
        %s5973 = scalar_lea.vmem [#allocation2], %s5972
        // Predicated region
        $region37: #{tpu_custom_call.1} parent=35 // pred_check
          %p5974 = pneg %p163
        $region38: #{tpu_custom_call.1} parent=35 // pred_check_branch
          %5976 = sbr.rel (%p5974) target = $region40
        $region39: #{tpu_custom_call.1} parent=35 // pred_region
          %s5977 = smul.u32 32, %s25
          %s5979 = ssub.s32 4096, 4096
          %5980 = vsyncadd %s5970, %s5979
          %s5981 = sadd.s32 %s24, %s5977
          %s5982 = smul.addr %s23, 32
          %s5983 = sadd.s32 %s5981, %s5982
          %s5984 = smul.addr %s5983, 128
          %s5985 = scalar_lea.hbm %s4, %s5984
          %s5986 = sshll.u32 %s5973, 4
          %s5987 = int_to_ptr.vmem [resolvable:$true] %s5986
          %5992 = dma.vmem_to_hbm [thread:$0]  %s5987, 4096, %s5985, %s5970, 128, 128, 8
        $region40: #{tpu_custom_call.1} parent=35 // pred_fallthru
          _
      $region36: #{tpu_custom_call.1} parent=5 // pred_fallthru
        _
      %p5993 = scmp.le.s32.totalorder 2, %s13
      // Predicated region
      $region41: #{tpu_custom_call.1} parent=5 // pred_check
        %p5994 = pneg %p5993
      $region42: #{tpu_custom_call.1} parent=5 // pred_check_branch
        %5996 = sbr.rel (%p5994) target = $region44
      $region43: #{tpu_custom_call.1} parent=5 // pred_region
        %s5997 = ssub.s32 %s13, 2
        // Predicated region
        $region45: #{tpu_custom_call.1} parent=43 // pred_check
          %p5998 = pneg %p169
        $region46: #{tpu_custom_call.1} parent=43 // pred_check_branch
          %6000 = sbr.rel (%p5998) target = $region48
        $region47: #{tpu_custom_call.1} parent=43 // pred_region
          %s6001 = sand.u32 %s154, 1
          %s6002 = scalar_lea.sflag [#allocation3], %s6001
          %s6003 = sand.u32 %s154, 1
          %s6004 = smul.addr %s6003, 256
          %s6005 = scalar_lea.vmem [#allocation2], %s6004
          %6006 = dma.done %s6002, 4096
        $region48: #{tpu_custom_call.1} parent=43 // pred_fallthru
          _
      $region44: #{tpu_custom_call.1} parent=5 // pred_fallthru
        _
    $region6: #{tpu_custom_call.1} parent=1 // loop_footer
      %s17 = sadd.s32 1, %s13
    $region7: #{tpu_custom_call.1} parent=1 // loop_footer_branch
      %12 = sbr.rel target = $region3
    $region8: #{tpu_custom_call.1} parent=1 // loop_exit
      _
    %6007 = vsyncpa [#allocation3], 1
    %s6008 = scalar_lea.sflag [#allocation3], 1
    %6009 = vsyncpa %s6008, 1

</llo_original>
